<compile_context>
chip_gen: v5e
topology: v5e:2x2
jax: 0.10.0
libtpu: 0.0.40
codegen_flags: <defaults>
</compile_context>

<pallas_src>
import math

import jax
import jax.numpy as jnp
from jax import lax
from jax.experimental import pallas as pl
from jax.experimental.pallas import tpu as pltpu


# ----------------------------------------------------------------------------
# Fused branch kernel: fused-QKV self-attention + stacked LSTM -> last hidden
# ----------------------------------------------------------------------------
def _make_branch_kernel(T, NB, num_layers):
    """Kernel for one branch over a block of NB independent windows.

    Per-grid-step ref layout (weights bf16, biases f32):
      x_ref   : (T*NB, D) bf16, row r = t*NB + b  (b = window within the block)
      wqkv    : (D, 3D) fused [Wq | Wk | Wv];   bqkv : (1, 3D)
      per LSTM layer l: wih_l (Din, 4H), whh_l (H, 4H), b_l (1, 4H)
      out_ref : (NB, H)   last hidden state of the last LSTM layer (f32)
      gx_buf  : (T*NB, 4H) f32 VMEM scratch (layer-0 input projection)
    """
    R = T * NB

    def kernel(x_ref, wqkv_ref, bqkv_ref, *refs):
        lstm_refs = refs[:3 * num_layers]
        out_ref = refs[3 * num_layers]
        gx_buf = refs[3 * num_layers + 1]

        D = x_ref.shape[-1]
        H = out_ref.shape[-1]

        # -------------------- fused-QKV self-attention --------------------
        x = x_ref[...]                                            # (R, D) bf16
        qkv = jnp.dot(x, wqkv_ref[...],
                      preferred_element_type=jnp.float32) + bqkv_ref[...]
        q = qkv[:, 0 * D:1 * D].astype(jnp.bfloat16)
        k = qkv[:, 1 * D:2 * D].astype(jnp.bfloat16)
        v = qkv[:, 2 * D:3 * D].astype(jnp.bfloat16)

        # Literal constant from the PyTorch code (independent of D).
        scale = 1.0 / math.sqrt(2048.0)
        # NOTE(v6e): the ((1,),(1,)) contraction transposes k on the XLU once
        # per block; acceptable here, revisit if the XLU slot binds at large D.
        s = lax.dot_general(q, k, (((1,), (1,)), ((), ())),
                            preferred_element_type=jnp.float32)   # (R, R)

        # In-kernel block mask (no O(R^2) HBM mask input): a row attends only
        # to rows of its own window; row r belongs to window (r % NB).
        row_w = lax.broadcasted_iota(jnp.int32, (R, R), 0) % NB
        col_w = lax.broadcasted_iota(jnp.int32, (R, R), 1) % NB
        s = jnp.where(row_w == col_w, s * scale, -1e30)

        m = jnp.max(s, axis=-1, keepdims=True)
        e = jnp.exp(s - m)
        p = e * pl.reciprocal(jnp.sum(e, axis=-1, keepdims=True), approx=True)
        seq = jnp.dot(p.astype(jnp.bfloat16), v,
                      preferred_element_type=jnp.float32)         # (R, D) f32

        # ---------------- stacked LSTM (wavefront across layers) ----------
        # Layer-0 input projection hoisted out of the recurrence: one MXU call,
        # parked in VMEM scratch so the (R, 4H) block never lives in vregs.
        gx_buf[...] = (jnp.dot(seq.astype(jnp.bfloat16), lstm_refs[0][...],
                               preferred_element_type=jnp.float32)
                       + lstm_refs[2][...])

        h = [jnp.zeros((NB, H), jnp.float32) for _ in range(num_layers)]
        c = [jnp.zeros((NB, H), jnp.float32) for _ in range(num_layers)]

        def cell(gates, c_prev):
            i_g = jax.nn.sigmoid(gates[:, 0 * H:1 * H])
            f_g = jax.nn.sigmoid(gates[:, 1 * H:2 * H])
            g_g = jnp.tanh(gates[:, 2 * H:3 * H])
            o_g = jax.nn.sigmoid(gates[:, 3 * H:4 * H])
            c_new = f_g * c_prev + i_g * g_g
            return o_g * jnp.tanh(c_new), c_new

        # Wavefront schedule: at step s, layer l processes time t = s - l, so
        # the dependent recurrence chains of the layers overlap.  Layers are
        # visited in reverse order so layer l reads layer l-1's hidden at the
        # correct time t (before layer l-1 advances to t+1 this step).
        # TODO(synk): pltpu.matmul_push_rhs to keep whh staged in the MXU
        # across the unrolled steps would shave the remaining RHS re-push cost.
        for step in range(T + num_layers - 1):
            for layer in reversed(range(num_layers)):
                t = step - layer
                if not (0 <= t < T):
                    continue
                whh = lstm_refs[3 * layer + 1][...]
                if layer == 0:
                    gin = gx_buf[t * NB:(t + 1) * NB, :]
                else:
                    wih = lstm_refs[3 * layer][...]
                    b = lstm_refs[3 * layer + 2][...]
                    gin = jnp.dot(h[layer - 1].astype(jnp.bfloat16), wih,
                                  preferred_element_type=jnp.float32) + b
                gates = gin + jnp.dot(h[layer].astype(jnp.bfloat16), whh,
                                      preferred_element_type=jnp.float32)
                h[layer], c[layer] = cell(gates, c[layer])

        out_ref[...] = h[num_layers - 1].astype(out_ref.dtype)

    return kernel


def _branch_forward(x_nwd, qkv_params, lstm_params, out_dtype, block_nb=None):
    """x_nwd: (N, T, D) independent windows -> (N, H). One fused branch kernel."""
    N, T, D = x_nwd.shape
    wqkv, bqkv = qkv_params
    H = lstm_params[0][1].shape[0]
    L = len(lstm_params)

    if block_nb is None:
        # ~256 flattened attention rows per grid step: fills the MXU, bounds
        # the masked R^2 waste/VMEM, keeps s/e/p small.  Sublane aligned.
        n_pad8 = ((N + 7) // 8) * 8
        block_nb = max(8, min(n_pad8, ((256 // max(T, 1)) // 8) * 8))
    assert block_nb % 8 == 0
    n_blocks = pl.cdiv(N, block_nb)
    Np = n_blocks * block_nb
    R = T * block_nb

    # Blocked, time-major-within-block layout: block i holds windows
    # [i*block_nb, (i+1)*block_nb); row r = t*block_nb + b_local.  Padded
    # windows are zeros; their outputs are sliced off below.
    x = jnp.pad(x_nwd.astype(jnp.bfloat16), ((0, Np - N), (0, 0), (0, 0)))
    x_blk = jnp.transpose(x.reshape(n_blocks, block_nb, T, D), (0, 2, 1, 3))
    x_blk = x_blk.reshape(n_blocks, R, D)

    # Activations stream per block (double-buffered by default); weights get
    # constant-index specs and stay resident in VMEM across the whole grid.
    # TODO(synk): at production fc_feat_size=2048 the bf16 weights (~152 MiB)
    # exceed VMEM on every generation — tile wqkv along 3D and wih/whh along 4H
    # over an extra grid axis and set vmem_limit_bytes per-chip.
    in_specs = [pl.BlockSpec((None, R, D), lambda i: (i, 0, 0)),
                pl.BlockSpec((D, 3 * D), lambda i: (0, 0)),
                pl.BlockSpec((1, 3 * D), lambda i: (0, 0))]
    args = [x_blk, wqkv, bqkv]
    for (wih, whh, b) in lstm_params:
        d_in = wih.shape[0]
        in_specs += [pl.BlockSpec((d_in, 4 * H), lambda i: (0, 0)),
                     pl.BlockSpec((H, 4 * H), lambda i: (0, 0)),
                     pl.BlockSpec((1, 4 * H), lambda i: (0, 0))]
        args += [wih, whh, b]

    out = pl.pallas_call(
        _make_branch_kernel(T, block_nb, L),
        out_shape=jax.ShapeDtypeStruct((Np, H), out_dtype),
        grid_spec=pltpu.PrefetchScalarGridSpec(
            num_scalar_prefetch=0,
            grid=(n_blocks,),
            in_specs=in_specs,
            out_specs=pl.BlockSpec((block_nb, H), lambda i: (i, 0)),
            scratch_shapes=[pltpu.VMEM((R, 4 * H), jnp.float32)],
        ),
        compiler_params=pltpu.CompilerParams(
            dimension_semantics=("parallel",)),
    )(*args)
    return out[:N]


# ----------------------------------------------------------------------------
# Parameter construction (deterministic, PyTorch-default-like uniform init)
# ----------------------------------------------------------------------------
def _fused_qkv_params(key, d):
    """linear_q | linear_k | linear_v with weights concatenated along 3D."""
    k1, k2 = jax.random.split(key)
    lim = 1.0 / math.sqrt(d)
    w = jax.random.uniform(k1, (d, 3 * d), jnp.float32, -lim, lim)
    b = jax.random.uniform(k2, (1, 3 * d), jnp.float32, -lim, lim)
    return w.astype(jnp.bfloat16), b


def _lstm_params(key, din, hidden, num_layers):
    """PyTorch-style LSTM params; b_ih and b_hh pre-summed into one bias."""
    layers = []
    lim = 1.0 / math.sqrt(hidden)
    for l in range(num_layers):
        key, k1, k2, k3, k4 = jax.random.split(key, 5)
        d_in = din if l == 0 else hidden
        wih = jax.random.uniform(k1, (d_in, 4 * hidden), jnp.float32, -lim, lim)
        whh = jax.random.uniform(k2, (hidden, 4 * hidden), jnp.float32, -lim, lim)
        b_ih = jax.random.uniform(k3, (1, 4 * hidden), jnp.float32, -lim, lim)
        b_hh = jax.random.uniform(k4, (1, 4 * hidden), jnp.float32, -lim, lim)
        layers.append((wih.astype(jnp.bfloat16), whh.astype(jnp.bfloat16),
                       b_ih + b_hh))
    return layers


def make_encoder_params(key, fc_feat_size, num_lstm_layers=2):
    keys = jax.random.split(key, 4)
    return {
        "nsa_qkv": _fused_qkv_params(keys[0], fc_feat_size),
        "nsa_lstm": _lstm_params(keys[1], fc_feat_size, fc_feat_size,
                                 num_lstm_layers),
        "sa_qkv": _fused_qkv_params(keys[2], fc_feat_size),
        "sa_lstm": _lstm_params(keys[3], fc_feat_size, fc_feat_size,
                                num_lstm_layers),
    }


# ----------------------------------------------------------------------------
# Encoder forward
# ----------------------------------------------------------------------------
def encoder_forward(params, fc_feats, images_per_person, neighbor_size,
                    nsa_block_windows=None):
    """fc_feats: (B, images_per_person, fc_feat_size) -> (B, fc_feat_size)."""
    B, P, D = fc_feats.shape
    ns = neighbor_size
    x = fc_feats.astype(jnp.bfloat16)

    # Sliding windows for the NSA branch (JAX glue; every executed window has
    # exactly ns frames, matching the PyTorch loop).
    # TODO(synk): stream the overlapped windows straight from fc_feats inside
    # the kernel (scalar-prefetched window offsets / manual DMA) instead of
    # materializing the ~ns-times duplicated copy in HBM.
    windows = [x[:, i + 1 - ns:i + 1, :] for i in range(P) if i >= ns - 1]
    NW = len(windows)
    win = jnp.stack(windows, axis=0).reshape(NW * B, ns, D)      # (NW*B, ns, D)

    # NeighboringSelfAttention over all windows: parallel grid over blocks.
    nsa_vec = _branch_forward(win, params["nsa_qkv"], params["nsa_lstm"],
                              out_dtype=jnp.float32,
                              block_nb=nsa_block_windows)        # (NW*B, D)
    nsa_feats = jnp.transpose(nsa_vec.reshape(NW, B, D), (1, 0, 2))  # (B, NW, D)

    # SelfAttention over the NSA sequence -> per-person summary vector.
    sa_feats = _branch_forward(nsa_feats, params["sa_qkv"], params["sa_lstm"],
                               out_dtype=jnp.float32)            # (B, D)
    return sa_feats


# ----------------------------------------------------------------------------
# Main
# ----------------------------------------------------------------------------
if __name__ == "__main__":
    # Small-but-consistent configuration: fc_feat_size=128, 6 images/person,
    # neighbor_size=3, 2 LSTM layers, batch=4 (=> 16 NSA windows).
    fc_feat_size = 128
    images_per_person = 6
    neighbor_size = 3
    batch = 4

    key = jax.random.PRNGKey(0)
    k_params, k_data = jax.random.split(key)

    params = make_encoder_params(k_params, fc_feat_size, num_lstm_layers=2)
    fc_feats = jax.random.normal(
        k_data, (batch, images_per_person, fc_feat_size), dtype=jnp.float32)

    # nsa_block_windows=8 -> 16 windows / 8 = a 2-step "parallel" grid, so the
    # demo exercises the multi-block index maps (production uses the default
    # ~256-row heuristic).
    fwd = jax.jit(lambda p, x: encoder_forward(
        p, x, images_per_person, neighbor_size, nsa_block_windows=8))
    out = jax.block_until_ready(fwd(params, fc_feats))

    assert out.shape == (batch, fc_feat_size)
    assert bool(jnp.all(jnp.isfinite(out)))
    print("KERNEL_OK")
</pallas_src>

<mosaic_0001>
module attributes {stable_mosaic.version = 11 : i64} {
  func.func @kernel(%arg0: i32, %arg1: memref<1x24x128xbf16, #tpu.memory_space<vmem>>, %arg2: memref<128x384xbf16, #tpu.memory_space<vmem>>, %arg3: memref<1x384xf32, #tpu.memory_space<vmem>>, %arg4: memref<128x512xbf16, #tpu.memory_space<vmem>>, %arg5: memref<128x512xbf16, #tpu.memory_space<vmem>>, %arg6: memref<1x512xf32, #tpu.memory_space<vmem>>, %arg7: memref<128x512xbf16, #tpu.memory_space<vmem>>, %arg8: memref<128x512xbf16, #tpu.memory_space<vmem>>, %arg9: memref<1x512xf32, #tpu.memory_space<vmem>>, %arg10: memref<8x128xf32, #tpu.memory_space<vmem>>, %arg11: memref<24x512xf32, #tpu.memory_space<vmem>>) attributes {dimension_semantics = [#tpu.dimension_semantics<parallel>], iteration_bounds = array<i64: 2>, scalar_prefetch = 0 : i64, scratch_operands = 1 : i64, tpu.core_type = #tpu.core_type<tc>, window_params = [{transform_indices = @transform_0, window_bounds = array<i64: 1, 24, 128>}, {pipeline_mode = #tpu.pipeline_mode<synchronous>, transform_indices = @transform_1, window_bounds = array<i64: 128, 384>}, {pipeline_mode = #tpu.pipeline_mode<synchronous>, transform_indices = @transform_2, window_bounds = array<i64: 1, 384>}, {pipeline_mode = #tpu.pipeline_mode<synchronous>, transform_indices = @transform_3, window_bounds = array<i64: 128, 512>}, {pipeline_mode = #tpu.pipeline_mode<synchronous>, transform_indices = @transform_4, window_bounds = array<i64: 128, 512>}, {pipeline_mode = #tpu.pipeline_mode<synchronous>, transform_indices = @transform_5, window_bounds = array<i64: 1, 512>}, {pipeline_mode = #tpu.pipeline_mode<synchronous>, transform_indices = @transform_6, window_bounds = array<i64: 128, 512>}, {pipeline_mode = #tpu.pipeline_mode<synchronous>, transform_indices = @transform_7, window_bounds = array<i64: 128, 512>}, {pipeline_mode = #tpu.pipeline_mode<synchronous>, transform_indices = @transform_8, window_bounds = array<i64: 1, 512>}, {transform_indices = @transform_9, window_bounds = array<i64: 8, 128>}]} {
    %c0 = arith.constant 0 : index
    %c0_0 = arith.constant 0 : index
    %c0_1 = arith.constant 0 : index
    %0 = vector.load %arg1[%c0, %c0_0, %c0_1] : memref<1x24x128xbf16, #tpu.memory_space<vmem>>, vector<1x24x128xbf16>
    %1 = vector.shape_cast %0 : vector<1x24x128xbf16> to vector<24x128xbf16>
    %c0_2 = arith.constant 0 : index
    %c0_3 = arith.constant 0 : index
    %2 = vector.load %arg2[%c0_2, %c0_3] : memref<128x384xbf16, #tpu.memory_space<vmem>>, vector<128x384xbf16>
    %cst = arith.constant dense<0.000000e+00> : vector<24x384xf32>
    %3 = tpu.matmul %1, %2, %cst {dimension_numbers = #tpu.dot_dimension_numbers<[1], [0], [0], [1], [0, 0, 1, 1], [], []>} : vector<24x128xbf16>, vector<128x384xbf16>, vector<24x384xf32> -> vector<24x384xf32>
    %c0_4 = arith.constant 0 : index
    %c0_5 = arith.constant 0 : index
    %4 = vector.load %arg3[%c0_4, %c0_5] : memref<1x384xf32, #tpu.memory_space<vmem>>, vector<1x384xf32>
    %5 = vector.broadcast %4 : vector<1x384xf32> to vector<24x384xf32>
    %6 = arith.addf %3, %5 : vector<24x384xf32>
    %7 = vector.extract_strided_slice %6 {offsets = [0, 0], sizes = [24, 128], strides = [1, 1]} : vector<24x384xf32> to vector<24x128xf32>
    %8 = arith.truncf %7 : vector<24x128xf32> to vector<24x128xbf16>
    %9 = vector.extract_strided_slice %6 {offsets = [0, 128], sizes = [24, 128], strides = [1, 1]} : vector<24x384xf32> to vector<24x128xf32>
    %10 = arith.truncf %9 : vector<24x128xf32> to vector<24x128xbf16>
    %11 = vector.extract_strided_slice %6 {offsets = [0, 256], sizes = [24, 128], strides = [1, 1]} : vector<24x384xf32> to vector<24x128xf32>
    %12 = arith.truncf %11 : vector<24x128xf32> to vector<24x128xbf16>
    %cst_6 = arith.constant dense<0.000000e+00> : vector<24x24xf32>
    %13 = tpu.matmul %8, %10, %cst_6 {dimension_numbers = #tpu.dot_dimension_numbers<[1], [1], [0], [0], [0, 0, 1, 0], [], []>} : vector<24x128xbf16>, vector<24x128xbf16>, vector<24x24xf32> -> vector<24x24xf32>
    %14 = tpu.iota {dimensions = array<i32: 0>} : vector<24x24xi32>
    %c8_i32 = arith.constant 8 : i32
    %c0_i32 = arith.constant 0 : i32
    %15 = arith.cmpi eq, %c8_i32, %c0_i32 : i32
    %c1_i32 = arith.constant 1 : i32
    %16 = arith.select %15, %c1_i32, %c8_i32 : i32
    %17 = vector.broadcast %16 : i32 to vector<24x24xi32>
    %18 = arith.remsi %14, %17 : vector<24x24xi32>
    %c0_i32_7 = arith.constant 0 : i32
    %19 = vector.broadcast %c0_i32_7 : i32 to vector<24x24xi32>
    %20 = arith.cmpi ne, %18, %19 : vector<24x24xi32>
    %c0_i32_8 = arith.constant 0 : i32
    %21 = vector.broadcast %c0_i32_8 : i32 to vector<24x24xi32>
    %22 = arith.cmpi slt, %18, %21 : vector<24x24xi32>
    %c0_i32_9 = arith.constant 0 : i32
    %23 = arith.cmpi slt, %16, %c0_i32_9 : i32
    %24 = vector.broadcast %23 : i1 to vector<24x24xi1>
    %25 = vector.broadcast %24 : vector<24x24xi1> to vector<24x24xi1>
    %26 = arith.xori %22, %25 : vector<24x24xi1>
    %27 = arith.andi %26, %20 : vector<24x24xi1>
    %28 = vector.broadcast %16 : i32 to vector<24x24xi32>
    %29 = arith.addi %18, %28 : vector<24x24xi32>
    %30 = arith.select %27, %29, %18 : vector<24x24xi1>, vector<24x24xi32>
    %31 = tpu.iota {dimensions = array<i32: 1>} : vector<24x24xi32>
    %c8_i32_10 = arith.constant 8 : i32
    %c0_i32_11 = arith.constant 0 : i32
    %32 = arith.cmpi eq, %c8_i32_10, %c0_i32_11 : i32
    %c1_i32_12 = arith.constant 1 : i32
    %33 = arith.select %32, %c1_i32_12, %c8_i32_10 : i32
    %34 = vector.broadcast %33 : i32 to vector<24x24xi32>
    %35 = arith.remsi %31, %34 : vector<24x24xi32>
    %c0_i32_13 = arith.constant 0 : i32
    %36 = vector.broadcast %c0_i32_13 : i32 to vector<24x24xi32>
    %37 = arith.cmpi ne, %35, %36 : vector<24x24xi32>
    %c0_i32_14 = arith.constant 0 : i32
    %38 = vector.broadcast %c0_i32_14 : i32 to vector<24x24xi32>
    %39 = arith.cmpi slt, %35, %38 : vector<24x24xi32>
    %c0_i32_15 = arith.constant 0 : i32
    %40 = arith.cmpi slt, %33, %c0_i32_15 : i32
    %41 = vector.broadcast %40 : i1 to vector<24x24xi1>
    %42 = vector.broadcast %41 : vector<24x24xi1> to vector<24x24xi1>
    %43 = arith.xori %39, %42 : vector<24x24xi1>
    %44 = arith.andi %43, %37 : vector<24x24xi1>
    %45 = vector.broadcast %33 : i32 to vector<24x24xi32>
    %46 = arith.addi %35, %45 : vector<24x24xi32>
    %47 = arith.select %44, %46, %35 : vector<24x24xi1>, vector<24x24xi32>
    %48 = arith.cmpi eq, %30, %47 : vector<24x24xi32>
    %cst_16 = arith.constant 0.0220970865 : f32
    %49 = vector.broadcast %cst_16 : f32 to vector<24x24xf32>
    %50 = arith.mulf %13, %49 : vector<24x24xf32>
    %cst_17 = arith.constant -1.000000e+30 : f32
    %51 = vector.broadcast %cst_17 : f32 to vector<24x24xf32>
    %52 = arith.select %48, %50, %51 : vector<24x24xi1>, vector<24x24xf32>
    %cst_18 = arith.constant dense<0xFF800000> : vector<24xf32>
    %53 = vector.multi_reduction <maximumf>, %52, %cst_18 [1] : vector<24x24xf32> to vector<24xf32>
    %54 = vector.shape_cast %53 : vector<24xf32> to vector<24x1xf32>
    %55 = vector.broadcast %54 : vector<24x1xf32> to vector<24x24xf32>
    %56 = arith.subf %52, %55 : vector<24x24xf32>
    %57 = math.exp %56 : vector<24x24xf32>
    %cst_19 = arith.constant dense<0.000000e+00> : vector<24xf32>
    %58 = vector.multi_reduction <add>, %57, %cst_19 [1] : vector<24x24xf32> to vector<24xf32>
    %59 = vector.shape_cast %58 : vector<24xf32> to vector<24x1xf32>
    %60 = tpu.reciprocal %59 {approx = true} : vector<24x1xf32> -> vector<24x1xf32>
    %61 = vector.broadcast %60 : vector<24x1xf32> to vector<24x24xf32>
    %62 = arith.mulf %57, %61 : vector<24x24xf32>
    %63 = arith.truncf %62 : vector<24x24xf32> to vector<24x24xbf16>
    %cst_20 = arith.constant dense<0.000000e+00> : vector<24x128xf32>
    %64 = tpu.matmul %63, %12, %cst_20 {dimension_numbers = #tpu.dot_dimension_numbers<[1], [0], [0], [1], [0, 0, 1, 1], [], []>} : vector<24x24xbf16>, vector<24x128xbf16>, vector<24x128xf32> -> vector<24x128xf32>
    %65 = arith.truncf %64 : vector<24x128xf32> to vector<24x128xbf16>
    %c0_21 = arith.constant 0 : index
    %c0_22 = arith.constant 0 : index
    %66 = vector.load %arg4[%c0_21, %c0_22] : memref<128x512xbf16, #tpu.memory_space<vmem>>, vector<128x512xbf16>
    %cst_23 = arith.constant dense<0.000000e+00> : vector<24x512xf32>
    %67 = tpu.matmul %65, %66, %cst_23 {dimension_numbers = #tpu.dot_dimension_numbers<[1], [0], [0], [1], [0, 0, 1, 1], [], []>} : vector<24x128xbf16>, vector<128x512xbf16>, vector<24x512xf32> -> vector<24x512xf32>
    %c0_24 = arith.constant 0 : index
    %c0_25 = arith.constant 0 : index
    %68 = vector.load %arg6[%c0_24, %c0_25] : memref<1x512xf32, #tpu.memory_space<vmem>>, vector<1x512xf32>
    %69 = vector.broadcast %68 : vector<1x512xf32> to vector<24x512xf32>
    %70 = arith.addf %67, %69 : vector<24x512xf32>
    %c0_26 = arith.constant 0 : index
    %c0_27 = arith.constant 0 : index
    %71 = vector.load %arg11[%c0_26, %c0_27] : memref<24x512xf32, #tpu.memory_space<vmem>>, vector<24x512xf32>
    tpu.vector_store %arg11[%c0_26, %c0_27], %70 {strides = array<i32>} : memref<24x512xf32, #tpu.memory_space<vmem>>, vector<24x512xf32>,
    %cst_28 = arith.constant 0.000000e+00 : f32
    %72 = vector.broadcast %cst_28 : f32 to vector<8x128xf32>
    %cst_29 = arith.constant 0.000000e+00 : f32
    %73 = vector.broadcast %cst_29 : f32 to vector<8x128xf32>
    %cst_30 = arith.constant 0.000000e+00 : f32
    %74 = vector.broadcast %cst_30 : f32 to vector<8x128xf32>
    %cst_31 = arith.constant 0.000000e+00 : f32
    %75 = vector.broadcast %cst_31 : f32 to vector<8x128xf32>
    %c0_32 = arith.constant 0 : index
    %c0_33 = arith.constant 0 : index
    %76 = vector.load %arg5[%c0_32, %c0_33] : memref<128x512xbf16, #tpu.memory_space<vmem>>, vector<128x512xbf16>
    %c0_34 = arith.constant 0 : index
    %c0_35 = arith.constant 0 : index
    %77 = vector.load %arg11[%c0_34, %c0_35] : memref<24x512xf32, #tpu.memory_space<vmem>>, vector<8x512xf32>
    %78 = arith.truncf %72 : vector<8x128xf32> to vector<8x128xbf16>
    %cst_36 = arith.constant dense<0.000000e+00> : vector<8x512xf32>
    %79 = tpu.matmul %78, %76, %cst_36 {dimension_numbers = #tpu.dot_dimension_numbers<[1], [0], [0], [1], [0, 0, 1, 1], [], []>} : vector<8x128xbf16>, vector<128x512xbf16>, vector<8x512xf32> -> vector<8x512xf32>
    %80 = arith.addf %77, %79 : vector<8x512xf32>
    %81 = vector.extract_strided_slice %80 {offsets = [0, 0], sizes = [8, 128], strides = [1, 1]} : vector<8x512xf32> to vector<8x128xf32>
    %82 = arith.negf %81 : vector<8x128xf32>
    %83 = math.exp %82 : vector<8x128xf32>
    %cst_37 = arith.constant 1.000000e+00 : f32
    %84 = vector.broadcast %cst_37 : f32 to vector<8x128xf32>
    %85 = arith.addf %84, %83 : vector<8x128xf32>
    %86 = arith.divf %84, %85 : vector<8x128xf32>
    %87 = vector.extract_strided_slice %80 {offsets = [0, 128], sizes = [8, 128], strides = [1, 1]} : vector<8x512xf32> to vector<8x128xf32>
    %88 = arith.negf %87 : vector<8x128xf32>
    %89 = math.exp %88 : vector<8x128xf32>
    %cst_38 = arith.constant 1.000000e+00 : f32
    %90 = vector.broadcast %cst_38 : f32 to vector<8x128xf32>
    %91 = arith.addf %90, %89 : vector<8x128xf32>
    %92 = arith.divf %90, %91 : vector<8x128xf32>
    %93 = vector.extract_strided_slice %80 {offsets = [0, 256], sizes = [8, 128], strides = [1, 1]} : vector<8x512xf32> to vector<8x128xf32>
    %94 = math.tanh %93 : vector<8x128xf32>
    %95 = vector.extract_strided_slice %80 {offsets = [0, 384], sizes = [8, 128], strides = [1, 1]} : vector<8x512xf32> to vector<8x128xf32>
    %96 = arith.negf %95 : vector<8x128xf32>
    %97 = math.exp %96 : vector<8x128xf32>
    %cst_39 = arith.constant 1.000000e+00 : f32
    %98 = vector.broadcast %cst_39 : f32 to vector<8x128xf32>
    %99 = arith.addf %98, %97 : vector<8x128xf32>
    %100 = arith.divf %98, %99 : vector<8x128xf32>
    %101 = arith.mulf %92, %74 : vector<8x128xf32>
    %102 = arith.mulf %86, %94 : vector<8x128xf32>
    %103 = arith.addf %101, %102 : vector<8x128xf32>
    %104 = math.tanh %103 : vector<8x128xf32>
    %105 = arith.mulf %100, %104 : vector<8x128xf32>
    %c0_40 = arith.constant 0 : index
    %c0_41 = arith.constant 0 : index
    %106 = vector.load %arg8[%c0_40, %c0_41] : memref<128x512xbf16, #tpu.memory_space<vmem>>, vector<128x512xbf16>
    %c0_42 = arith.constant 0 : index
    %c0_43 = arith.constant 0 : index
    %107 = vector.load %arg7[%c0_42, %c0_43] : memref<128x512xbf16, #tpu.memory_space<vmem>>, vector<128x512xbf16>
    %c0_44 = arith.constant 0 : index
    %c0_45 = arith.constant 0 : index
    %108 = vector.load %arg9[%c0_44, %c0_45] : memref<1x512xf32, #tpu.memory_space<vmem>>, vector<1x512xf32>
    %109 = arith.truncf %105 : vector<8x128xf32> to vector<8x128xbf16>
    %cst_46 = arith.constant dense<0.000000e+00> : vector<8x512xf32>
    %110 = tpu.matmul %109, %107, %cst_46 {dimension_numbers = #tpu.dot_dimension_numbers<[1], [0], [0], [1], [0, 0, 1, 1], [], []>} : vector<8x128xbf16>, vector<128x512xbf16>, vector<8x512xf32> -> vector<8x512xf32>
    %111 = vector.broadcast %108 : vector<1x512xf32> to vector<8x512xf32>
    %112 = arith.addf %110, %111 : vector<8x512xf32>
    %113 = arith.truncf %73 : vector<8x128xf32> to vector<8x128xbf16>
    %cst_47 = arith.constant dense<0.000000e+00> : vector<8x512xf32>
    %114 = tpu.matmul %113, %106, %cst_47 {dimension_numbers = #tpu.dot_dimension_numbers<[1], [0], [0], [1], [0, 0, 1, 1], [], []>} : vector<8x128xbf16>, vector<128x512xbf16>, vector<8x512xf32> -> vector<8x512xf32>
    %115 = arith.addf %112, %114 : vector<8x512xf32>
    %116 = vector.extract_strided_slice %115 {offsets = [0, 0], sizes = [8, 128], strides = [1, 1]} : vector<8x512xf32> to vector<8x128xf32>
    %117 = arith.negf %116 : vector<8x128xf32>
    %118 = math.exp %117 : vector<8x128xf32>
    %cst_48 = arith.constant 1.000000e+00 : f32
    %119 = vector.broadcast %cst_48 : f32 to vector<8x128xf32>
    %120 = arith.addf %119, %118 : vector<8x128xf32>
    %121 = arith.divf %119, %120 : vector<8x128xf32>
    %122 = vector.extract_strided_slice %115 {offsets = [0, 128], sizes = [8, 128], strides = [1, 1]} : vector<8x512xf32> to vector<8x128xf32>
    %123 = arith.negf %122 : vector<8x128xf32>
    %124 = math.exp %123 : vector<8x128xf32>
    %cst_49 = arith.constant 1.000000e+00 : f32
    %125 = vector.broadcast %cst_49 : f32 to vector<8x128xf32>
    %126 = arith.addf %125, %124 : vector<8x128xf32>
    %127 = arith.divf %125, %126 : vector<8x128xf32>
    %128 = vector.extract_strided_slice %115 {offsets = [0, 256], sizes = [8, 128], strides = [1, 1]} : vector<8x512xf32> to vector<8x128xf32>
    %129 = math.tanh %128 : vector<8x128xf32>
    %130 = vector.extract_strided_slice %115 {offsets = [0, 384], sizes = [8, 128], strides = [1, 1]} : vector<8x512xf32> to vector<8x128xf32>
    %131 = arith.negf %130 : vector<8x128xf32>
    %132 = math.exp %131 : vector<8x128xf32>
    %cst_50 = arith.constant 1.000000e+00 : f32
    %133 = vector.broadcast %cst_50 : f32 to vector<8x128xf32>
    %134 = arith.addf %133, %132 : vector<8x128xf32>
    %135 = arith.divf %133, %134 : vector<8x128xf32>
    %136 = arith.mulf %127, %75 : vector<8x128xf32>
    %137 = arith.mulf %121, %129 : vector<8x128xf32>
    %138 = arith.addf %136, %137 : vector<8x128xf32>
    %139 = math.tanh %138 : vector<8x128xf32>
    %140 = arith.mulf %135, %139 : vector<8x128xf32>
    %c0_51 = arith.constant 0 : index
    %c0_52 = arith.constant 0 : index
    %141 = vector.load %arg5[%c0_51, %c0_52] : memref<128x512xbf16, #tpu.memory_space<vmem>>, vector<128x512xbf16>
    %c8 = arith.constant 8 : index
    %c0_53 = arith.constant 0 : index
    %142 = vector.load %arg11[%c8, %c0_53] : memref<24x512xf32, #tpu.memory_space<vmem>>, vector<8x512xf32>
    %143 = arith.truncf %105 : vector<8x128xf32> to vector<8x128xbf16>
    %cst_54 = arith.constant dense<0.000000e+00> : vector<8x512xf32>
    %144 = tpu.matmul %143, %141, %cst_54 {dimension_numbers = #tpu.dot_dimension_numbers<[1], [0], [0], [1], [0, 0, 1, 1], [], []>} : vector<8x128xbf16>, vector<128x512xbf16>, vector<8x512xf32> -> vector<8x512xf32>
    %145 = arith.addf %142, %144 : vector<8x512xf32>
    %146 = vector.extract_strided_slice %145 {offsets = [0, 0], sizes = [8, 128], strides = [1, 1]} : vector<8x512xf32> to vector<8x128xf32>
    %147 = arith.negf %146 : vector<8x128xf32>
    %148 = math.exp %147 : vector<8x128xf32>
    %cst_55 = arith.constant 1.000000e+00 : f32
    %149 = vector.broadcast %cst_55 : f32 to vector<8x128xf32>
    %150 = arith.addf %149, %148 : vector<8x128xf32>
    %151 = arith.divf %149, %150 : vector<8x128xf32>
    %152 = vector.extract_strided_slice %145 {offsets = [0, 128], sizes = [8, 128], strides = [1, 1]} : vector<8x512xf32> to vector<8x128xf32>
    %153 = arith.negf %152 : vector<8x128xf32>
    %154 = math.exp %153 : vector<8x128xf32>
    %cst_56 = arith.constant 1.000000e+00 : f32
    %155 = vector.broadcast %cst_56 : f32 to vector<8x128xf32>
    %156 = arith.addf %155, %154 : vector<8x128xf32>
    %157 = arith.divf %155, %156 : vector<8x128xf32>
    %158 = vector.extract_strided_slice %145 {offsets = [0, 256], sizes = [8, 128], strides = [1, 1]} : vector<8x512xf32> to vector<8x128xf32>
    %159 = math.tanh %158 : vector<8x128xf32>
    %160 = vector.extract_strided_slice %145 {offsets = [0, 384], sizes = [8, 128], strides = [1, 1]} : vector<8x512xf32> to vector<8x128xf32>
    %161 = arith.negf %160 : vector<8x128xf32>
    %162 = math.exp %161 : vector<8x128xf32>
    %cst_57 = arith.constant 1.000000e+00 : f32
    %163 = vector.broadcast %cst_57 : f32 to vector<8x128xf32>
    %164 = arith.addf %163, %162 : vector<8x128xf32>
    %165 = arith.divf %163, %164 : vector<8x128xf32>
    %166 = arith.mulf %157, %103 : vector<8x128xf32>
    %167 = arith.mulf %151, %159 : vector<8x128xf32>
    %168 = arith.addf %166, %167 : vector<8x128xf32>
    %169 = math.tanh %168 : vector<8x128xf32>
    %170 = arith.mulf %165, %169 : vector<8x128xf32>
    %c0_58 = arith.constant 0 : index
    %c0_59 = arith.constant 0 : index
    %171 = vector.load %arg8[%c0_58, %c0_59] : memref<128x512xbf16, #tpu.memory_space<vmem>>, vector<128x512xbf16>
    %c0_60 = arith.constant 0 : index
    %c0_61 = arith.constant 0 : index
    %172 = vector.load %arg7[%c0_60, %c0_61] : memref<128x512xbf16, #tpu.memory_space<vmem>>, vector<128x512xbf16>
    %c0_62 = arith.constant 0 : index
    %c0_63 = arith.constant 0 : index
    %173 = vector.load %arg9[%c0_62, %c0_63] : memref<1x512xf32, #tpu.memory_space<vmem>>, vector<1x512xf32>
    %174 = arith.truncf %170 : vector<8x128xf32> to vector<8x128xbf16>
    %cst_64 = arith.constant dense<0.000000e+00> : vector<8x512xf32>
    %175 = tpu.matmul %174, %172, %cst_64 {dimension_numbers = #tpu.dot_dimension_numbers<[1], [0], [0], [1], [0, 0, 1, 1], [], []>} : vector<8x128xbf16>, vector<128x512xbf16>, vector<8x512xf32> -> vector<8x512xf32>
    %176 = vector.broadcast %173 : vector<1x512xf32> to vector<8x512xf32>
    %177 = arith.addf %175, %176 : vector<8x512xf32>
    %178 = arith.truncf %140 : vector<8x128xf32> to vector<8x128xbf16>
    %cst_65 = arith.constant dense<0.000000e+00> : vector<8x512xf32>
    %179 = tpu.matmul %178, %171, %cst_65 {dimension_numbers = #tpu.dot_dimension_numbers<[1], [0], [0], [1], [0, 0, 1, 1], [], []>} : vector<8x128xbf16>, vector<128x512xbf16>, vector<8x512xf32> -> vector<8x512xf32>
    %180 = arith.addf %177, %179 : vector<8x512xf32>
    %181 = vector.extract_strided_slice %180 {offsets = [0, 0], sizes = [8, 128], strides = [1, 1]} : vector<8x512xf32> to vector<8x128xf32>
    %182 = arith.negf %181 : vector<8x128xf32>
    %183 = math.exp %182 : vector<8x128xf32>
    %cst_66 = arith.constant 1.000000e+00 : f32
    %184 = vector.broadcast %cst_66 : f32 to vector<8x128xf32>
    %185 = arith.addf %184, %183 : vector<8x128xf32>
    %186 = arith.divf %184, %185 : vector<8x128xf32>
    %187 = vector.extract_strided_slice %180 {offsets = [0, 128], sizes = [8, 128], strides = [1, 1]} : vector<8x512xf32> to vector<8x128xf32>
    %188 = arith.negf %187 : vector<8x128xf32>
    %189 = math.exp %188 : vector<8x128xf32>
    %cst_67 = arith.constant 1.000000e+00 : f32
    %190 = vector.broadcast %cst_67 : f32 to vector<8x128xf32>
    %191 = arith.addf %190, %189 : vector<8x128xf32>
    %192 = arith.divf %190, %191 : vector<8x128xf32>
    %193 = vector.extract_strided_slice %180 {offsets = [0, 256], sizes = [8, 128], strides = [1, 1]} : vector<8x512xf32> to vector<8x128xf32>
    %194 = math.tanh %193 : vector<8x128xf32>
    %195 = vector.extract_strided_slice %180 {offsets = [0, 384], sizes = [8, 128], strides = [1, 1]} : vector<8x512xf32> to vector<8x128xf32>
    %196 = arith.negf %195 : vector<8x128xf32>
    %197 = math.exp %196 : vector<8x128xf32>
    %cst_68 = arith.constant 1.000000e+00 : f32
    %198 = vector.broadcast %cst_68 : f32 to vector<8x128xf32>
    %199 = arith.addf %198, %197 : vector<8x128xf32>
    %200 = arith.divf %198, %199 : vector<8x128xf32>
    %201 = arith.mulf %192, %138 : vector<8x128xf32>
    %202 = arith.mulf %186, %194 : vector<8x128xf32>
    %203 = arith.addf %201, %202 : vector<8x128xf32>
    %204 = math.tanh %203 : vector<8x128xf32>
    %205 = arith.mulf %200, %204 : vector<8x128xf32>
    %c0_69 = arith.constant 0 : index
    %c0_70 = arith.constant 0 : index
    %206 = vector.load %arg5[%c0_69, %c0_70] : memref<128x512xbf16, #tpu.memory_space<vmem>>, vector<128x512xbf16>
    %c16 = arith.constant 16 : index
    %c0_71 = arith.constant 0 : index
    %207 = vector.load %arg11[%c16, %c0_71] : memref<24x512xf32, #tpu.memory_space<vmem>>, vector<8x512xf32>
    %208 = arith.truncf %170 : vector<8x128xf32> to vector<8x128xbf16>
    %cst_72 = arith.constant dense<0.000000e+00> : vector<8x512xf32>
    %209 = tpu.matmul %208, %206, %cst_72 {dimension_numbers = #tpu.dot_dimension_numbers<[1], [0], [0], [1], [0, 0, 1, 1], [], []>} : vector<8x128xbf16>, vector<128x512xbf16>, vector<8x512xf32> -> vector<8x512xf32>
    %210 = arith.addf %207, %209 : vector<8x512xf32>
    %211 = vector.extract_strided_slice %210 {offsets = [0, 0], sizes = [8, 128], strides = [1, 1]} : vector<8x512xf32> to vector<8x128xf32>
    %212 = arith.negf %211 : vector<8x128xf32>
    %213 = math.exp %212 : vector<8x128xf32>
    %cst_73 = arith.constant 1.000000e+00 : f32
    %214 = vector.broadcast %cst_73 : f32 to vector<8x128xf32>
    %215 = arith.addf %214, %213 : vector<8x128xf32>
    %216 = arith.divf %214, %215 : vector<8x128xf32>
    %217 = vector.extract_strided_slice %210 {offsets = [0, 128], sizes = [8, 128], strides = [1, 1]} : vector<8x512xf32> to vector<8x128xf32>
    %218 = arith.negf %217 : vector<8x128xf32>
    %219 = math.exp %218 : vector<8x128xf32>
    %cst_74 = arith.constant 1.000000e+00 : f32
    %220 = vector.broadcast %cst_74 : f32 to vector<8x128xf32>
    %221 = arith.addf %220, %219 : vector<8x128xf32>
    %222 = arith.divf %220, %221 : vector<8x128xf32>
    %223 = vector.extract_strided_slice %210 {offsets = [0, 256], sizes = [8, 128], strides = [1, 1]} : vector<8x512xf32> to vector<8x128xf32>
    %224 = math.tanh %223 : vector<8x128xf32>
    %225 = vector.extract_strided_slice %210 {offsets = [0, 384], sizes = [8, 128], strides = [1, 1]} : vector<8x512xf32> to vector<8x128xf32>
    %226 = arith.negf %225 : vector<8x128xf32>
    %227 = math.exp %226 : vector<8x128xf32>
    %cst_75 = arith.constant 1.000000e+00 : f32
    %228 = vector.broadcast %cst_75 : f32 to vector<8x128xf32>
    %229 = arith.addf %228, %227 : vector<8x128xf32>
    %230 = arith.divf %228, %229 : vector<8x128xf32>
    %231 = arith.mulf %222, %168 : vector<8x128xf32>
    %232 = arith.mulf %216, %224 : vector<8x128xf32>
    %233 = arith.addf %231, %232 : vector<8x128xf32>
    %234 = math.tanh %233 : vector<8x128xf32>
    %235 = arith.mulf %230, %234 : vector<8x128xf32>
    %c0_76 = arith.constant 0 : index
    %c0_77 = arith.constant 0 : index
    %236 = vector.load %arg8[%c0_76, %c0_77] : memref<128x512xbf16, #tpu.memory_space<vmem>>, vector<128x512xbf16>
    %c0_78 = arith.constant 0 : index
    %c0_79 = arith.constant 0 : index
    %237 = vector.load %arg7[%c0_78, %c0_79] : memref<128x512xbf16, #tpu.memory_space<vmem>>, vector<128x512xbf16>
    %c0_80 = arith.constant 0 : index
    %c0_81 = arith.constant 0 : index
    %238 = vector.load %arg9[%c0_80, %c0_81] : memref<1x512xf32, #tpu.memory_space<vmem>>, vector<1x512xf32>
    %239 = arith.truncf %235 : vector<8x128xf32> to vector<8x128xbf16>
    %cst_82 = arith.constant dense<0.000000e+00> : vector<8x512xf32>
    %240 = tpu.matmul %239, %237, %cst_82 {dimension_numbers = #tpu.dot_dimension_numbers<[1], [0], [0], [1], [0, 0, 1, 1], [], []>} : vector<8x128xbf16>, vector<128x512xbf16>, vector<8x512xf32> -> vector<8x512xf32>
    %241 = vector.broadcast %238 : vector<1x512xf32> to vector<8x512xf32>
    %242 = arith.addf %240, %241 : vector<8x512xf32>
    %243 = arith.truncf %205 : vector<8x128xf32> to vector<8x128xbf16>
    %cst_83 = arith.constant dense<0.000000e+00> : vector<8x512xf32>
    %244 = tpu.matmul %243, %236, %cst_83 {dimension_numbers = #tpu.dot_dimension_numbers<[1], [0], [0], [1], [0, 0, 1, 1], [], []>} : vector<8x128xbf16>, vector<128x512xbf16>, vector<8x512xf32> -> vector<8x512xf32>
    %245 = arith.addf %242, %244 : vector<8x512xf32>
    %246 = vector.extract_strided_slice %245 {offsets = [0, 0], sizes = [8, 128], strides = [1, 1]} : vector<8x512xf32> to vector<8x128xf32>
    %247 = arith.negf %246 : vector<8x128xf32>
    %248 = math.exp %247 : vector<8x128xf32>
    %cst_84 = arith.constant 1.000000e+00 : f32
    %249 = vector.broadcast %cst_84 : f32 to vector<8x128xf32>
    %250 = arith.addf %249, %248 : vector<8x128xf32>
    %251 = arith.divf %249, %250 : vector<8x128xf32>
    %252 = vector.extract_strided_slice %245 {offsets = [0, 128], sizes = [8, 128], strides = [1, 1]} : vector<8x512xf32> to vector<8x128xf32>
    %253 = arith.negf %252 : vector<8x128xf32>
    %254 = math.exp %253 : vector<8x128xf32>
    %cst_85 = arith.constant 1.000000e+00 : f32
    %255 = vector.broadcast %cst_85 : f32 to vector<8x128xf32>
    %256 = arith.addf %255, %254 : vector<8x128xf32>
    %257 = arith.divf %255, %256 : vector<8x128xf32>
    %258 = vector.extract_strided_slice %245 {offsets = [0, 256], sizes = [8, 128], strides = [1, 1]} : vector<8x512xf32> to vector<8x128xf32>
    %259 = math.tanh %258 : vector<8x128xf32>
    %260 = vector.extract_strided_slice %245 {offsets = [0, 384], sizes = [8, 128], strides = [1, 1]} : vector<8x512xf32> to vector<8x128xf32>
    %261 = arith.negf %260 : vector<8x128xf32>
    %262 = math.exp %261 : vector<8x128xf32>
    %cst_86 = arith.constant 1.000000e+00 : f32
    %263 = vector.broadcast %cst_86 : f32 to vector<8x128xf32>
    %264 = arith.addf %263, %262 : vector<8x128xf32>
    %265 = arith.divf %263, %264 : vector<8x128xf32>
    %266 = arith.mulf %257, %203 : vector<8x128xf32>
    %267 = arith.mulf %251, %259 : vector<8x128xf32>
    %268 = arith.addf %266, %267 : vector<8x128xf32>
    %269 = math.tanh %268 : vector<8x128xf32>
    %270 = arith.mulf %265, %269 : vector<8x128xf32>
    %c0_87 = arith.constant 0 : index
    %c0_88 = arith.constant 0 : index
    %271 = vector.load %arg10[%c0_87, %c0_88] : memref<8x128xf32, #tpu.memory_space<vmem>>, vector<8x128xf32>
    tpu.vector_store %arg10[%c0_87, %c0_88], %270 {strides = array<i32>} : memref<8x128xf32, #tpu.memory_space<vmem>>, vector<8x128xf32>,
    return
  }
  func.func @transform_0(%arg0: i32) -> (i32, i32, i32) {
    %c0_i32 = arith.constant 0 : i32
    %c0_i32_0 = arith.constant 0 : i32
    %c0_i32_1 = arith.constant 0 : i32
    return %arg0, %c0_i32, %c0_i32_0 : i32, i32, i32
  }
  func.func @transform_1(%arg0: i32) -> (i32, i32) {
    %c0_i32 = arith.constant 0 : i32
    %c0_i32_0 = arith.constant 0 : i32
    %c0_i32_1 = arith.constant 0 : i32
    return %c0_i32, %c0_i32_0 : i32, i32
  }
  func.func @transform_2(%arg0: i32) -> (i32, i32) {
    %c0_i32 = arith.constant 0 : i32
    %c0_i32_0 = arith.constant 0 : i32
    %c0_i32_1 = arith.constant 0 : i32
    return %c0_i32, %c0_i32_0 : i32, i32
  }
  func.func @transform_3(%arg0: i32) -> (i32, i32) {
    %c0_i32 = arith.constant 0 : i32
    %c0_i32_0 = arith.constant 0 : i32
    %c0_i32_1 = arith.constant 0 : i32
    return %c0_i32, %c0_i32_0 : i32, i32
  }
  func.func @transform_4(%arg0: i32) -> (i32, i32) {
    %c0_i32 = arith.constant 0 : i32
    %c0_i32_0 = arith.constant 0 : i32
    %c0_i32_1 = arith.constant 0 : i32
    return %c0_i32, %c0_i32_0 : i32, i32
  }
  func.func @transform_5(%arg0: i32) -> (i32, i32) {
    %c0_i32 = arith.constant 0 : i32
    %c0_i32_0 = arith.constant 0 : i32
    %c0_i32_1 = arith.constant 0 : i32
    return %c0_i32, %c0_i32_0 : i32, i32
  }
  func.func @transform_6(%arg0: i32) -> (i32, i32) {
    %c0_i32 = arith.constant 0 : i32
    %c0_i32_0 = arith.constant 0 : i32
    %c0_i32_1 = arith.constant 0 : i32
    return %c0_i32, %c0_i32_0 : i32, i32
  }
  func.func @transform_7(%arg0: i32) -> (i32, i32) {
    %c0_i32 = arith.constant 0 : i32
    %c0_i32_0 = arith.constant 0 : i32
    %c0_i32_1 = arith.constant 0 : i32
    return %c0_i32, %c0_i32_0 : i32, i32
  }
  func.func @transform_8(%arg0: i32) -> (i32, i32) {
    %c0_i32 = arith.constant 0 : i32
    %c0_i32_0 = arith.constant 0 : i32
    %c0_i32_1 = arith.constant 0 : i32
    return %c0_i32, %c0_i32_0 : i32, i32
  }
  func.func @transform_9(%arg0: i32) -> (i32, i32) {
    %c0_i32 = arith.constant 0 : i32
    %c0_i32_0 = arith.constant 0 : i32
    return %arg0, %c0_i32 : i32, i32
  }
}

module attributes {stable_mosaic.version = 11 : i64} {
  func.func @kernel(%arg0: i32, %arg1: memref<1x32x128xbf16, #tpu.memory_space<vmem>>, %arg2: memref<128x384xbf16, #tpu.memory_space<vmem>>, %arg3: memref<1x384xf32, #tpu.memory_space<vmem>>, %arg4: memref<128x512xbf16, #tpu.memory_space<vmem>>, %arg5: memref<128x512xbf16, #tpu.memory_space<vmem>>, %arg6: memref<1x512xf32, #tpu.memory_space<vmem>>, %arg7: memref<128x512xbf16, #tpu.memory_space<vmem>>, %arg8: memref<128x512xbf16, #tpu.memory_space<vmem>>, %arg9: memref<1x512xf32, #tpu.memory_space<vmem>>, %arg10: memref<8x128xf32, #tpu.memory_space<vmem>>, %arg11: memref<32x512xf32, #tpu.memory_space<vmem>>) attributes {dimension_semantics = [#tpu.dimension_semantics<parallel>], iteration_bounds = array<i64: 1>, scalar_prefetch = 0 : i64, scratch_operands = 1 : i64, tpu.core_type = #tpu.core_type<tc>, window_params = [{transform_indices = @transform_0, window_bounds = array<i64: 1, 32, 128>}, {pipeline_mode = #tpu.pipeline_mode<synchronous>, transform_indices = @transform_1, window_bounds = array<i64: 128, 384>}, {pipeline_mode = #tpu.pipeline_mode<synchronous>, transform_indices = @transform_2, window_bounds = array<i64: 1, 384>}, {pipeline_mode = #tpu.pipeline_mode<synchronous>, transform_indices = @transform_3, window_bounds = array<i64: 128, 512>}, {pipeline_mode = #tpu.pipeline_mode<synchronous>, transform_indices = @transform_4, window_bounds = array<i64: 128, 512>}, {pipeline_mode = #tpu.pipeline_mode<synchronous>, transform_indices = @transform_5, window_bounds = array<i64: 1, 512>}, {pipeline_mode = #tpu.pipeline_mode<synchronous>, transform_indices = @transform_6, window_bounds = array<i64: 128, 512>}, {pipeline_mode = #tpu.pipeline_mode<synchronous>, transform_indices = @transform_7, window_bounds = array<i64: 128, 512>}, {pipeline_mode = #tpu.pipeline_mode<synchronous>, transform_indices = @transform_8, window_bounds = array<i64: 1, 512>}, {transform_indices = @transform_9, window_bounds = array<i64: 8, 128>}]} {
    %c0 = arith.constant 0 : index
    %c0_0 = arith.constant 0 : index
    %c0_1 = arith.constant 0 : index
    %0 = vector.load %arg1[%c0, %c0_0, %c0_1] : memref<1x32x128xbf16, #tpu.memory_space<vmem>>, vector<1x32x128xbf16>
    %1 = vector.shape_cast %0 : vector<1x32x128xbf16> to vector<32x128xbf16>
    %c0_2 = arith.constant 0 : index
    %c0_3 = arith.constant 0 : index
    %2 = vector.load %arg2[%c0_2, %c0_3] : memref<128x384xbf16, #tpu.memory_space<vmem>>, vector<128x384xbf16>
    %cst = arith.constant dense<0.000000e+00> : vector<32x384xf32>
    %3 = tpu.matmul %1, %2, %cst {dimension_numbers = #tpu.dot_dimension_numbers<[1], [0], [0], [1], [0, 0, 1, 1], [], []>} : vector<32x128xbf16>, vector<128x384xbf16>, vector<32x384xf32> -> vector<32x384xf32>
    %c0_4 = arith.constant 0 : index
    %c0_5 = arith.constant 0 : index
    %4 = vector.load %arg3[%c0_4, %c0_5] : memref<1x384xf32, #tpu.memory_space<vmem>>, vector<1x384xf32>
    %5 = vector.broadcast %4 : vector<1x384xf32> to vector<32x384xf32>
    %6 = arith.addf %3, %5 : vector<32x384xf32>
    %7 = vector.extract_strided_slice %6 {offsets = [0, 0], sizes = [32, 128], strides = [1, 1]} : vector<32x384xf32> to vector<32x128xf32>
    %8 = arith.truncf %7 : vector<32x128xf32> to vector<32x128xbf16>
    %9 = vector.extract_strided_slice %6 {offsets = [0, 128], sizes = [32, 128], strides = [1, 1]} : vector<32x384xf32> to vector<32x128xf32>
    %10 = arith.truncf %9 : vector<32x128xf32> to vector<32x128xbf16>
    %11 = vector.extract_strided_slice %6 {offsets = [0, 256], sizes = [32, 128], strides = [1, 1]} : vector<32x384xf32> to vector<32x128xf32>
    %12 = arith.truncf %11 : vector<32x128xf32> to vector<32x128xbf16>
    %cst_6 = arith.constant dense<0.000000e+00> : vector<32x32xf32>
    %13 = tpu.matmul %8, %10, %cst_6 {dimension_numbers = #tpu.dot_dimension_numbers<[1], [1], [0], [0], [0, 0, 1, 0], [], []>} : vector<32x128xbf16>, vector<32x128xbf16>, vector<32x32xf32> -> vector<32x32xf32>
    %14 = tpu.iota {dimensions = array<i32: 0>} : vector<32x32xi32>
    %c8_i32 = arith.constant 8 : i32
    %c0_i32 = arith.constant 0 : i32
    %15 = arith.cmpi eq, %c8_i32, %c0_i32 : i32
    %c1_i32 = arith.constant 1 : i32
    %16 = arith.select %15, %c1_i32, %c8_i32 : i32
    %17 = vector.broadcast %16 : i32 to vector<32x32xi32>
    %18 = arith.remsi %14, %17 : vector<32x32xi32>
    %c0_i32_7 = arith.constant 0 : i32
    %19 = vector.broadcast %c0_i32_7 : i32 to vector<32x32xi32>
    %20 = arith.cmpi ne, %18, %19 : vector<32x32xi32>
    %c0_i32_8 = arith.constant 0 : i32
    %21 = vector.broadcast %c0_i32_8 : i32 to vector<32x32xi32>
    %22 = arith.cmpi slt, %18, %21 : vector<32x32xi32>
    %c0_i32_9 = arith.constant 0 : i32
    %23 = arith.cmpi slt, %16, %c0_i32_9 : i32
    %24 = vector.broadcast %23 : i1 to vector<32x32xi1>
    %25 = vector.broadcast %24 : vector<32x32xi1> to vector<32x32xi1>
    %26 = arith.xori %22, %25 : vector<32x32xi1>
    %27 = arith.andi %26, %20 : vector<32x32xi1>
    %28 = vector.broadcast %16 : i32 to vector<32x32xi32>
    %29 = arith.addi %18, %28 : vector<32x32xi32>
    %30 = arith.select %27, %29, %18 : vector<32x32xi1>, vector<32x32xi32>
    %31 = tpu.iota {dimensions = array<i32: 1>} : vector<32x32xi32>
    %c8_i32_10 = arith.constant 8 : i32
    %c0_i32_11 = arith.constant 0 : i32
    %32 = arith.cmpi eq, %c8_i32_10, %c0_i32_11 : i32
    %c1_i32_12 = arith.constant 1 : i32
    %33 = arith.select %32, %c1_i32_12, %c8_i32_10 : i32
    %34 = vector.broadcast %33 : i32 to vector<32x32xi32>
    %35 = arith.remsi %31, %34 : vector<32x32xi32>
    %c0_i32_13 = arith.constant 0 : i32
    %36 = vector.broadcast %c0_i32_13 : i32 to vector<32x32xi32>
    %37 = arith.cmpi ne, %35, %36 : vector<32x32xi32>
    %c0_i32_14 = arith.constant 0 : i32
    %38 = vector.broadcast %c0_i32_14 : i32 to vector<32x32xi32>
    %39 = arith.cmpi slt, %35, %38 : vector<32x32xi32>
    %c0_i32_15 = arith.constant 0 : i32
    %40 = arith.cmpi slt, %33, %c0_i32_15 : i32
    %41 = vector.broadcast %40 : i1 to vector<32x32xi1>
    %42 = vector.broadcast %41 : vector<32x32xi1> to vector<32x32xi1>
    %43 = arith.xori %39, %42 : vector<32x32xi1>
    %44 = arith.andi %43, %37 : vector<32x32xi1>
    %45 = vector.broadcast %33 : i32 to vector<32x32xi32>
    %46 = arith.addi %35, %45 : vector<32x32xi32>
    %47 = arith.select %44, %46, %35 : vector<32x32xi1>, vector<32x32xi32>
    %48 = arith.cmpi eq, %30, %47 : vector<32x32xi32>
    %cst_16 = arith.constant 0.0220970865 : f32
    %49 = vector.broadcast %cst_16 : f32 to vector<32x32xf32>
    %50 = arith.mulf %13, %49 : vector<32x32xf32>
    %cst_17 = arith.constant -1.000000e+30 : f32
    %51 = vector.broadcast %cst_17 : f32 to vector<32x32xf32>
    %52 = arith.select %48, %50, %51 : vector<32x32xi1>, vector<32x32xf32>
    %cst_18 = arith.constant dense<0xFF800000> : vector<32xf32>
    %53 = vector.multi_reduction <maximumf>, %52, %cst_18 [1] : vector<32x32xf32> to vector<32xf32>
    %54 = vector.shape_cast %53 : vector<32xf32> to vector<32x1xf32>
    %55 = vector.broadcast %54 : vector<32x1xf32> to vector<32x32xf32>
    %56 = arith.subf %52, %55 : vector<32x32xf32>
    %57 = math.exp %56 : vector<32x32xf32>
    %cst_19 = arith.constant dense<0.000000e+00> : vector<32xf32>
    %58 = vector.multi_reduction <add>, %57, %cst_19 [1] : vector<32x32xf32> to vector<32xf32>
    %59 = vector.shape_cast %58 : vector<32xf32> to vector<32x1xf32>
    %60 = tpu.reciprocal %59 {approx = true} : vector<32x1xf32> -> vector<32x1xf32>
    %61 = vector.broadcast %60 : vector<32x1xf32> to vector<32x32xf32>
    %62 = arith.mulf %57, %61 : vector<32x32xf32>
    %63 = arith.truncf %62 : vector<32x32xf32> to vector<32x32xbf16>
    %cst_20 = arith.constant dense<0.000000e+00> : vector<32x128xf32>
    %64 = tpu.matmul %63, %12, %cst_20 {dimension_numbers = #tpu.dot_dimension_numbers<[1], [0], [0], [1], [0, 0, 1, 1], [], []>} : vector<32x32xbf16>, vector<32x128xbf16>, vector<32x128xf32> -> vector<32x128xf32>
    %65 = arith.truncf %64 : vector<32x128xf32> to vector<32x128xbf16>
    %c0_21 = arith.constant 0 : index
    %c0_22 = arith.constant 0 : index
    %66 = vector.load %arg4[%c0_21, %c0_22] : memref<128x512xbf16, #tpu.memory_space<vmem>>, vector<128x512xbf16>
    %cst_23 = arith.constant dense<0.000000e+00> : vector<32x512xf32>
    %67 = tpu.matmul %65, %66, %cst_23 {dimension_numbers = #tpu.dot_dimension_numbers<[1], [0], [0], [1], [0, 0, 1, 1], [], []>} : vector<32x128xbf16>, vector<128x512xbf16>, vector<32x512xf32> -> vector<32x512xf32>
    %c0_24 = arith.constant 0 : index
    %c0_25 = arith.constant 0 : index
    %68 = vector.load %arg6[%c0_24, %c0_25] : memref<1x512xf32, #tpu.memory_space<vmem>>, vector<1x512xf32>
    %69 = vector.broadcast %68 : vector<1x512xf32> to vector<32x512xf32>
    %70 = arith.addf %67, %69 : vector<32x512xf32>
    %c0_26 = arith.constant 0 : index
    %c0_27 = arith.constant 0 : index
    %71 = vector.load %arg11[%c0_26, %c0_27] : memref<32x512xf32, #tpu.memory_space<vmem>>, vector<32x512xf32>
    tpu.vector_store %arg11[%c0_26, %c0_27], %70 {strides = array<i32>} : memref<32x512xf32, #tpu.memory_space<vmem>>, vector<32x512xf32>,
    %cst_28 = arith.constant 0.000000e+00 : f32
    %72 = vector.broadcast %cst_28 : f32 to vector<8x128xf32>
    %cst_29 = arith.constant 0.000000e+00 : f32
    %73 = vector.broadcast %cst_29 : f32 to vector<8x128xf32>
    %cst_30 = arith.constant 0.000000e+00 : f32
    %74 = vector.broadcast %cst_30 : f32 to vector<8x128xf32>
    %cst_31 = arith.constant 0.000000e+00 : f32
    %75 = vector.broadcast %cst_31 : f32 to vector<8x128xf32>
    %c0_32 = arith.constant 0 : index
    %c0_33 = arith.constant 0 : index
    %76 = vector.load %arg5[%c0_32, %c0_33] : memref<128x512xbf16, #tpu.memory_space<vmem>>, vector<128x512xbf16>
    %c0_34 = arith.constant 0 : index
    %c0_35 = arith.constant 0 : index
    %77 = vector.load %arg11[%c0_34, %c0_35] : memref<32x512xf32, #tpu.memory_space<vmem>>, vector<8x512xf32>
    %78 = arith.truncf %72 : vector<8x128xf32> to vector<8x128xbf16>
    %cst_36 = arith.constant dense<0.000000e+00> : vector<8x512xf32>
    %79 = tpu.matmul %78, %76, %cst_36 {dimension_numbers = #tpu.dot_dimension_numbers<[1], [0], [0], [1], [0, 0, 1, 1], [], []>} : vector<8x128xbf16>, vector<128x512xbf16>, vector<8x512xf32> -> vector<8x512xf32>
    %80 = arith.addf %77, %79 : vector<8x512xf32>
    %81 = vector.extract_strided_slice %80 {offsets = [0, 0], sizes = [8, 128], strides = [1, 1]} : vector<8x512xf32> to vector<8x128xf32>
    %82 = arith.negf %81 : vector<8x128xf32>
    %83 = math.exp %82 : vector<8x128xf32>
    %cst_37 = arith.constant 1.000000e+00 : f32
    %84 = vector.broadcast %cst_37 : f32 to vector<8x128xf32>
    %85 = arith.addf %84, %83 : vector<8x128xf32>
    %86 = arith.divf %84, %85 : vector<8x128xf32>
    %87 = vector.extract_strided_slice %80 {offsets = [0, 128], sizes = [8, 128], strides = [1, 1]} : vector<8x512xf32> to vector<8x128xf32>
    %88 = arith.negf %87 : vector<8x128xf32>
    %89 = math.exp %88 : vector<8x128xf32>
    %cst_38 = arith.constant 1.000000e+00 : f32
    %90 = vector.broadcast %cst_38 : f32 to vector<8x128xf32>
    %91 = arith.addf %90, %89 : vector<8x128xf32>
    %92 = arith.divf %90, %91 : vector<8x128xf32>
    %93 = vector.extract_strided_slice %80 {offsets = [0, 256], sizes = [8, 128], strides = [1, 1]} : vector<8x512xf32> to vector<8x128xf32>
    %94 = math.tanh %93 : vector<8x128xf32>
    %95 = vector.extract_strided_slice %80 {offsets = [0, 384], sizes = [8, 128], strides = [1, 1]} : vector<8x512xf32> to vector<8x128xf32>
    %96 = arith.negf %95 : vector<8x128xf32>
    %97 = math.exp %96 : vector<8x128xf32>
    %cst_39 = arith.constant 1.000000e+00 : f32
    %98 = vector.broadcast %cst_39 : f32 to vector<8x128xf32>
    %99 = arith.addf %98, %97 : vector<8x128xf32>
    %100 = arith.divf %98, %99 : vector<8x128xf32>
    %101 = arith.mulf %92, %74 : vector<8x128xf32>
    %102 = arith.mulf %86, %94 : vector<8x128xf32>
    %103 = arith.addf %101, %102 : vector<8x128xf32>
    %104 = math.tanh %103 : vector<8x128xf32>
    %105 = arith.mulf %100, %104 : vector<8x128xf32>
    %c0_40 = arith.constant 0 : index
    %c0_41 = arith.constant 0 : index
    %106 = vector.load %arg8[%c0_40, %c0_41] : memref<128x512xbf16, #tpu.memory_space<vmem>>, vector<128x512xbf16>
    %c0_42 = arith.constant 0 : index
    %c0_43 = arith.constant 0 : index
    %107 = vector.load %arg7[%c0_42, %c0_43] : memref<128x512xbf16, #tpu.memory_space<vmem>>, vector<128x512xbf16>
    %c0_44 = arith.constant 0 : index
    %c0_45 = arith.constant 0 : index
    %108 = vector.load %arg9[%c0_44, %c0_45] : memref<1x512xf32, #tpu.memory_space<vmem>>, vector<1x512xf32>
    %109 = arith.truncf %105 : vector<8x128xf32> to vector<8x128xbf16>
    %cst_46 = arith.constant dense<0.000000e+00> : vector<8x512xf32>
    %110 = tpu.matmul %109, %107, %cst_46 {dimension_numbers = #tpu.dot_dimension_numbers<[1], [0], [0], [1], [0, 0, 1, 1], [], []>} : vector<8x128xbf16>, vector<128x512xbf16>, vector<8x512xf32> -> vector<8x512xf32>
    %111 = vector.broadcast %108 : vector<1x512xf32> to vector<8x512xf32>
    %112 = arith.addf %110, %111 : vector<8x512xf32>
    %113 = arith.truncf %73 : vector<8x128xf32> to vector<8x128xbf16>
    %cst_47 = arith.constant dense<0.000000e+00> : vector<8x512xf32>
    %114 = tpu.matmul %113, %106, %cst_47 {dimension_numbers = #tpu.dot_dimension_numbers<[1], [0], [0], [1], [0, 0, 1, 1], [], []>} : vector<8x128xbf16>, vector<128x512xbf16>, vector<8x512xf32> -> vector<8x512xf32>
    %115 = arith.addf %112, %114 : vector<8x512xf32>
    %116 = vector.extract_strided_slice %115 {offsets = [0, 0], sizes = [8, 128], strides = [1, 1]} : vector<8x512xf32> to vector<8x128xf32>
    %117 = arith.negf %116 : vector<8x128xf32>
    %118 = math.exp %117 : vector<8x128xf32>
    %cst_48 = arith.constant 1.000000e+00 : f32
    %119 = vector.broadcast %cst_48 : f32 to vector<8x128xf32>
    %120 = arith.addf %119, %118 : vector<8x128xf32>
    %121 = arith.divf %119, %120 : vector<8x128xf32>
    %122 = vector.extract_strided_slice %115 {offsets = [0, 128], sizes = [8, 128], strides = [1, 1]} : vector<8x512xf32> to vector<8x128xf32>
    %123 = arith.negf %122 : vector<8x128xf32>
    %124 = math.exp %123 : vector<8x128xf32>
    %cst_49 = arith.constant 1.000000e+00 : f32
    %125 = vector.broadcast %cst_49 : f32 to vector<8x128xf32>
    %126 = arith.addf %125, %124 : vector<8x128xf32>
    %127 = arith.divf %125, %126 : vector<8x128xf32>
    %128 = vector.extract_strided_slice %115 {offsets = [0, 256], sizes = [8, 128], strides = [1, 1]} : vector<8x512xf32> to vector<8x128xf32>
    %129 = math.tanh %128 : vector<8x128xf32>
    %130 = vector.extract_strided_slice %115 {offsets = [0, 384], sizes = [8, 128], strides = [1, 1]} : vector<8x512xf32> to vector<8x128xf32>
    %131 = arith.negf %130 : vector<8x128xf32>
    %132 = math.exp %131 : vector<8x128xf32>
    %cst_50 = arith.constant 1.000000e+00 : f32
    %133 = vector.broadcast %cst_50 : f32 to vector<8x128xf32>
    %134 = arith.addf %133, %132 : vector<8x128xf32>
    %135 = arith.divf %133, %134 : vector<8x128xf32>
    %136 = arith.mulf %127, %75 : vector<8x128xf32>
    %137 = arith.mulf %121, %129 : vector<8x128xf32>
    %138 = arith.addf %136, %137 : vector<8x128xf32>
    %139 = math.tanh %138 : vector<8x128xf32>
    %140 = arith.mulf %135, %139 : vector<8x128xf32>
    %c0_51 = arith.constant 0 : index
    %c0_52 = arith.constant 0 : index
    %141 = vector.load %arg5[%c0_51, %c0_52] : memref<128x512xbf16, #tpu.memory_space<vmem>>, vector<128x512xbf16>
    %c8 = arith.constant 8 : index
    %c0_53 = arith.constant 0 : index
    %142 = vector.load %arg11[%c8, %c0_53] : memref<32x512xf32, #tpu.memory_space<vmem>>, vector<8x512xf32>
    %143 = arith.truncf %105 : vector<8x128xf32> to vector<8x128xbf16>
    %cst_54 = arith.constant dense<0.000000e+00> : vector<8x512xf32>
    %144 = tpu.matmul %143, %141, %cst_54 {dimension_numbers = #tpu.dot_dimension_numbers<[1], [0], [0], [1], [0, 0, 1, 1], [], []>} : vector<8x128xbf16>, vector<128x512xbf16>, vector<8x512xf32> -> vector<8x512xf32>
    %145 = arith.addf %142, %144 : vector<8x512xf32>
    %146 = vector.extract_strided_slice %145 {offsets = [0, 0], sizes = [8, 128], strides = [1, 1]} : vector<8x512xf32> to vector<8x128xf32>
    %147 = arith.negf %146 : vector<8x128xf32>
    %148 = math.exp %147 : vector<8x128xf32>
    %cst_55 = arith.constant 1.000000e+00 : f32
    %149 = vector.broadcast %cst_55 : f32 to vector<8x128xf32>
    %150 = arith.addf %149, %148 : vector<8x128xf32>
    %151 = arith.divf %149, %150 : vector<8x128xf32>
    %152 = vector.extract_strided_slice %145 {offsets = [0, 128], sizes = [8, 128], strides = [1, 1]} : vector<8x512xf32> to vector<8x128xf32>
    %153 = arith.negf %152 : vector<8x128xf32>
    %154 = math.exp %153 : vector<8x128xf32>
    %cst_56 = arith.constant 1.000000e+00 : f32
    %155 = vector.broadcast %cst_56 : f32 to vector<8x128xf32>
    %156 = arith.addf %155, %154 : vector<8x128xf32>
    %157 = arith.divf %155, %156 : vector<8x128xf32>
    %158 = vector.extract_strided_slice %145 {offsets = [0, 256], sizes = [8, 128], strides = [1, 1]} : vector<8x512xf32> to vector<8x128xf32>
    %159 = math.tanh %158 : vector<8x128xf32>
    %160 = vector.extract_strided_slice %145 {offsets = [0, 384], sizes = [8, 128], strides = [1, 1]} : vector<8x512xf32> to vector<8x128xf32>
    %161 = arith.negf %160 : vector<8x128xf32>
    %162 = math.exp %161 : vector<8x128xf32>
    %cst_57 = arith.constant 1.000000e+00 : f32
    %163 = vector.broadcast %cst_57 : f32 to vector<8x128xf32>
    %164 = arith.addf %163, %162 : vector<8x128xf32>
    %165 = arith.divf %163, %164 : vector<8x128xf32>
    %166 = arith.mulf %157, %103 : vector<8x128xf32>
    %167 = arith.mulf %151, %159 : vector<8x128xf32>
    %168 = arith.addf %166, %167 : vector<8x128xf32>
    %169 = math.tanh %168 : vector<8x128xf32>
    %170 = arith.mulf %165, %169 : vector<8x128xf32>
    %c0_58 = arith.constant 0 : index
    %c0_59 = arith.constant 0 : index
    %171 = vector.load %arg8[%c0_58, %c0_59] : memref<128x512xbf16, #tpu.memory_space<vmem>>, vector<128x512xbf16>
    %c0_60 = arith.constant 0 : index
    %c0_61 = arith.constant 0 : index
    %172 = vector.load %arg7[%c0_60, %c0_61] : memref<128x512xbf16, #tpu.memory_space<vmem>>, vector<128x512xbf16>
    %c0_62 = arith.constant 0 : index
    %c0_63 = arith.constant 0 : index
    %173 = vector.load %arg9[%c0_62, %c0_63] : memref<1x512xf32, #tpu.memory_space<vmem>>, vector<1x512xf32>
    %174 = arith.truncf %170 : vector<8x128xf32> to vector<8x128xbf16>
    %cst_64 = arith.constant dense<0.000000e+00> : vector<8x512xf32>
    %175 = tpu.matmul %174, %172, %cst_64 {dimension_numbers = #tpu.dot_dimension_numbers<[1], [0], [0], [1], [0, 0, 1, 1], [], []>} : vector<8x128xbf16>, vector<128x512xbf16>, vector<8x512xf32> -> vector<8x512xf32>
    %176 = vector.broadcast %173 : vector<1x512xf32> to vector<8x512xf32>
    %177 = arith.addf %175, %176 : vector<8x512xf32>
    %178 = arith.truncf %140 : vector<8x128xf32> to vector<8x128xbf16>
    %cst_65 = arith.constant dense<0.000000e+00> : vector<8x512xf32>
    %179 = tpu.matmul %178, %171, %cst_65 {dimension_numbers = #tpu.dot_dimension_numbers<[1], [0], [0], [1], [0, 0, 1, 1], [], []>} : vector<8x128xbf16>, vector<128x512xbf16>, vector<8x512xf32> -> vector<8x512xf32>
    %180 = arith.addf %177, %179 : vector<8x512xf32>
    %181 = vector.extract_strided_slice %180 {offsets = [0, 0], sizes = [8, 128], strides = [1, 1]} : vector<8x512xf32> to vector<8x128xf32>
    %182 = arith.negf %181 : vector<8x128xf32>
    %183 = math.exp %182 : vector<8x128xf32>
    %cst_66 = arith.constant 1.000000e+00 : f32
    %184 = vector.broadcast %cst_66 : f32 to vector<8x128xf32>
    %185 = arith.addf %184, %183 : vector<8x128xf32>
    %186 = arith.divf %184, %185 : vector<8x128xf32>
    %187 = vector.extract_strided_slice %180 {offsets = [0, 128], sizes = [8, 128], strides = [1, 1]} : vector<8x512xf32> to vector<8x128xf32>
    %188 = arith.negf %187 : vector<8x128xf32>
    %189 = math.exp %188 : vector<8x128xf32>
    %cst_67 = arith.constant 1.000000e+00 : f32
    %190 = vector.broadcast %cst_67 : f32 to vector<8x128xf32>
    %191 = arith.addf %190, %189 : vector<8x128xf32>
    %192 = arith.divf %190, %191 : vector<8x128xf32>
    %193 = vector.extract_strided_slice %180 {offsets = [0, 256], sizes = [8, 128], strides = [1, 1]} : vector<8x512xf32> to vector<8x128xf32>
    %194 = math.tanh %193 : vector<8x128xf32>
    %195 = vector.extract_strided_slice %180 {offsets = [0, 384], sizes = [8, 128], strides = [1, 1]} : vector<8x512xf32> to vector<8x128xf32>
    %196 = arith.negf %195 : vector<8x128xf32>
    %197 = math.exp %196 : vector<8x128xf32>
    %cst_68 = arith.constant 1.000000e+00 : f32
    %198 = vector.broadcast %cst_68 : f32 to vector<8x128xf32>
    %199 = arith.addf %198, %197 : vector<8x128xf32>
    %200 = arith.divf %198, %199 : vector<8x128xf32>
    %201 = arith.mulf %192, %138 : vector<8x128xf32>
    %202 = arith.mulf %186, %194 : vector<8x128xf32>
    %203 = arith.addf %201, %202 : vector<8x128xf32>
    %204 = math.tanh %203 : vector<8x128xf32>
    %205 = arith.mulf %200, %204 : vector<8x128xf32>
    %c0_69 = arith.constant 0 : index
    %c0_70 = arith.constant 0 : index
    %206 = vector.load %arg5[%c0_69, %c0_70] : memref<128x512xbf16, #tpu.memory_space<vmem>>, vector<128x512xbf16>
    %c16 = arith.constant 16 : index
    %c0_71 = arith.constant 0 : index
    %207 = vector.load %arg11[%c16, %c0_71] : memref<32x512xf32, #tpu.memory_space<vmem>>, vector<8x512xf32>
    %208 = arith.truncf %170 : vector<8x128xf32> to vector<8x128xbf16>
    %cst_72 = arith.constant dense<0.000000e+00> : vector<8x512xf32>
    %209 = tpu.matmul %208, %206, %cst_72 {dimension_numbers = #tpu.dot_dimension_numbers<[1], [0], [0], [1], [0, 0, 1, 1], [], []>} : vector<8x128xbf16>, vector<128x512xbf16>, vector<8x512xf32> -> vector<8x512xf32>
    %210 = arith.addf %207, %209 : vector<8x512xf32>
    %211 = vector.extract_strided_slice %210 {offsets = [0, 0], sizes = [8, 128], strides = [1, 1]} : vector<8x512xf32> to vector<8x128xf32>
    %212 = arith.negf %211 : vector<8x128xf32>
    %213 = math.exp %212 : vector<8x128xf32>
    %cst_73 = arith.constant 1.000000e+00 : f32
    %214 = vector.broadcast %cst_73 : f32 to vector<8x128xf32>
    %215 = arith.addf %214, %213 : vector<8x128xf32>
    %216 = arith.divf %214, %215 : vector<8x128xf32>
    %217 = vector.extract_strided_slice %210 {offsets = [0, 128], sizes = [8, 128], strides = [1, 1]} : vector<8x512xf32> to vector<8x128xf32>
    %218 = arith.negf %217 : vector<8x128xf32>
    %219 = math.exp %218 : vector<8x128xf32>
    %cst_74 = arith.constant 1.000000e+00 : f32
    %220 = vector.broadcast %cst_74 : f32 to vector<8x128xf32>
    %221 = arith.addf %220, %219 : vector<8x128xf32>
    %222 = arith.divf %220, %221 : vector<8x128xf32>
    %223 = vector.extract_strided_slice %210 {offsets = [0, 256], sizes = [8, 128], strides = [1, 1]} : vector<8x512xf32> to vector<8x128xf32>
    %224 = math.tanh %223 : vector<8x128xf32>
    %225 = vector.extract_strided_slice %210 {offsets = [0, 384], sizes = [8, 128], strides = [1, 1]} : vector<8x512xf32> to vector<8x128xf32>
    %226 = arith.negf %225 : vector<8x128xf32>
    %227 = math.exp %226 : vector<8x128xf32>
    %cst_75 = arith.constant 1.000000e+00 : f32
    %228 = vector.broadcast %cst_75 : f32 to vector<8x128xf32>
    %229 = arith.addf %228, %227 : vector<8x128xf32>
    %230 = arith.divf %228, %229 : vector<8x128xf32>
    %231 = arith.mulf %222, %168 : vector<8x128xf32>
    %232 = arith.mulf %216, %224 : vector<8x128xf32>
    %233 = arith.addf %231, %232 : vector<8x128xf32>
    %234 = math.tanh %233 : vector<8x128xf32>
    %235 = arith.mulf %230, %234 : vector<8x128xf32>
    %c0_76 = arith.constant 0 : index
    %c0_77 = arith.constant 0 : index
    %236 = vector.load %arg8[%c0_76, %c0_77] : memref<128x512xbf16, #tpu.memory_space<vmem>>, vector<128x512xbf16>
    %c0_78 = arith.constant 0 : index
    %c0_79 = arith.constant 0 : index
    %237 = vector.load %arg7[%c0_78, %c0_79] : memref<128x512xbf16, #tpu.memory_space<vmem>>, vector<128x512xbf16>
    %c0_80 = arith.constant 0 : index
    %c0_81 = arith.constant 0 : index
    %238 = vector.load %arg9[%c0_80, %c0_81] : memref<1x512xf32, #tpu.memory_space<vmem>>, vector<1x512xf32>
    %239 = arith.truncf %235 : vector<8x128xf32> to vector<8x128xbf16>
    %cst_82 = arith.constant dense<0.000000e+00> : vector<8x512xf32>
    %240 = tpu.matmul %239, %237, %cst_82 {dimension_numbers = #tpu.dot_dimension_numbers<[1], [0], [0], [1], [0, 0, 1, 1], [], []>} : vector<8x128xbf16>, vector<128x512xbf16>, vector<8x512xf32> -> vector<8x512xf32>
    %241 = vector.broadcast %238 : vector<1x512xf32> to vector<8x512xf32>
    %242 = arith.addf %240, %241 : vector<8x512xf32>
    %243 = arith.truncf %205 : vector<8x128xf32> to vector<8x128xbf16>
    %cst_83 = arith.constant dense<0.000000e+00> : vector<8x512xf32>
    %244 = tpu.matmul %243, %236, %cst_83 {dimension_numbers = #tpu.dot_dimension_numbers<[1], [0], [0], [1], [0, 0, 1, 1], [], []>} : vector<8x128xbf16>, vector<128x512xbf16>, vector<8x512xf32> -> vector<8x512xf32>
    %245 = arith.addf %242, %244 : vector<8x512xf32>
    %246 = vector.extract_strided_slice %245 {offsets = [0, 0], sizes = [8, 128], strides = [1, 1]} : vector<8x512xf32> to vector<8x128xf32>
    %247 = arith.negf %246 : vector<8x128xf32>
    %248 = math.exp %247 : vector<8x128xf32>
    %cst_84 = arith.constant 1.000000e+00 : f32
    %249 = vector.broadcast %cst_84 : f32 to vector<8x128xf32>
    %250 = arith.addf %249, %248 : vector<8x128xf32>
    %251 = arith.divf %249, %250 : vector<8x128xf32>
    %252 = vector.extract_strided_slice %245 {offsets = [0, 128], sizes = [8, 128], strides = [1, 1]} : vector<8x512xf32> to vector<8x128xf32>
    %253 = arith.negf %252 : vector<8x128xf32>
    %254 = math.exp %253 : vector<8x128xf32>
    %cst_85 = arith.constant 1.000000e+00 : f32
    %255 = vector.broadcast %cst_85 : f32 to vector<8x128xf32>
    %256 = arith.addf %255, %254 : vector<8x128xf32>
    %257 = arith.divf %255, %256 : vector<8x128xf32>
    %258 = vector.extract_strided_slice %245 {offsets = [0, 256], sizes = [8, 128], strides = [1, 1]} : vector<8x512xf32> to vector<8x128xf32>
    %259 = math.tanh %258 : vector<8x128xf32>
    %260 = vector.extract_strided_slice %245 {offsets = [0, 384], sizes = [8, 128], strides = [1, 1]} : vector<8x512xf32> to vector<8x128xf32>
    %261 = arith.negf %260 : vector<8x128xf32>
    %262 = math.exp %261 : vector<8x128xf32>
    %cst_86 = arith.constant 1.000000e+00 : f32
    %263 = vector.broadcast %cst_86 : f32 to vector<8x128xf32>
    %264 = arith.addf %263, %262 : vector<8x128xf32>
    %265 = arith.divf %263, %264 : vector<8x128xf32>
    %266 = arith.mulf %257, %203 : vector<8x128xf32>
    %267 = arith.mulf %251, %259 : vector<8x128xf32>
    %268 = arith.addf %266, %267 : vector<8x128xf32>
    %269 = math.tanh %268 : vector<8x128xf32>
    %270 = arith.mulf %265, %269 : vector<8x128xf32>
    %c0_87 = arith.constant 0 : index
    %c0_88 = arith.constant 0 : index
    %271 = vector.load %arg5[%c0_87, %c0_88] : memref<128x512xbf16, #tpu.memory_space<vmem>>, vector<128x512xbf16>
    %c24 = arith.constant 24 : index
    %c0_89 = arith.constant 0 : index
    %272 = vector.load %arg11[%c24, %c0_89] : memref<32x512xf32, #tpu.memory_space<vmem>>, vector<8x512xf32>
    %273 = arith.truncf %235 : vector<8x128xf32> to vector<8x128xbf16>
    %cst_90 = arith.constant dense<0.000000e+00> : vector<8x512xf32>
    %274 = tpu.matmul %273, %271, %cst_90 {dimension_numbers = #tpu.dot_dimension_numbers<[1], [0], [0], [1], [0, 0, 1, 1], [], []>} : vector<8x128xbf16>, vector<128x512xbf16>, vector<8x512xf32> -> vector<8x512xf32>
    %275 = arith.addf %272, %274 : vector<8x512xf32>
    %276 = vector.extract_strided_slice %275 {offsets = [0, 0], sizes = [8, 128], strides = [1, 1]} : vector<8x512xf32> to vector<8x128xf32>
    %277 = arith.negf %276 : vector<8x128xf32>
    %278 = math.exp %277 : vector<8x128xf32>
    %cst_91 = arith.constant 1.000000e+00 : f32
    %279 = vector.broadcast %cst_91 : f32 to vector<8x128xf32>
    %280 = arith.addf %279, %278 : vector<8x128xf32>
    %281 = arith.divf %279, %280 : vector<8x128xf32>
    %282 = vector.extract_strided_slice %275 {offsets = [0, 128], sizes = [8, 128], strides = [1, 1]} : vector<8x512xf32> to vector<8x128xf32>
    %283 = arith.negf %282 : vector<8x128xf32>
    %284 = math.exp %283 : vector<8x128xf32>
    %cst_92 = arith.constant 1.000000e+00 : f32
    %285 = vector.broadcast %cst_92 : f32 to vector<8x128xf32>
    %286 = arith.addf %285, %284 : vector<8x128xf32>
    %287 = arith.divf %285, %286 : vector<8x128xf32>
    %288 = vector.extract_strided_slice %275 {offsets = [0, 256], sizes = [8, 128], strides = [1, 1]} : vector<8x512xf32> to vector<8x128xf32>
    %289 = math.tanh %288 : vector<8x128xf32>
    %290 = vector.extract_strided_slice %275 {offsets = [0, 384], sizes = [8, 128], strides = [1, 1]} : vector<8x512xf32> to vector<8x128xf32>
    %291 = arith.negf %290 : vector<8x128xf32>
    %292 = math.exp %291 : vector<8x128xf32>
    %cst_93 = arith.constant 1.000000e+00 : f32
    %293 = vector.broadcast %cst_93 : f32 to vector<8x128xf32>
    %294 = arith.addf %293, %292 : vector<8x128xf32>
    %295 = arith.divf %293, %294 : vector<8x128xf32>
    %296 = arith.mulf %287, %233 : vector<8x128xf32>
    %297 = arith.mulf %281, %289 : vector<8x128xf32>
    %298 = arith.addf %296, %297 : vector<8x128xf32>
    %299 = math.tanh %298 : vector<8x128xf32>
    %300 = arith.mulf %295, %299 : vector<8x128xf32>
    %c0_94 = arith.constant 0 : index
    %c0_95 = arith.constant 0 : index
    %301 = vector.load %arg8[%c0_94, %c0_95] : memref<128x512xbf16, #tpu.memory_space<vmem>>, vector<128x512xbf16>
    %c0_96 = arith.constant 0 : index
    %c0_97 = arith.constant 0 : index
    %302 = vector.load %arg7[%c0_96, %c0_97] : memref<128x512xbf16, #tpu.memory_space<vmem>>, vector<128x512xbf16>
    %c0_98 = arith.constant 0 : index
    %c0_99 = arith.constant 0 : index
    %303 = vector.load %arg9[%c0_98, %c0_99] : memref<1x512xf32, #tpu.memory_space<vmem>>, vector<1x512xf32>
    %304 = arith.truncf %300 : vector<8x128xf32> to vector<8x128xbf16>
    %cst_100 = arith.constant dense<0.000000e+00> : vector<8x512xf32>
    %305 = tpu.matmul %304, %302, %cst_100 {dimension_numbers = #tpu.dot_dimension_numbers<[1], [0], [0], [1], [0, 0, 1, 1], [], []>} : vector<8x128xbf16>, vector<128x512xbf16>, vector<8x512xf32> -> vector<8x512xf32>
    %306 = vector.broadcast %303 : vector<1x512xf32> to vector<8x512xf32>
    %307 = arith.addf %305, %306 : vector<8x512xf32>
    %308 = arith.truncf %270 : vector<8x128xf32> to vector<8x128xbf16>
    %cst_101 = arith.constant dense<0.000000e+00> : vector<8x512xf32>
    %309 = tpu.matmul %308, %301, %cst_101 {dimension_numbers = #tpu.dot_dimension_numbers<[1], [0], [0], [1], [0, 0, 1, 1], [], []>} : vector<8x128xbf16>, vector<128x512xbf16>, vector<8x512xf32> -> vector<8x512xf32>
    %310 = arith.addf %307, %309 : vector<8x512xf32>
    %311 = vector.extract_strided_slice %310 {offsets = [0, 0], sizes = [8, 128], strides = [1, 1]} : vector<8x512xf32> to vector<8x128xf32>
    %312 = arith.negf %311 : vector<8x128xf32>
    %313 = math.exp %312 : vector<8x128xf32>
    %cst_102 = arith.constant 1.000000e+00 : f32
    %314 = vector.broadcast %cst_102 : f32 to vector<8x128xf32>
    %315 = arith.addf %314, %313 : vector<8x128xf32>
    %316 = arith.divf %314, %315 : vector<8x128xf32>
    %317 = vector.extract_strided_slice %310 {offsets = [0, 128], sizes = [8, 128], strides = [1, 1]} : vector<8x512xf32> to vector<8x128xf32>
    %318 = arith.negf %317 : vector<8x128xf32>
    %319 = math.exp %318 : vector<8x128xf32>
    %cst_103 = arith.constant 1.000000e+00 : f32
    %320 = vector.broadcast %cst_103 : f32 to vector<8x128xf32>
    %321 = arith.addf %320, %319 : vector<8x128xf32>
    %322 = arith.divf %320, %321 : vector<8x128xf32>
    %323 = vector.extract_strided_slice %310 {offsets = [0, 256], sizes = [8, 128], strides = [1, 1]} : vector<8x512xf32> to vector<8x128xf32>
    %324 = math.tanh %323 : vector<8x128xf32>
    %325 = vector.extract_strided_slice %310 {offsets = [0, 384], sizes = [8, 128], strides = [1, 1]} : vector<8x512xf32> to vector<8x128xf32>
    %326 = arith.negf %325 : vector<8x128xf32>
    %327 = math.exp %326 : vector<8x128xf32>
    %cst_104 = arith.constant 1.000000e+00 : f32
    %328 = vector.broadcast %cst_104 : f32 to vector<8x128xf32>
    %329 = arith.addf %328, %327 : vector<8x128xf32>
    %330 = arith.divf %328, %329 : vector<8x128xf32>
    %331 = arith.mulf %322, %268 : vector<8x128xf32>
    %332 = arith.mulf %316, %324 : vector<8x128xf32>
    %333 = arith.addf %331, %332 : vector<8x128xf32>
    %334 = math.tanh %333 : vector<8x128xf32>
    %335 = arith.mulf %330, %334 : vector<8x128xf32>
    %c0_105 = arith.constant 0 : index
    %c0_106 = arith.constant 0 : index
    %336 = vector.load %arg10[%c0_105, %c0_106] : memref<8x128xf32, #tpu.memory_space<vmem>>, vector<8x128xf32>
    tpu.vector_store %arg10[%c0_105, %c0_106], %335 {strides = array<i32>} : memref<8x128xf32, #tpu.memory_space<vmem>>, vector<8x128xf32>,
    return
  }
  func.func @transform_0(%arg0: i32) -> (i32, i32, i32) {
    %c0_i32 = arith.constant 0 : i32
    %c0_i32_0 = arith.constant 0 : i32
    %c0_i32_1 = arith.constant 0 : i32
    return %arg0, %c0_i32, %c0_i32_0 : i32, i32, i32
  }
  func.func @transform_1(%arg0: i32) -> (i32, i32) {
    %c0_i32 = arith.constant 0 : i32
    %c0_i32_0 = arith.constant 0 : i32
    %c0_i32_1 = arith.constant 0 : i32
    return %c0_i32, %c0_i32_0 : i32, i32
  }
  func.func @transform_2(%arg0: i32) -> (i32, i32) {
    %c0_i32 = arith.constant 0 : i32
    %c0_i32_0 = arith.constant 0 : i32
    %c0_i32_1 = arith.constant 0 : i32
    return %c0_i32, %c0_i32_0 : i32, i32
  }
  func.func @transform_3(%arg0: i32) -> (i32, i32) {
    %c0_i32 = arith.constant 0 : i32
    %c0_i32_0 = arith.constant 0 : i32
    %c0_i32_1 = arith.constant 0 : i32
    return %c0_i32, %c0_i32_0 : i32, i32
  }
  func.func @transform_4(%arg0: i32) -> (i32, i32) {
    %c0_i32 = arith.constant 0 : i32
    %c0_i32_0 = arith.constant 0 : i32
    %c0_i32_1 = arith.constant 0 : i32
    return %c0_i32, %c0_i32_0 : i32, i32
  }
  func.func @transform_5(%arg0: i32) -> (i32, i32) {
    %c0_i32 = arith.constant 0 : i32
    %c0_i32_0 = arith.constant 0 : i32
    %c0_i32_1 = arith.constant 0 : i32
    return %c0_i32, %c0_i32_0 : i32, i32
  }
  func.func @transform_6(%arg0: i32) -> (i32, i32) {
    %c0_i32 = arith.constant 0 : i32
    %c0_i32_0 = arith.constant 0 : i32
    %c0_i32_1 = arith.constant 0 : i32
    return %c0_i32, %c0_i32_0 : i32, i32
  }
  func.func @transform_7(%arg0: i32) -> (i32, i32) {
    %c0_i32 = arith.constant 0 : i32
    %c0_i32_0 = arith.constant 0 : i32
    %c0_i32_1 = arith.constant 0 : i32
    return %c0_i32, %c0_i32_0 : i32, i32
  }
  func.func @transform_8(%arg0: i32) -> (i32, i32) {
    %c0_i32 = arith.constant 0 : i32
    %c0_i32_0 = arith.constant 0 : i32
    %c0_i32_1 = arith.constant 0 : i32
    return %c0_i32, %c0_i32_0 : i32, i32
  }
  func.func @transform_9(%arg0: i32) -> (i32, i32) {
    %c0_i32 = arith.constant 0 : i32
    %c0_i32_0 = arith.constant 0 : i32
    return %arg0, %c0_i32 : i32, i32
  }
}

</mosaic_0001>

<llo_original>
// kernel: _lambda_.3
$region0: #{_lambda_.3}
  #allocation0 [shape = 'u32[]', space=smem, size = 0x4, offset = 0x4, fixed_abs, tag = 'smem constant byte address 0x4 - core index']
  #allocation1 [shape = 'u32[72,128]{1,0:T(1,128)}', space=vmem, size = 0x9000, scoped, tag = 'internal scratch']
  #allocation2 [shape = 'f32[32,512]{1,0:T(8,128)}', space=vmem, size = 0x10000, scoped, tag = 'scratch operand']
  %s0 = inlined_call_operand.vmem [shape: bf16[1,32,128], index: 0, kind: input, shape index: {}]
  %s1 = inlined_call_operand.hbm [shape: bf16[128,384], index: 1, kind: input, shape index: {}]
  %s2 = inlined_call_operand.vmem [shape: f32[1,384], index: 2, kind: input, shape index: {}]
  %s3 = inlined_call_operand.vmem [shape: bf16[128,512], index: 3, kind: input, shape index: {}]
  %s4 = inlined_call_operand.hbm [shape: bf16[128,512], index: 4, kind: input, shape index: {}]
  %s5 = inlined_call_operand.vmem [shape: f32[1,512], index: 5, kind: input, shape index: {}]
  %s6 = inlined_call_operand.hbm [shape: bf16[128,512], index: 6, kind: input, shape index: {}]
  %s7 = inlined_call_operand.hbm [shape: bf16[128,512], index: 7, kind: input, shape index: {}]
  %s8 = inlined_call_operand.vmem [shape: f32[1,512], index: 8, kind: input, shape index: {}]
  %s9 = inlined_call_operand.vmem [shape: f32[8,128], index: 9, kind: output, shape index: {}]
  %s10 = sld [smem:[#allocation0]]
  $region62: #{_lambda_.3} parent=0
    _
  %s12 = ssub.s32 1, %s10
  %s13 = scalar_select 0, %s12, %s10
  $region1: #{_lambda_.3} parent=0
    #allocation3 [shape = 'u8[98304]{0}', space=vmem, size = 0x18000, scoped, tag = 'input window, operand 1, single buffered']
    #allocation4 [shape = 's32[1]{0}', space=sflag, size = 0x4, scoped, tag = 'scoped memory for _lambda_.3']
    #allocation5 [shape = 'u8[131072]{0}', space=vmem, size = 0x20000, scoped, tag = 'input window, operand 4, single buffered']
    #allocation6 [shape = 's32[1]{0}', space=sflag, size = 0x4, scoped, tag = 'scoped memory for _lambda_.3']
    #allocation7 [shape = 'u8[131072]{0}', space=vmem, size = 0x20000, scoped, tag = 'input window, operand 6, single buffered']
    #allocation8 [shape = 'u8[131072]{0}', space=vmem, size = 0x20000, scoped, tag = 'input window, operand 7, single buffered']
    #allocation9 [shape = 's32[1]{0}', space=sflag, size = 0x4, scoped, tag = 'scoped memory for _lambda_.3']
    %14 = vsyncpa [#allocation4], 0
    %15 = vsyncpa [#allocation6], 0
    %16 = vsyncpa [#allocation9], 0
    // Predicated region
    $region2: #{_lambda_.3} parent=1 // pred_check
      _
    $region3: #{_lambda_.3} parent=1 // pred_check_branch
      %18 = sbr.rel (0) target = $region5
    $region4: #{_lambda_.3} parent=1 // pred_region
      _
    $region5: #{_lambda_.3} parent=1 // pred_fallthru
      _
    // Predicated region
    $region6: #{_lambda_.3} parent=1 // pred_check
      _
    $region7: #{_lambda_.3} parent=1 // pred_check_branch
      %20 = sbr.rel (0) target = $region9
    $region8: #{_lambda_.3} parent=1 // pred_region
      %22 = vsyncadd [#allocation4], 0
      %s23 = sshll.u32 %s1, 4
      %s24 = int_to_ptr.hbm [resolvable:$true] %s23
      %s25 = sshll.u32 [#allocation3], 4
      %s26 = int_to_ptr.vmem [resolvable:$true] %s25
      %31 = dma.hbm_to_vmem [thread:$0]  %s24, 3072, %s26, [#allocation4], 192, 192, 12
    $region9: #{_lambda_.3} parent=1 // pred_fallthru
      _
    // Predicated region
    $region10: #{_lambda_.3} parent=1 // pred_check
      _
    $region11: #{_lambda_.3} parent=1 // pred_check_branch
      %33 = sbr.rel (0) target = $region13
    $region12: #{_lambda_.3} parent=1 // pred_region
      _
    $region13: #{_lambda_.3} parent=1 // pred_fallthru
      _
    // Predicated region
    $region14: #{_lambda_.3} parent=1 // pred_check
      _
    $region15: #{_lambda_.3} parent=1 // pred_check_branch
      %35 = sbr.rel (0) target = $region17
    $region16: #{_lambda_.3} parent=1 // pred_region
      _
    $region17: #{_lambda_.3} parent=1 // pred_fallthru
      _
    // Predicated region
    $region18: #{_lambda_.3} parent=1 // pred_check
      _
    $region19: #{_lambda_.3} parent=1 // pred_check_branch
      %37 = sbr.rel (0) target = $region21
    $region20: #{_lambda_.3} parent=1 // pred_region
      %39 = vsyncadd [#allocation6], 0
      %s40 = sshll.u32 %s4, 4
      %s41 = int_to_ptr.hbm [resolvable:$true] %s40
      %s42 = sshll.u32 [#allocation5], 4
      %s43 = int_to_ptr.vmem [resolvable:$true] %s42
      %48 = dma.hbm_to_vmem [thread:$0]  %s41, 4096, %s43, [#allocation6], 256, 256, 16
    $region21: #{_lambda_.3} parent=1 // pred_fallthru
      _
    // Predicated region
    $region22: #{_lambda_.3} parent=1 // pred_check
      _
    $region23: #{_lambda_.3} parent=1 // pred_check_branch
      %50 = sbr.rel (0) target = $region25
    $region24: #{_lambda_.3} parent=1 // pred_region
      _
    $region25: #{_lambda_.3} parent=1 // pred_fallthru
      _
    // Predicated region
    $region26: #{_lambda_.3} parent=1 // pred_check
      _
    $region27: #{_lambda_.3} parent=1 // pred_check_branch
      %52 = sbr.rel (0) target = $region29
    $region28: #{_lambda_.3} parent=1 // pred_region
      %54 = vsyncadd [#allocation6], 0
      %s55 = sshll.u32 %s6, 4
      %s56 = int_to_ptr.hbm [resolvable:$true] %s55
      %s57 = sshll.u32 [#allocation7], 4
      %s58 = int_to_ptr.vmem [resolvable:$true] %s57
      %63 = dma.hbm_to_vmem [thread:$0]  %s56, 4096, %s58, [#allocation6], 256, 256, 16
    $region29: #{_lambda_.3} parent=1 // pred_fallthru
      _
    // Predicated region
    $region30: #{_lambda_.3} parent=1 // pred_check
      _
    $region31: #{_lambda_.3} parent=1 // pred_check_branch
      %65 = sbr.rel (0) target = $region33
    $region32: #{_lambda_.3} parent=1 // pred_region
      %67 = vsyncadd [#allocation9], 0
      %s68 = sshll.u32 %s7, 4
      %s69 = int_to_ptr.hbm [resolvable:$true] %s68
      %s70 = sshll.u32 [#allocation8], 4
      %s71 = int_to_ptr.vmem [resolvable:$true] %s70
      %76 = dma.hbm_to_vmem [thread:$0]  %s69, 4096, %s71, [#allocation9], 256, 256, 16
    $region33: #{_lambda_.3} parent=1 // pred_fallthru
      _
    // Predicated region
    $region34: #{_lambda_.3} parent=1 // pred_check
      _
    $region35: #{_lambda_.3} parent=1 // pred_check_branch
      %78 = sbr.rel (0) target = $region37
    $region36: #{_lambda_.3} parent=1 // pred_region
      _
    $region37: #{_lambda_.3} parent=1 // pred_fallthru
      _
    // Predicated region
    $region38: #{_lambda_.3} parent=1 // pred_check
      _
    $region39: #{_lambda_.3} parent=1 // pred_check_branch
      %80 = sbr.rel (0) target = $region41
    $region40: #{_lambda_.3} parent=1 // pred_region
      %82 = dma.done [#allocation4], 3072
    $region41: #{_lambda_.3} parent=1 // pred_fallthru
      _
    // Predicated region
    $region42: #{_lambda_.3} parent=1 // pred_check
      _
    $region43: #{_lambda_.3} parent=1 // pred_check_branch
      %84 = sbr.rel (0) target = $region45
    $region44: #{_lambda_.3} parent=1 // pred_region
      %86 = dma.done [#allocation6], 4096
    $region45: #{_lambda_.3} parent=1 // pred_fallthru
      _
    // Predicated region
    $region46: #{_lambda_.3} parent=1 // pred_check
      _
    $region47: #{_lambda_.3} parent=1 // pred_check_branch
      %88 = sbr.rel (0) target = $region49
    $region48: #{_lambda_.3} parent=1 // pred_region
      %90 = dma.done [#allocation6], 4096
    $region49: #{_lambda_.3} parent=1 // pred_fallthru
      _
    // Predicated region
    $region50: #{_lambda_.3} parent=1 // pred_check
      _
    $region51: #{_lambda_.3} parent=1 // pred_check_branch
      %92 = sbr.rel (0) target = $region53
    $region52: #{_lambda_.3} parent=1 // pred_region
      %94 = dma.done [#allocation9], 4096
    $region53: #{_lambda_.3} parent=1 // pred_fallthru
      _
    %v96 = vld [vmem:[%s0] sm:$0xf]
    %v97 = vld [vmem:[%s0 + $0x4] sm:$0xf]
    %v98 = vld [vmem:[%s0 + $0x8] sm:$0xf]
    %v99 = vld [vmem:[%s0 + $0xc] sm:$0xf]
    %v100 = vld [vmem:[#allocation3] sm:$0xff]
    %v101 = vld [vmem:[#allocation3 + $0x8] sm:$0xf]
    %v102 = vld [vmem:[#allocation3 + $0xc] sm:$0xff]
    %v103 = vld [vmem:[#allocation3 + $0x14] sm:$0xf]
    %v104 = vld [vmem:[#allocation3 + $0x18] sm:$0xff]
    %v105 = vld [vmem:[#allocation3 + $0x20] sm:$0xf]
    %v106 = vld [vmem:[#allocation3 + $0x24] sm:$0xff]
    %v107 = vld [vmem:[#allocation3 + $0x2c] sm:$0xf]
    %v108 = vld [vmem:[#allocation3 + $0x30] sm:$0xff]
    %v109 = vld [vmem:[#allocation3 + $0x38] sm:$0xf]
    %v110 = vld [vmem:[#allocation3 + $0x3c] sm:$0xff]
    %v111 = vld [vmem:[#allocation3 + $0x44] sm:$0xf]
    %v112 = vld [vmem:[#allocation3 + $0x48] sm:$0xff]
    %v113 = vld [vmem:[#allocation3 + $0x50] sm:$0xf]
    %v114 = vld [vmem:[#allocation3 + $0x54] sm:$0xff]
    %v115 = vld [vmem:[#allocation3 + $0x5c] sm:$0xf]
    %v116 = vld [vmem:[#allocation3 + $0x60] sm:$0xff]
    %v117 = vld [vmem:[#allocation3 + $0x68] sm:$0xf]
    %v118 = vld [vmem:[#allocation3 + $0x6c] sm:$0xff]
    %v119 = vld [vmem:[#allocation3 + $0x74] sm:$0xf]
    %v120 = vld [vmem:[#allocation3 + $0x78] sm:$0xff]
    %v121 = vld [vmem:[#allocation3 + $0x80] sm:$0xf]
    %v122 = vld [vmem:[#allocation3 + $0x84] sm:$0xff]
    %v123 = vld [vmem:[#allocation3 + $0x8c] sm:$0xf]
    %v124 = vld [vmem:[#allocation3 + $0x90] sm:$0xff]
    %v125 = vld [vmem:[#allocation3 + $0x98] sm:$0xf]
    %v126 = vld [vmem:[#allocation3 + $0x9c] sm:$0xff]
    %v127 = vld [vmem:[#allocation3 + $0xa4] sm:$0xf]
    %v128 = vld [vmem:[#allocation3 + $0xa8] sm:$0xff]
    %v129 = vld [vmem:[#allocation3 + $0xb0] sm:$0xf]
    %v130 = vld [vmem:[#allocation3 + $0xb4] sm:$0xff]
    %v131 = vld [vmem:[#allocation3 + $0xbc] sm:$0xf]
    %v132 = vld [vmem:[%s2] sm:$0x7]
    %v134 = vperm.slane %v132, 0
    %v135 = vperm.slane %v132, 1
    %v136 = vperm.slane %v132, 2
    %v144 = vunpack.c.l.b16 %v96
    %v145 = vunpack.c.l.b16 %v97
    %v146 = vunpack.c.l.b16 %v98
    %v147 = vunpack.c.l.b16 %v99
    %v148 = vpack.c.b16 %v145, %v144
    %v149 = vpack.c.b16 %v147, %v146
    %v184 = vunpack.c.l.b16 %v100
    %v185 = vunpack.c.h.b16 %v100
    %v186 = vunpack.c.l.b16 %v101
    %v187 = vunpack.c.l.b16 %v102
    %v188 = vunpack.c.h.b16 %v102
    %v189 = vunpack.c.l.b16 %v103
    %v190 = vunpack.c.l.b16 %v104
    %v191 = vunpack.c.h.b16 %v104
    %v192 = vunpack.c.l.b16 %v105
    %v193 = vunpack.c.l.b16 %v106
    %v194 = vunpack.c.h.b16 %v106
    %v195 = vunpack.c.l.b16 %v107
    %v196 = vunpack.c.l.b16 %v108
    %v197 = vunpack.c.h.b16 %v108
    %v198 = vunpack.c.l.b16 %v109
    %v199 = vunpack.c.l.b16 %v110
    %v200 = vunpack.c.h.b16 %v110
    %v201 = vunpack.c.l.b16 %v111
    %v202 = vunpack.c.l.b16 %v112
    %v203 = vunpack.c.h.b16 %v112
    %v204 = vunpack.c.l.b16 %v113
    %v205 = vunpack.c.l.b16 %v114
    %v206 = vunpack.c.h.b16 %v114
    %v207 = vunpack.c.l.b16 %v115
    %v208 = vunpack.c.l.b16 %v116
    %v209 = vunpack.c.h.b16 %v116
    %v210 = vunpack.c.l.b16 %v117
    %v211 = vunpack.c.l.b16 %v118
    %v212 = vunpack.c.h.b16 %v118
    %v213 = vunpack.c.l.b16 %v119
    %v214 = vunpack.c.l.b16 %v120
    %v215 = vunpack.c.h.b16 %v120
    %v216 = vunpack.c.l.b16 %v121
    %v217 = vunpack.c.l.b16 %v122
    %v218 = vunpack.c.h.b16 %v122
    %v219 = vunpack.c.l.b16 %v123
    %v220 = vunpack.c.l.b16 %v124
    %v221 = vunpack.c.h.b16 %v124
    %v222 = vunpack.c.l.b16 %v125
    %v223 = vunpack.c.l.b16 %v126
    %v224 = vunpack.c.h.b16 %v126
    %v225 = vunpack.c.l.b16 %v127
    %v226 = vunpack.c.l.b16 %v128
    %v227 = vunpack.c.h.b16 %v128
    %v228 = vunpack.c.l.b16 %v129
    %v229 = vunpack.c.l.b16 %v130
    %v230 = vunpack.c.h.b16 %v130
    %v231 = vunpack.c.l.b16 %v131
    %v232 = vpack.c.b16 %v187, %v184
    %v233 = vpack.c.b16 %v188, %v185
    %v234 = vpack.c.b16 %v189, %v186
    %v235 = vpack.c.b16 %v193, %v190
    %v236 = vpack.c.b16 %v194, %v191
    %v237 = vpack.c.b16 %v195, %v192
    %v238 = vpack.c.b16 %v199, %v196
    %v239 = vpack.c.b16 %v200, %v197
    %v240 = vpack.c.b16 %v201, %v198
    %v241 = vpack.c.b16 %v205, %v202
    %v242 = vpack.c.b16 %v206, %v203
    %v243 = vpack.c.b16 %v207, %v204
    %v244 = vpack.c.b16 %v211, %v208
    %v245 = vpack.c.b16 %v212, %v209
    %v246 = vpack.c.b16 %v213, %v210
    %v247 = vpack.c.b16 %v217, %v214
    %v248 = vpack.c.b16 %v218, %v215
    %v249 = vpack.c.b16 %v219, %v216
    %v250 = vpack.c.b16 %v223, %v220
    %v251 = vpack.c.b16 %v224, %v221
    %v252 = vpack.c.b16 %v225, %v222
    %v253 = vpack.c.b16 %v229, %v226
    %v254 = vpack.c.b16 %v230, %v227
    %v255 = vpack.c.b16 %v231, %v228
    %280 = vmatpush.bf16.msra.mxu0 %v253
    %281 = vmatpush.bf16.msra.mxu0 %v250
    %282 = vmatpush.bf16.msra.mxu0 %v247
    %283 = vmatpush.bf16.msra.mxu0 %v244
    %284 = vmatpush.bf16.msra.mxu0 %v241
    %285 = vmatpush.bf16.msra.mxu0 %v238
    %286 = vmatpush.bf16.msra.mxu0 %v235
    %287 = vmatpush.bf16.msra.mxu0 %v232
    %288 = vmatmul.bf16.gmra.mxu0 %v148
    %v289 = vpop.f32.mrf.mxu0
    %v290 = vadd.f32 %v134, %v289
    %v291 = vpop.f32.mrf.mxu0
    %v292 = vadd.f32 %v134, %v291
    %293 = vmatmul.bf16.gmra.mxu0 %v149
    %v294 = vpop.f32.mrf.mxu0
    %v295 = vadd.f32 %v134, %v294
    %v296 = vpop.f32.mrf.mxu0
    %v297 = vadd.f32 %v134, %v296
    %298 = vdwg.mxu0
    %299 = vmatpush.bf16.msra.mxu0 %v254
    %300 = vmatpush.bf16.msra.mxu0 %v251
    %301 = vmatpush.bf16.msra.mxu0 %v248
    %302 = vmatpush.bf16.msra.mxu0 %v245
    %303 = vmatpush.bf16.msra.mxu0 %v242
    %304 = vmatpush.bf16.msra.mxu0 %v239
    %305 = vmatpush.bf16.msra.mxu0 %v236
    %306 = vmatpush.bf16.msra.mxu0 %v233
    %307 = vmatmul.bf16.gmra.mxu0 %v148
    %v308 = vpop.f32.mrf.mxu0
    %v309 = vadd.f32 %v135, %v308
    %v310 = vpop.f32.mrf.mxu0
    %v311 = vadd.f32 %v135, %v310
    %312 = vmatmul.bf16.gmra.mxu0 %v149
    %v313 = vpop.f32.mrf.mxu0
    %v314 = vadd.f32 %v135, %v313
    %v315 = vpop.f32.mrf.mxu0
    %v316 = vadd.f32 %v135, %v315
    %317 = vdwg.mxu0
    %318 = vmatpush.bf16.msra.mxu0 %v255
    %319 = vmatpush.bf16.msra.mxu0 %v252
    %320 = vmatpush.bf16.msra.mxu0 %v249
    %321 = vmatpush.bf16.msra.mxu0 %v246
    %322 = vmatpush.bf16.msra.mxu0 %v243
    %323 = vmatpush.bf16.msra.mxu0 %v240
    %324 = vmatpush.bf16.msra.mxu0 %v237
    %325 = vmatpush.bf16.msra.mxu0 %v234
    %326 = vmatmul.bf16.gmra.mxu0 %v148
    %v327 = vpop.f32.mrf.mxu0
    %v328 = vadd.f32 %v136, %v327
    %v329 = vpop.f32.mrf.mxu0
    %v330 = vadd.f32 %v136, %v329
    %331 = vmatmul.bf16.gmra.mxu0 %v149
    %v332 = vpop.f32.mrf.mxu0
    %v333 = vadd.f32 %v136, %v332
    %v334 = vpop.f32.mrf.mxu0
    %v335 = vadd.f32 %v136, %v334
    %336 = vdwg.mxu0
    %v337 = vpack.c.bf16 %v292, %v290
    %v338 = vpack.c.bf16 %v297, %v295
    %v339 = vpack.c.bf16 %v311, %v309
    %v340 = vpack.c.bf16 %v316, %v314
    %v341 = vpack.c.bf16 %v330, %v328
    %v342 = vpack.c.bf16 %v335, %v333
    %343 = vmatpush.bf16.xpose.msra.mxu0 0
    %344 = vmatpush.bf16.xpose.msra.mxu0 0
    %345 = vmatpush.bf16.xpose.msra.mxu0 0
    %346 = vmatpush.bf16.xpose.msra.mxu0 0
    %347 = vmatpush.bf16.xpose.msra.mxu0 0
    %348 = vmatpush.bf16.xpose.msra.mxu0 0
    %349 = vmatpush.bf16.xpose.msra.mxu0 %v340
    %350 = vmatpush.bf16.xpose.msra.mxu0 %v339
    %351 = vmatmul.bf16.gmra.mxu0 %v337
    %v352 = vpop.f32.mrf.mxu0
    %v353 = vadd.f32 0.0, %v352
    %v354 = vpop.f32.mrf.mxu0
    %v355 = vadd.f32 0.0, %v354
    %356 = vmatmul.bf16.gmra.mxu0 %v338
    %v357 = vpop.f32.mrf.mxu0
    %v358 = vadd.f32 0.0, %v357
    %v359 = vpop.f32.mrf.mxu0
    %v360 = vadd.f32 0.0, %v359
    %361 = vdwg.mxu0
    %v362 = vlaneseq
    %v363 = vshrl.u32 %v362, 7
    %v364 = vadd.s32 %v363, 8
    %v365 = vadd.s32 %v363, 16
    %v366 = vadd.s32 %v363, 24
    %vm367 = vcmp.lt.s32.totalorder %v363, 0
    %v368 = vsub.s32 0, %v363
    %v369 = vsel %vm367, %v368, %v363
    %v370 = vshrl.u32 %v369, 3
    %v371 = vand.u32 %v369, 7
    %v372 = vsub.s32 0, %v371
    %v373 = vsel %vm367, %v372, %v371
    %vm374 = vcmp.lt.s32.totalorder %v364, 0
    %v375 = vsub.s32 0, %v364
    %v376 = vsel %vm374, %v375, %v364
    %v377 = vshrl.u32 %v376, 3
    %v378 = vand.u32 %v376, 7
    %v379 = vsub.s32 0, %v378
    %v380 = vsel %vm374, %v379, %v378
    %vm381 = vcmp.lt.s32.totalorder %v365, 0
    %v382 = vsub.s32 0, %v365
    %v383 = vsel %vm381, %v382, %v365
    %v384 = vshrl.u32 %v383, 3
    %v385 = vand.u32 %v383, 7
    %v386 = vsub.s32 0, %v385
    %v387 = vsel %vm381, %v386, %v385
    %vm388 = vcmp.lt.s32.totalorder %v366, 0
    %v389 = vsub.s32 0, %v366
    %v390 = vsel %vm388, %v389, %v366
    %v391 = vshrl.u32 %v390, 3
    %v392 = vand.u32 %v390, 7
    %v393 = vsub.s32 0, %v392
    %v394 = vsel %vm388, %v393, %v392
    %vm395 = vcmp.ne.s32.totalorder %v373, 0
    %vm396 = vcmp.ne.s32.totalorder %v380, 0
    %vm397 = vcmp.ne.s32.totalorder %v387, 0
    %vm398 = vcmp.ne.s32.totalorder %v394, 0
    %vm399 = vcmp.lt.s32.totalorder %v373, 0
    %vm400 = vcmp.lt.s32.totalorder %v380, 0
    %vm401 = vcmp.lt.s32.totalorder %v387, 0
    %vm402 = vcmp.lt.s32.totalorder %v394, 0
    %vm403 = vmand %vm399, %vm395
    %vm404 = vmand %vm400, %vm396
    %vm405 = vmand %vm401, %vm397
    %vm406 = vmand %vm402, %vm398
    %v407 = vadd.s32 %v373, 8
    %v408 = vadd.s32 %v380, 8
    %v409 = vadd.s32 %v387, 8
    %v410 = vadd.s32 %v394, 8
    %v411 = vsel %vm403, %v407, %v373
    %v412 = vsel %vm404, %v408, %v380
    %v413 = vsel %vm405, %v409, %v387
    %v414 = vsel %vm406, %v410, %v394
    %v415 = vlaneseq
    %v416 = vand.u32 %v415, 127
    %vm417 = vcmp.lt.s32.totalorder %v416, 0
    %v418 = vsub.s32 0, %v416
    %v419 = vsel %vm417, %v418, %v416
    %v420 = vshrl.u32 %v419, 3
    %v421 = vand.u32 %v419, 7
    %v422 = vsub.s32 0, %v421
    %v423 = vsel %vm417, %v422, %v421
    %vm424 = vcmp.ne.s32.totalorder %v423, 0
    %vm425 = vcmp.lt.s32.totalorder %v423, 0
    %vm426 = vmand %vm425, %vm424
    %v427 = vadd.s32 %v423, 8
    %v428 = vsel %vm426, %v427, %v423
    %vm429 = vcmp.eq.s32.totalorder %v411, %v428
    %vm430 = vcmp.eq.s32.totalorder %v412, %v428
    %vm431 = vcmp.eq.s32.totalorder %v413, %v428
    %vm432 = vcmp.eq.s32.totalorder %v414, %v428
    %v433 = vmul.f32 %v353, 0.022097087
    %v434 = vmul.f32 %v355, 0.022097087
    %v435 = vmul.f32 %v358, 0.022097087
    %v436 = vmul.f32 %v360, 0.022097087
    %v437 = vsel %vm429, %v433, -1e+30
    %v438 = vsel %vm430, %v434, -1e+30
    %v439 = vsel %vm431, %v435, -1e+30
    %v440 = vsel %vm432, %v436, -1e+30
    %vm441 = vcmask 261120
    %v442 = vsel %vm441, %v437, -inf
    %443 = vmax.xlane.f32.xlu0 %v442
    %v444 = vpop.xlane.xlu0 %443
    %v445 = vsel %vm441, %v438, -inf
    %446 = vmax.xlane.f32.xlu0 %v445
    %v447 = vpop.xlane.xlu0 %446
    %v448 = vsel %vm441, %v439, -inf
    %449 = vmax.xlane.f32.xlu0 %v448
    %v450 = vpop.xlane.xlu0 %449
    %v451 = vsel %vm441, %v440, -inf
    %452 = vmax.xlane.f32.xlu0 %v451
    %v453 = vpop.xlane.xlu0 %452
    %v454 = vsub.f32 %v437, %v444
    %v455 = vsub.f32 %v438, %v447
    %v456 = vsub.f32 %v439, %v450
    %v457 = vsub.f32 %v440, %v453
    %v458 = vmul.f32 %v454, 1.442695
    %v459 = vpow.pop %v458
    %v460 = vmul.f32 %v455, 1.442695
    %v461 = vpow.pop %v460
    %v462 = vmul.f32 %v456, 1.442695
    %v463 = vpow.pop %v462
    %v464 = vmul.f32 %v457, 1.442695
    %v465 = vpow.pop %v464
    %v466 = vsel %vm441, %v459, 0.0
    %467 = vadd.xlane.f32.xlu0 %v466
    %v468 = vpop.xlane.xlu0 %467
    %v469 = vsel %vm441, %v461, 0.0
    %470 = vadd.xlane.f32.xlu0 %v469
    %v471 = vpop.xlane.xlu0 %470
    %v472 = vsel %vm441, %v463, 0.0
    %473 = vadd.xlane.f32.xlu0 %v472
    %v474 = vpop.xlane.xlu0 %473
    %v475 = vsel %vm441, %v465, 0.0
    %476 = vadd.xlane.f32.xlu0 %v475
    %v477 = vpop.xlane.xlu0 %476
    %v478 = vrcp.pop %v468
    %v479 = vrcp.pop %v471
    %v480 = vrcp.pop %v474
    %v481 = vrcp.pop %v477
    %v482 = vmul.f32 %v459, %v478
    %v483 = vmul.f32 %v461, %v479
    %v484 = vmul.f32 %v463, %v480
    %v485 = vmul.f32 %v465, %v481
    %v486 = vpack.c.bf16 %v483, %v482
    %v487 = vpack.c.bf16 %v485, %v484
    %v489 = vsel %vm441, %v486, 0
    %v492 = vsel %vm441, %v487, 0
    %494 = vmatpush.bf16.msra.mxu0 0
    %495 = vmatpush.bf16.msra.mxu0 0
    %496 = vmatpush.bf16.msra.mxu0 0
    %497 = vmatpush.bf16.msra.mxu0 0
    %498 = vmatpush.bf16.msra.mxu0 0
    %499 = vmatpush.bf16.msra.mxu0 0
    %500 = vmatpush.bf16.msra.mxu0 %v342
    %501 = vmatpush.bf16.msra.mxu0 %v341
    %502 = vmatmul.bf16.gmra.mxu0 %v489
    %v503 = vpop.f32.mrf.mxu0
    %v504 = vadd.f32 0.0, %v503
    %v505 = vpop.f32.mrf.mxu0
    %v506 = vadd.f32 0.0, %v505
    %507 = vmatmul.bf16.gmra.mxu0 %v492
    %v508 = vpop.f32.mrf.mxu0
    %v509 = vadd.f32 0.0, %v508
    %v510 = vpop.f32.mrf.mxu0
    %v511 = vadd.f32 0.0, %v510
    %512 = vdwg.mxu0
    %v513 = vpack.c.bf16 %v506, %v504
    %v514 = vpack.c.bf16 %v511, %v509
    %v515 = vld [vmem:[%s3] sm:$0xff]
    %v516 = vld [vmem:[%s3 + $0x8] sm:$0xff]
    %v517 = vld [vmem:[%s3 + $0x10] sm:$0xff]
    %v518 = vld [vmem:[%s3 + $0x18] sm:$0xff]
    %v519 = vld [vmem:[%s3 + $0x20] sm:$0xff]
    %v520 = vld [vmem:[%s3 + $0x28] sm:$0xff]
    %v521 = vld [vmem:[%s3 + $0x30] sm:$0xff]
    %v522 = vld [vmem:[%s3 + $0x38] sm:$0xff]
    %v523 = vld [vmem:[%s3 + $0x40] sm:$0xff]
    %v524 = vld [vmem:[%s3 + $0x48] sm:$0xff]
    %v525 = vld [vmem:[%s3 + $0x50] sm:$0xff]
    %v526 = vld [vmem:[%s3 + $0x58] sm:$0xff]
    %v527 = vld [vmem:[%s3 + $0x60] sm:$0xff]
    %v528 = vld [vmem:[%s3 + $0x68] sm:$0xff]
    %v529 = vld [vmem:[%s3 + $0x70] sm:$0xff]
    %v530 = vld [vmem:[%s3 + $0x78] sm:$0xff]
    %v531 = vld [vmem:[%s3 + $0x80] sm:$0xff]
    %v532 = vld [vmem:[%s3 + $0x88] sm:$0xff]
    %v533 = vld [vmem:[%s3 + $0x90] sm:$0xff]
    %v534 = vld [vmem:[%s3 + $0x98] sm:$0xff]
    %v535 = vld [vmem:[%s3 + $0xa0] sm:$0xff]
    %v536 = vld [vmem:[%s3 + $0xa8] sm:$0xff]
    %v537 = vld [vmem:[%s3 + $0xb0] sm:$0xff]
    %v538 = vld [vmem:[%s3 + $0xb8] sm:$0xff]
    %v539 = vld [vmem:[%s3 + $0xc0] sm:$0xff]
    %v540 = vld [vmem:[%s3 + $0xc8] sm:$0xff]
    %v541 = vld [vmem:[%s3 + $0xd0] sm:$0xff]
    %v542 = vld [vmem:[%s3 + $0xd8] sm:$0xff]
    %v543 = vld [vmem:[%s3 + $0xe0] sm:$0xff]
    %v544 = vld [vmem:[%s3 + $0xe8] sm:$0xff]
    %v545 = vld [vmem:[%s3 + $0xf0] sm:$0xff]
    %v546 = vld [vmem:[%s3 + $0xf8] sm:$0xff]
    %v547 = vld [vmem:[%s5] sm:$0xf]
    %v549 = vperm.slane %v547, 0
    %v550 = vperm.slane %v547, 1
    %v551 = vperm.slane %v547, 2
    %v552 = vperm.slane %v547, 3
    %v589 = vunpack.c.l.b16 %v515
    %v590 = vunpack.c.h.b16 %v515
    %v591 = vunpack.c.l.b16 %v516
    %v592 = vunpack.c.h.b16 %v516
    %v593 = vunpack.c.l.b16 %v517
    %v594 = vunpack.c.h.b16 %v517
    %v595 = vunpack.c.l.b16 %v518
    %v596 = vunpack.c.h.b16 %v518
    %v597 = vunpack.c.l.b16 %v519
    %v598 = vunpack.c.h.b16 %v519
    %v599 = vunpack.c.l.b16 %v520
    %v600 = vunpack.c.h.b16 %v520
    %v601 = vunpack.c.l.b16 %v521
    %v602 = vunpack.c.h.b16 %v521
    %v603 = vunpack.c.l.b16 %v522
    %v604 = vunpack.c.h.b16 %v522
    %v605 = vunpack.c.l.b16 %v523
    %v606 = vunpack.c.h.b16 %v523
    %v607 = vunpack.c.l.b16 %v524
    %v608 = vunpack.c.h.b16 %v524
    %v609 = vunpack.c.l.b16 %v525
    %v610 = vunpack.c.h.b16 %v525
    %v611 = vunpack.c.l.b16 %v526
    %v612 = vunpack.c.h.b16 %v526
    %v613 = vunpack.c.l.b16 %v527
    %v614 = vunpack.c.h.b16 %v527
    %v615 = vunpack.c.l.b16 %v528
    %v616 = vunpack.c.h.b16 %v528
    %v617 = vunpack.c.l.b16 %v529
    %v618 = vunpack.c.h.b16 %v529
    %v619 = vunpack.c.l.b16 %v530
    %v620 = vunpack.c.h.b16 %v530
    %v621 = vunpack.c.l.b16 %v531
    %v622 = vunpack.c.h.b16 %v531
    %v623 = vunpack.c.l.b16 %v532
    %v624 = vunpack.c.h.b16 %v532
    %v625 = vunpack.c.l.b16 %v533
    %v626 = vunpack.c.h.b16 %v533
    %v627 = vunpack.c.l.b16 %v534
    %v628 = vunpack.c.h.b16 %v534
    %v629 = vunpack.c.l.b16 %v535
    %v630 = vunpack.c.h.b16 %v535
    %v631 = vunpack.c.l.b16 %v536
    %v632 = vunpack.c.h.b16 %v536
    %v633 = vunpack.c.l.b16 %v537
    %v634 = vunpack.c.h.b16 %v537
    %v635 = vunpack.c.l.b16 %v538
    %v636 = vunpack.c.h.b16 %v538
    %v637 = vunpack.c.l.b16 %v539
    %v638 = vunpack.c.h.b16 %v539
    %v639 = vunpack.c.l.b16 %v540
    %v640 = vunpack.c.h.b16 %v540
    %v641 = vunpack.c.l.b16 %v541
    %v642 = vunpack.c.h.b16 %v541
    %v643 = vunpack.c.l.b16 %v542
    %v644 = vunpack.c.h.b16 %v542
    %v645 = vunpack.c.l.b16 %v543
    %v646 = vunpack.c.h.b16 %v543
    %v647 = vunpack.c.l.b16 %v544
    %v648 = vunpack.c.h.b16 %v544
    %v649 = vunpack.c.l.b16 %v545
    %v650 = vunpack.c.h.b16 %v545
    %v651 = vunpack.c.l.b16 %v546
    %v652 = vunpack.c.h.b16 %v546
    %v653 = vpack.c.b16 %v593, %v589
    %v654 = vpack.c.b16 %v594, %v590
    %v655 = vpack.c.b16 %v595, %v591
    %v656 = vpack.c.b16 %v596, %v592
    %v657 = vpack.c.b16 %v601, %v597
    %v658 = vpack.c.b16 %v602, %v598
    %v659 = vpack.c.b16 %v603, %v599
    %v660 = vpack.c.b16 %v604, %v600
    %v661 = vpack.c.b16 %v609, %v605
    %v662 = vpack.c.b16 %v610, %v606
    %v663 = vpack.c.b16 %v611, %v607
    %v664 = vpack.c.b16 %v612, %v608
    %v665 = vpack.c.b16 %v617, %v613
    %v666 = vpack.c.b16 %v618, %v614
    %v667 = vpack.c.b16 %v619, %v615
    %v668 = vpack.c.b16 %v620, %v616
    %v669 = vpack.c.b16 %v625, %v621
    %v670 = vpack.c.b16 %v626, %v622
    %v671 = vpack.c.b16 %v627, %v623
    %v672 = vpack.c.b16 %v628, %v624
    %v673 = vpack.c.b16 %v633, %v629
    %v674 = vpack.c.b16 %v634, %v630
    %v675 = vpack.c.b16 %v635, %v631
    %v676 = vpack.c.b16 %v636, %v632
    %v677 = vpack.c.b16 %v641, %v637
    %v678 = vpack.c.b16 %v642, %v638
    %v679 = vpack.c.b16 %v643, %v639
    %v680 = vpack.c.b16 %v644, %v640
    %v681 = vpack.c.b16 %v649, %v645
    %v682 = vpack.c.b16 %v650, %v646
    %v683 = vpack.c.b16 %v651, %v647
    %v684 = vpack.c.b16 %v652, %v648
    %717 = vmatpush.bf16.msra.mxu0 %v681
    %718 = vmatpush.bf16.msra.mxu0 %v677
    %719 = vmatpush.bf16.msra.mxu0 %v673
    %720 = vmatpush.bf16.msra.mxu0 %v669
    %721 = vmatpush.bf16.msra.mxu0 %v665
    %722 = vmatpush.bf16.msra.mxu0 %v661
    %723 = vmatpush.bf16.msra.mxu0 %v657
    %724 = vmatpush.bf16.msra.mxu0 %v653
    %725 = vmatmul.bf16.gmra.mxu0 %v513
    %v726 = vpop.f32.mrf.mxu0
    %v727 = vadd.f32 %v549, %v726
    %v728 = vpop.f32.mrf.mxu0
    %v729 = vadd.f32 %v549, %v728
    %730 = vmatmul.bf16.gmra.mxu0 %v514
    %v731 = vpop.f32.mrf.mxu0
    %v732 = vadd.f32 %v549, %v731
    %v733 = vpop.f32.mrf.mxu0
    %v734 = vadd.f32 %v549, %v733
    %735 = vdwg.mxu0
    %736 = vmatpush.bf16.msra.mxu0 %v682
    %737 = vmatpush.bf16.msra.mxu0 %v678
    %738 = vmatpush.bf16.msra.mxu0 %v674
    %739 = vmatpush.bf16.msra.mxu0 %v670
    %740 = vmatpush.bf16.msra.mxu0 %v666
    %741 = vmatpush.bf16.msra.mxu0 %v662
    %742 = vmatpush.bf16.msra.mxu0 %v658
    %743 = vmatpush.bf16.msra.mxu0 %v654
    %744 = vmatmul.bf16.gmra.mxu0 %v513
    %v745 = vpop.f32.mrf.mxu0
    %v746 = vadd.f32 %v550, %v745
    %v747 = vpop.f32.mrf.mxu0
    %v748 = vadd.f32 %v550, %v747
    %749 = vmatmul.bf16.gmra.mxu0 %v514
    %v750 = vpop.f32.mrf.mxu0
    %v751 = vadd.f32 %v550, %v750
    %v752 = vpop.f32.mrf.mxu0
    %v753 = vadd.f32 %v550, %v752
    %754 = vdwg.mxu0
    %755 = vmatpush.bf16.msra.mxu0 %v683
    %756 = vmatpush.bf16.msra.mxu0 %v679
    %757 = vmatpush.bf16.msra.mxu0 %v675
    %758 = vmatpush.bf16.msra.mxu0 %v671
    %759 = vmatpush.bf16.msra.mxu0 %v667
    %760 = vmatpush.bf16.msra.mxu0 %v663
    %761 = vmatpush.bf16.msra.mxu0 %v659
    %762 = vmatpush.bf16.msra.mxu0 %v655
    %763 = vmatmul.bf16.gmra.mxu0 %v513
    %v764 = vpop.f32.mrf.mxu0
    %v765 = vadd.f32 %v551, %v764
    %v766 = vpop.f32.mrf.mxu0
    %v767 = vadd.f32 %v551, %v766
    %768 = vmatmul.bf16.gmra.mxu0 %v514
    %v769 = vpop.f32.mrf.mxu0
    %v770 = vadd.f32 %v551, %v769
    %v771 = vpop.f32.mrf.mxu0
    %v772 = vadd.f32 %v551, %v771
    %773 = vdwg.mxu0
    %774 = vmatpush.bf16.msra.mxu0 %v684
    %775 = vmatpush.bf16.msra.mxu0 %v680
    %776 = vmatpush.bf16.msra.mxu0 %v676
    %777 = vmatpush.bf16.msra.mxu0 %v672
    %778 = vmatpush.bf16.msra.mxu0 %v668
    %779 = vmatpush.bf16.msra.mxu0 %v664
    %780 = vmatpush.bf16.msra.mxu0 %v660
    %781 = vmatpush.bf16.msra.mxu0 %v656
    %782 = vmatmul.bf16.gmra.mxu0 %v513
    %v783 = vpop.f32.mrf.mxu0
    %v784 = vadd.f32 %v552, %v783
    %v785 = vpop.f32.mrf.mxu0
    %v786 = vadd.f32 %v552, %v785
    %787 = vmatmul.bf16.gmra.mxu0 %v514
    %v788 = vpop.f32.mrf.mxu0
    %v789 = vadd.f32 %v552, %v788
    %v790 = vpop.f32.mrf.mxu0
    %v791 = vadd.f32 %v552, %v790
    %792 = vdwg.mxu0
    %793 = vst [vmem:[#allocation2] sm:$0xff] %v727
    %794 = vst [vmem:[#allocation2 + $0x8] sm:$0xff] %v746
    %795 = vst [vmem:[#allocation2 + $0x10] sm:$0xff] %v765
    %796 = vst [vmem:[#allocation2 + $0x18] sm:$0xff] %v784
    %797 = vst [vmem:[#allocation2 + $0x20] sm:$0xff] %v729
    %798 = vst [vmem:[#allocation2 + $0x28] sm:$0xff] %v748
    %799 = vst [vmem:[#allocation2 + $0x30] sm:$0xff] %v767
    %800 = vst [vmem:[#allocation2 + $0x38] sm:$0xff] %v786
    %801 = vst [vmem:[#allocation2 + $0x40] sm:$0xff] %v732
    %802 = vst [vmem:[#allocation2 + $0x48] sm:$0xff] %v751
    %803 = vst [vmem:[#allocation2 + $0x50] sm:$0xff] %v770
    %804 = vst [vmem:[#allocation2 + $0x58] sm:$0xff] %v789
    %805 = vst [vmem:[#allocation2 + $0x60] sm:$0xff] %v734
    %806 = vst [vmem:[#allocation2 + $0x68] sm:$0xff] %v753
    %807 = vst [vmem:[#allocation2 + $0x70] sm:$0xff] %v772
    %808 = vst [vmem:[#allocation2 + $0x78] sm:$0xff] %v791
    %v809 = vld [vmem:[#allocation5] sm:$0xff]
    %v810 = vld [vmem:[#allocation5 + $0x8] sm:$0xff]
    %v811 = vld [vmem:[#allocation5 + $0x10] sm:$0xff]
    %v812 = vld [vmem:[#allocation5 + $0x18] sm:$0xff]
    %v813 = vld [vmem:[#allocation5 + $0x20] sm:$0xff]
    %v814 = vld [vmem:[#allocation5 + $0x28] sm:$0xff]
    %v815 = vld [vmem:[#allocation5 + $0x30] sm:$0xff]
    %v816 = vld [vmem:[#allocation5 + $0x38] sm:$0xff]
    %v817 = vld [vmem:[#allocation5 + $0x40] sm:$0xff]
    %v818 = vld [vmem:[#allocation5 + $0x48] sm:$0xff]
    %v819 = vld [vmem:[#allocation5 + $0x50] sm:$0xff]
    %v820 = vld [vmem:[#allocation5 + $0x58] sm:$0xff]
    %v821 = vld [vmem:[#allocation5 + $0x60] sm:$0xff]
    %v822 = vld [vmem:[#allocation5 + $0x68] sm:$0xff]
    %v823 = vld [vmem:[#allocation5 + $0x70] sm:$0xff]
    %v824 = vld [vmem:[#allocation5 + $0x78] sm:$0xff]
    %v825 = vld [vmem:[#allocation5 + $0x80] sm:$0xff]
    %v826 = vld [vmem:[#allocation5 + $0x88] sm:$0xff]
    %v827 = vld [vmem:[#allocation5 + $0x90] sm:$0xff]
    %v828 = vld [vmem:[#allocation5 + $0x98] sm:$0xff]
    %v829 = vld [vmem:[#allocation5 + $0xa0] sm:$0xff]
    %v830 = vld [vmem:[#allocation5 + $0xa8] sm:$0xff]
    %v831 = vld [vmem:[#allocation5 + $0xb0] sm:$0xff]
    %v832 = vld [vmem:[#allocation5 + $0xb8] sm:$0xff]
    %v833 = vld [vmem:[#allocation5 + $0xc0] sm:$0xff]
    %v834 = vld [vmem:[#allocation5 + $0xc8] sm:$0xff]
    %v835 = vld [vmem:[#allocation5 + $0xd0] sm:$0xff]
    %v836 = vld [vmem:[#allocation5 + $0xd8] sm:$0xff]
    %v837 = vld [vmem:[#allocation5 + $0xe0] sm:$0xff]
    %v838 = vld [vmem:[#allocation5 + $0xe8] sm:$0xff]
    %v839 = vld [vmem:[#allocation5 + $0xf0] sm:$0xff]
    %v840 = vld [vmem:[#allocation5 + $0xf8] sm:$0xff]
    %v841 = vld [vmem:[#allocation2] sm:$0xff]
    %v842 = vld [vmem:[#allocation2 + $0x8] sm:$0xff]
    %v843 = vld [vmem:[#allocation2 + $0x10] sm:$0xff]
    %v844 = vld [vmem:[#allocation2 + $0x18] sm:$0xff]
    %v877 = vunpack.c.l.b16 %v809
    %v878 = vunpack.c.h.b16 %v809
    %v879 = vunpack.c.l.b16 %v810
    %v880 = vunpack.c.h.b16 %v810
    %v881 = vunpack.c.l.b16 %v811
    %v882 = vunpack.c.h.b16 %v811
    %v883 = vunpack.c.l.b16 %v812
    %v884 = vunpack.c.h.b16 %v812
    %v885 = vunpack.c.l.b16 %v813
    %v886 = vunpack.c.h.b16 %v813
    %v887 = vunpack.c.l.b16 %v814
    %v888 = vunpack.c.h.b16 %v814
    %v889 = vunpack.c.l.b16 %v815
    %v890 = vunpack.c.h.b16 %v815
    %v891 = vunpack.c.l.b16 %v816
    %v892 = vunpack.c.h.b16 %v816
    %v893 = vunpack.c.l.b16 %v817
    %v894 = vunpack.c.h.b16 %v817
    %v895 = vunpack.c.l.b16 %v818
    %v896 = vunpack.c.h.b16 %v818
    %v897 = vunpack.c.l.b16 %v819
    %v898 = vunpack.c.h.b16 %v819
    %v899 = vunpack.c.l.b16 %v820
    %v900 = vunpack.c.h.b16 %v820
    %v901 = vunpack.c.l.b16 %v821
    %v902 = vunpack.c.h.b16 %v821
    %v903 = vunpack.c.l.b16 %v822
    %v904 = vunpack.c.h.b16 %v822
    %v905 = vunpack.c.l.b16 %v823
    %v906 = vunpack.c.h.b16 %v823
    %v907 = vunpack.c.l.b16 %v824
    %v908 = vunpack.c.h.b16 %v824
    %v909 = vunpack.c.l.b16 %v825
    %v910 = vunpack.c.h.b16 %v825
    %v911 = vunpack.c.l.b16 %v826
    %v912 = vunpack.c.h.b16 %v826
    %v913 = vunpack.c.l.b16 %v827
    %v914 = vunpack.c.h.b16 %v827
    %v915 = vunpack.c.l.b16 %v828
    %v916 = vunpack.c.h.b16 %v828
    %v917 = vunpack.c.l.b16 %v829
    %v918 = vunpack.c.h.b16 %v829
    %v919 = vunpack.c.l.b16 %v830
    %v920 = vunpack.c.h.b16 %v830
    %v921 = vunpack.c.l.b16 %v831
    %v922 = vunpack.c.h.b16 %v831
    %v923 = vunpack.c.l.b16 %v832
    %v924 = vunpack.c.h.b16 %v832
    %v925 = vunpack.c.l.b16 %v833
    %v926 = vunpack.c.h.b16 %v833
    %v927 = vunpack.c.l.b16 %v834
    %v928 = vunpack.c.h.b16 %v834
    %v929 = vunpack.c.l.b16 %v835
    %v930 = vunpack.c.h.b16 %v835
    %v931 = vunpack.c.l.b16 %v836
    %v932 = vunpack.c.h.b16 %v836
    %v933 = vunpack.c.l.b16 %v837
    %v934 = vunpack.c.h.b16 %v837
    %v935 = vunpack.c.l.b16 %v838
    %v936 = vunpack.c.h.b16 %v838
    %v937 = vunpack.c.l.b16 %v839
    %v938 = vunpack.c.h.b16 %v839
    %v939 = vunpack.c.l.b16 %v840
    %v940 = vunpack.c.h.b16 %v840
    %v941 = vpack.c.b16 %v881, %v877
    %v942 = vpack.c.b16 %v882, %v878
    %v943 = vpack.c.b16 %v883, %v879
    %v944 = vpack.c.b16 %v884, %v880
    %v945 = vpack.c.b16 %v889, %v885
    %v946 = vpack.c.b16 %v890, %v886
    %v947 = vpack.c.b16 %v891, %v887
    %v948 = vpack.c.b16 %v892, %v888
    %v949 = vpack.c.b16 %v897, %v893
    %v950 = vpack.c.b16 %v898, %v894
    %v951 = vpack.c.b16 %v899, %v895
    %v952 = vpack.c.b16 %v900, %v896
    %v953 = vpack.c.b16 %v905, %v901
    %v954 = vpack.c.b16 %v906, %v902
    %v955 = vpack.c.b16 %v907, %v903
    %v956 = vpack.c.b16 %v908, %v904
    %v957 = vpack.c.b16 %v913, %v909
    %v958 = vpack.c.b16 %v914, %v910
    %v959 = vpack.c.b16 %v915, %v911
    %v960 = vpack.c.b16 %v916, %v912
    %v961 = vpack.c.b16 %v921, %v917
    %v962 = vpack.c.b16 %v922, %v918
    %v963 = vpack.c.b16 %v923, %v919
    %v964 = vpack.c.b16 %v924, %v920
    %v965 = vpack.c.b16 %v929, %v925
    %v966 = vpack.c.b16 %v930, %v926
    %v967 = vpack.c.b16 %v931, %v927
    %v968 = vpack.c.b16 %v932, %v928
    %v969 = vpack.c.b16 %v937, %v933
    %v970 = vpack.c.b16 %v938, %v934
    %v971 = vpack.c.b16 %v939, %v935
    %v972 = vpack.c.b16 %v940, %v936
    %1005 = vmatpush.bf16.msra.mxu0 %v969
    %1006 = vmatpush.bf16.msra.mxu0 %v965
    %1007 = vmatpush.bf16.msra.mxu0 %v961
    %1008 = vmatpush.bf16.msra.mxu0 %v957
    %1009 = vmatpush.bf16.msra.mxu0 %v953
    %1010 = vmatpush.bf16.msra.mxu0 %v949
    %1011 = vmatpush.bf16.msra.mxu0 %v945
    %1012 = vmatpush.bf16.msra.mxu0 %v941
    %1013 = vmatmul.bf16.gmra.mxu0 0
    %v1014 = vpop.f32.mrf.mxu0
    %v1015 = vadd.f32 0.0, %v1014
    %v1016 = vpop.f32.mrf.mxu0
    %1017 = vdwg.mxu0
    %1018 = vmatpush.bf16.msra.mxu0 %v970
    %1019 = vmatpush.bf16.msra.mxu0 %v966
    %1020 = vmatpush.bf16.msra.mxu0 %v962
    %1021 = vmatpush.bf16.msra.mxu0 %v958
    %1022 = vmatpush.bf16.msra.mxu0 %v954
    %1023 = vmatpush.bf16.msra.mxu0 %v950
    %1024 = vmatpush.bf16.msra.mxu0 %v946
    %1025 = vmatpush.bf16.msra.mxu0 %v942
    %1026 = vmatmul.bf16.gmra.mxu0 0
    %v1027 = vpop.f32.mrf.mxu0
    %v1028 = vadd.f32 0.0, %v1027
    %v1029 = vpop.f32.mrf.mxu0
    %1030 = vdwg.mxu0
    %1031 = vmatpush.bf16.msra.mxu0 %v971
    %1032 = vmatpush.bf16.msra.mxu0 %v967
    %1033 = vmatpush.bf16.msra.mxu0 %v963
    %1034 = vmatpush.bf16.msra.mxu0 %v959
    %1035 = vmatpush.bf16.msra.mxu0 %v955
    %1036 = vmatpush.bf16.msra.mxu0 %v951
    %1037 = vmatpush.bf16.msra.mxu0 %v947
    %1038 = vmatpush.bf16.msra.mxu0 %v943
    %1039 = vmatmul.bf16.gmra.mxu0 0
    %v1040 = vpop.f32.mrf.mxu0
    %v1041 = vadd.f32 0.0, %v1040
    %v1042 = vpop.f32.mrf.mxu0
    %1043 = vdwg.mxu0
    %1044 = vmatpush.bf16.msra.mxu0 %v972
    %1045 = vmatpush.bf16.msra.mxu0 %v968
    %1046 = vmatpush.bf16.msra.mxu0 %v964
    %1047 = vmatpush.bf16.msra.mxu0 %v960
    %1048 = vmatpush.bf16.msra.mxu0 %v956
    %1049 = vmatpush.bf16.msra.mxu0 %v952
    %1050 = vmatpush.bf16.msra.mxu0 %v948
    %1051 = vmatpush.bf16.msra.mxu0 %v944
    %1052 = vmatmul.bf16.gmra.mxu0 0
    %v1053 = vpop.f32.mrf.mxu0
    %v1054 = vadd.f32 0.0, %v1053
    %v1055 = vpop.f32.mrf.mxu0
    %1056 = vdwg.mxu0
    %v1057 = vadd.f32 %v841, %v1015
    %v1058 = vadd.f32 %v842, %v1028
    %v1059 = vadd.f32 %v843, %v1041
    %v1060 = vadd.f32 %v844, %v1054
    %v1061 = vxor.u32 %v1057, 2147483648
    %v1062 = vmul.f32 %v1061, 1.442695
    %v1063 = vpow.pop %v1062
    %v1064 = vadd.f32 %v1063, 1.0
    %v1065 = vrcp.pop %v1064
    %v1066 = vmul.f32 %v1064, %v1065
    %v1067 = vsub.f32 1.0, %v1066
    %v1068 = vmul.f32 %v1065, %v1067
    %v1069 = vadd.f32 %v1065, %v1068
    %vm1070 = vweird.f32 %v1064
    %vm1071 = vweird.f32 %v1065
    %vm1072 = vmor %vm1070, %vm1071
    %v1073 = vsel %vm1072, %v1065, %v1069
    %v1074 = vand.u32 2147483647, %v1064
    %vm1075 = vcmp.eq.f32.partialorder %v1074, 8.507059e+37
    %v1076 = vand.u32 %v1064, 2147483648
    %v1077 = vor.u32 1.1754944e-38, %v1076
    %v1078 = vsel %vm1075, %v1077, %v1073
    %v1079 = vmul.f32 1.0, %v1078
    %v1080 = vxor.u32 %v1058, 2147483648
    %v1081 = vmul.f32 %v1080, 1.442695
    %v1082 = vpow.pop %v1081
    %v1083 = vadd.f32 %v1082, 1.0
    %v1084 = vrcp.pop %v1083
    %v1085 = vmul.f32 %v1083, %v1084
    %v1086 = vsub.f32 1.0, %v1085
    %v1087 = vmul.f32 %v1084, %v1086
    %v1088 = vadd.f32 %v1084, %v1087
    %vm1089 = vweird.f32 %v1083
    %vm1090 = vweird.f32 %v1084
    %vm1091 = vmor %vm1089, %vm1090
    %v1092 = vsel %vm1091, %v1084, %v1088
    %v1093 = vand.u32 2147483647, %v1083
    %vm1094 = vcmp.eq.f32.partialorder %v1093, 8.507059e+37
    %v1095 = vand.u32 %v1083, 2147483648
    %v1096 = vor.u32 1.1754944e-38, %v1095
    %v1097 = vsel %vm1094, %v1096, %v1092
    %v1098 = vmul.f32 1.0, %v1097
    %v1099 = vtanh.pop %v1059
    %v1100 = vxor.u32 %v1060, 2147483648
    %v1101 = vmul.f32 %v1100, 1.442695
    %v1102 = vpow.pop %v1101
    %v1103 = vadd.f32 %v1102, 1.0
    %v1104 = vrcp.pop %v1103
    %v1105 = vmul.f32 %v1103, %v1104
    %v1106 = vsub.f32 1.0, %v1105
    %v1107 = vmul.f32 %v1104, %v1106
    %v1108 = vadd.f32 %v1104, %v1107
    %vm1109 = vweird.f32 %v1103
    %vm1110 = vweird.f32 %v1104
    %vm1111 = vmor %vm1109, %vm1110
    %v1112 = vsel %vm1111, %v1104, %v1108
    %v1113 = vand.u32 2147483647, %v1103
    %vm1114 = vcmp.eq.f32.partialorder %v1113, 8.507059e+37
    %v1115 = vand.u32 %v1103, 2147483648
    %v1116 = vor.u32 1.1754944e-38, %v1115
    %v1117 = vsel %vm1114, %v1116, %v1112
    %v1118 = vmul.f32 1.0, %v1117
    %v1119 = vmul.f32 %v1098, 0.0
    %v1120 = vmul.f32 %v1079, %v1099
    %v1121 = vadd.f32 %v1119, %v1120
    %v1122 = vtanh.pop %v1121
    %v1123 = vmul.f32 %v1118, %v1122
    %v1124 = vld [vmem:[#allocation8] sm:$0xff]
    %v1125 = vld [vmem:[#allocation8 + $0x8] sm:$0xff]
    %v1126 = vld [vmem:[#allocation8 + $0x10] sm:$0xff]
    %v1127 = vld [vmem:[#allocation8 + $0x18] sm:$0xff]
    %v1128 = vld [vmem:[#allocation8 + $0x20] sm:$0xff]
    %v1129 = vld [vmem:[#allocation8 + $0x28] sm:$0xff]
    %v1130 = vld [vmem:[#allocation8 + $0x30] sm:$0xff]
    %v1131 = vld [vmem:[#allocation8 + $0x38] sm:$0xff]
    %v1132 = vld [vmem:[#allocation8 + $0x40] sm:$0xff]
    %v1133 = vld [vmem:[#allocation8 + $0x48] sm:$0xff]
    %v1134 = vld [vmem:[#allocation8 + $0x50] sm:$0xff]
    %v1135 = vld [vmem:[#allocation8 + $0x58] sm:$0xff]
    %v1136 = vld [vmem:[#allocation8 + $0x60] sm:$0xff]
    %v1137 = vld [vmem:[#allocation8 + $0x68] sm:$0xff]
    %v1138 = vld [vmem:[#allocation8 + $0x70] sm:$0xff]
    %v1139 = vld [vmem:[#allocation8 + $0x78] sm:$0xff]
    %v1140 = vld [vmem:[#allocation8 + $0x80] sm:$0xff]
    %v1141 = vld [vmem:[#allocation8 + $0x88] sm:$0xff]
    %v1142 = vld [vmem:[#allocation8 + $0x90] sm:$0xff]
    %v1143 = vld [vmem:[#allocation8 + $0x98] sm:$0xff]
    %v1144 = vld [vmem:[#allocation8 + $0xa0] sm:$0xff]
    %v1145 = vld [vmem:[#allocation8 + $0xa8] sm:$0xff]
    %v1146 = vld [vmem:[#allocation8 + $0xb0] sm:$0xff]
    %v1147 = vld [vmem:[#allocation8 + $0xb8] sm:$0xff]
    %v1148 = vld [vmem:[#allocation8 + $0xc0] sm:$0xff]
    %v1149 = vld [vmem:[#allocation8 + $0xc8] sm:$0xff]
    %v1150 = vld [vmem:[#allocation8 + $0xd0] sm:$0xff]
    %v1151 = vld [vmem:[#allocation8 + $0xd8] sm:$0xff]
    %v1152 = vld [vmem:[#allocation8 + $0xe0] sm:$0xff]
    %v1153 = vld [vmem:[#allocation8 + $0xe8] sm:$0xff]
    %v1154 = vld [vmem:[#allocation8 + $0xf0] sm:$0xff]
    %v1155 = vld [vmem:[#allocation8 + $0xf8] sm:$0xff]
    %v1156 = vld [vmem:[#allocation7] sm:$0xff]
    %v1157 = vld [vmem:[#allocation7 + $0x8] sm:$0xff]
    %v1158 = vld [vmem:[#allocation7 + $0x10] sm:$0xff]
    %v1159 = vld [vmem:[#allocation7 + $0x18] sm:$0xff]
    %v1160 = vld [vmem:[#allocation7 + $0x20] sm:$0xff]
    %v1161 = vld [vmem:[#allocation7 + $0x28] sm:$0xff]
    %v1162 = vld [vmem:[#allocation7 + $0x30] sm:$0xff]
    %v1163 = vld [vmem:[#allocation7 + $0x38] sm:$0xff]
    %v1164 = vld [vmem:[#allocation7 + $0x40] sm:$0xff]
    %v1165 = vld [vmem:[#allocation7 + $0x48] sm:$0xff]
    %v1166 = vld [vmem:[#allocation7 + $0x50] sm:$0xff]
    %v1167 = vld [vmem:[#allocation7 + $0x58] sm:$0xff]
    %v1168 = vld [vmem:[#allocation7 + $0x60] sm:$0xff]
    %v1169 = vld [vmem:[#allocation7 + $0x68] sm:$0xff]
    %v1170 = vld [vmem:[#allocation7 + $0x70] sm:$0xff]
    %v1171 = vld [vmem:[#allocation7 + $0x78] sm:$0xff]
    %v1172 = vld [vmem:[#allocation7 + $0x80] sm:$0xff]
    %v1173 = vld [vmem:[#allocation7 + $0x88] sm:$0xff]
    %v1174 = vld [vmem:[#allocation7 + $0x90] sm:$0xff]
    %v1175 = vld [vmem:[#allocation7 + $0x98] sm:$0xff]
    %v1176 = vld [vmem:[#allocation7 + $0xa0] sm:$0xff]
    %v1177 = vld [vmem:[#allocation7 + $0xa8] sm:$0xff]
    %v1178 = vld [vmem:[#allocation7 + $0xb0] sm:$0xff]
    %v1179 = vld [vmem:[#allocation7 + $0xb8] sm:$0xff]
    %v1180 = vld [vmem:[#allocation7 + $0xc0] sm:$0xff]
    %v1181 = vld [vmem:[#allocation7 + $0xc8] sm:$0xff]
    %v1182 = vld [vmem:[#allocation7 + $0xd0] sm:$0xff]
    %v1183 = vld [vmem:[#allocation7 + $0xd8] sm:$0xff]
    %v1184 = vld [vmem:[#allocation7 + $0xe0] sm:$0xff]
    %v1185 = vld [vmem:[#allocation7 + $0xe8] sm:$0xff]
    %v1186 = vld [vmem:[#allocation7 + $0xf0] sm:$0xff]
    %v1187 = vld [vmem:[#allocation7 + $0xf8] sm:$0xff]
    %v1188 = vld [vmem:[%s8] sm:$0xf]
    %v1189 = vpack.c.bf16 %v1123, %v1123
    %v1191 = vperm.slane %v1188, 0
    %v1192 = vperm.slane %v1188, 1
    %v1193 = vperm.slane %v1188, 2
    %v1194 = vperm.slane %v1188, 3
    %v1231 = vunpack.c.l.b16 %v1156
    %v1232 = vunpack.c.h.b16 %v1156
    %v1233 = vunpack.c.l.b16 %v1157
    %v1234 = vunpack.c.h.b16 %v1157
    %v1235 = vunpack.c.l.b16 %v1158
    %v1236 = vunpack.c.h.b16 %v1158
    %v1237 = vunpack.c.l.b16 %v1159
    %v1238 = vunpack.c.h.b16 %v1159
    %v1239 = vunpack.c.l.b16 %v1160
    %v1240 = vunpack.c.h.b16 %v1160
    %v1241 = vunpack.c.l.b16 %v1161
    %v1242 = vunpack.c.h.b16 %v1161
    %v1243 = vunpack.c.l.b16 %v1162
    %v1244 = vunpack.c.h.b16 %v1162
    %v1245 = vunpack.c.l.b16 %v1163
    %v1246 = vunpack.c.h.b16 %v1163
    %v1247 = vunpack.c.l.b16 %v1164
    %v1248 = vunpack.c.h.b16 %v1164
    %v1249 = vunpack.c.l.b16 %v1165
    %v1250 = vunpack.c.h.b16 %v1165
    %v1251 = vunpack.c.l.b16 %v1166
    %v1252 = vunpack.c.h.b16 %v1166
    %v1253 = vunpack.c.l.b16 %v1167
    %v1254 = vunpack.c.h.b16 %v1167
    %v1255 = vunpack.c.l.b16 %v1168
    %v1256 = vunpack.c.h.b16 %v1168
    %v1257 = vunpack.c.l.b16 %v1169
    %v1258 = vunpack.c.h.b16 %v1169
    %v1259 = vunpack.c.l.b16 %v1170
    %v1260 = vunpack.c.h.b16 %v1170
    %v1261 = vunpack.c.l.b16 %v1171
    %v1262 = vunpack.c.h.b16 %v1171
    %v1263 = vunpack.c.l.b16 %v1172
    %v1264 = vunpack.c.h.b16 %v1172
    %v1265 = vunpack.c.l.b16 %v1173
    %v1266 = vunpack.c.h.b16 %v1173
    %v1267 = vunpack.c.l.b16 %v1174
    %v1268 = vunpack.c.h.b16 %v1174
    %v1269 = vunpack.c.l.b16 %v1175
    %v1270 = vunpack.c.h.b16 %v1175
    %v1271 = vunpack.c.l.b16 %v1176
    %v1272 = vunpack.c.h.b16 %v1176
    %v1273 = vunpack.c.l.b16 %v1177
    %v1274 = vunpack.c.h.b16 %v1177
    %v1275 = vunpack.c.l.b16 %v1178
    %v1276 = vunpack.c.h.b16 %v1178
    %v1277 = vunpack.c.l.b16 %v1179
    %v1278 = vunpack.c.h.b16 %v1179
    %v1279 = vunpack.c.l.b16 %v1180
    %v1280 = vunpack.c.h.b16 %v1180
    %v1281 = vunpack.c.l.b16 %v1181
    %v1282 = vunpack.c.h.b16 %v1181
    %v1283 = vunpack.c.l.b16 %v1182
    %v1284 = vunpack.c.h.b16 %v1182
    %v1285 = vunpack.c.l.b16 %v1183
    %v1286 = vunpack.c.h.b16 %v1183
    %v1287 = vunpack.c.l.b16 %v1184
    %v1288 = vunpack.c.h.b16 %v1184
    %v1289 = vunpack.c.l.b16 %v1185
    %v1290 = vunpack.c.h.b16 %v1185
    %v1291 = vunpack.c.l.b16 %v1186
    %v1292 = vunpack.c.h.b16 %v1186
    %v1293 = vunpack.c.l.b16 %v1187
    %v1294 = vunpack.c.h.b16 %v1187
    %v1295 = vpack.c.b16 %v1235, %v1231
    %v1296 = vpack.c.b16 %v1236, %v1232
    %v1297 = vpack.c.b16 %v1237, %v1233
    %v1298 = vpack.c.b16 %v1238, %v1234
    %v1299 = vpack.c.b16 %v1243, %v1239
    %v1300 = vpack.c.b16 %v1244, %v1240
    %v1301 = vpack.c.b16 %v1245, %v1241
    %v1302 = vpack.c.b16 %v1246, %v1242
    %v1303 = vpack.c.b16 %v1251, %v1247
    %v1304 = vpack.c.b16 %v1252, %v1248
    %v1305 = vpack.c.b16 %v1253, %v1249
    %v1306 = vpack.c.b16 %v1254, %v1250
    %v1307 = vpack.c.b16 %v1259, %v1255
    %v1308 = vpack.c.b16 %v1260, %v1256
    %v1309 = vpack.c.b16 %v1261, %v1257
    %v1310 = vpack.c.b16 %v1262, %v1258
    %v1311 = vpack.c.b16 %v1267, %v1263
    %v1312 = vpack.c.b16 %v1268, %v1264
    %v1313 = vpack.c.b16 %v1269, %v1265
    %v1314 = vpack.c.b16 %v1270, %v1266
    %v1315 = vpack.c.b16 %v1275, %v1271
    %v1316 = vpack.c.b16 %v1276, %v1272
    %v1317 = vpack.c.b16 %v1277, %v1273
    %v1318 = vpack.c.b16 %v1278, %v1274
    %v1319 = vpack.c.b16 %v1283, %v1279
    %v1320 = vpack.c.b16 %v1284, %v1280
    %v1321 = vpack.c.b16 %v1285, %v1281
    %v1322 = vpack.c.b16 %v1286, %v1282
    %v1323 = vpack.c.b16 %v1291, %v1287
    %v1324 = vpack.c.b16 %v1292, %v1288
    %v1325 = vpack.c.b16 %v1293, %v1289
    %v1326 = vpack.c.b16 %v1294, %v1290
    %1359 = vmatpush.bf16.msra.mxu0 %v1323
    %1360 = vmatpush.bf16.msra.mxu0 %v1319
    %1361 = vmatpush.bf16.msra.mxu0 %v1315
    %1362 = vmatpush.bf16.msra.mxu0 %v1311
    %1363 = vmatpush.bf16.msra.mxu0 %v1307
    %1364 = vmatpush.bf16.msra.mxu0 %v1303
    %1365 = vmatpush.bf16.msra.mxu0 %v1299
    %1366 = vmatpush.bf16.msra.mxu0 %v1295
    %1367 = vmatmul.bf16.gmra.mxu0 %v1189
    %v1368 = vpop.f32.mrf.mxu0
    %v1369 = vadd.f32 %v1191, %v1368
    %v1370 = vpop.f32.mrf.mxu0
    %1371 = vdwg.mxu0
    %1372 = vmatpush.bf16.msra.mxu0 %v1324
    %1373 = vmatpush.bf16.msra.mxu0 %v1320
    %1374 = vmatpush.bf16.msra.mxu0 %v1316
    %1375 = vmatpush.bf16.msra.mxu0 %v1312
    %1376 = vmatpush.bf16.msra.mxu0 %v1308
    %1377 = vmatpush.bf16.msra.mxu0 %v1304
    %1378 = vmatpush.bf16.msra.mxu0 %v1300
    %1379 = vmatpush.bf16.msra.mxu0 %v1296
    %1380 = vmatmul.bf16.gmra.mxu0 %v1189
    %v1381 = vpop.f32.mrf.mxu0
    %v1382 = vadd.f32 %v1192, %v1381
    %v1383 = vpop.f32.mrf.mxu0
    %1384 = vdwg.mxu0
    %1385 = vmatpush.bf16.msra.mxu0 %v1325
    %1386 = vmatpush.bf16.msra.mxu0 %v1321
    %1387 = vmatpush.bf16.msra.mxu0 %v1317
    %1388 = vmatpush.bf16.msra.mxu0 %v1313
    %1389 = vmatpush.bf16.msra.mxu0 %v1309
    %1390 = vmatpush.bf16.msra.mxu0 %v1305
    %1391 = vmatpush.bf16.msra.mxu0 %v1301
    %1392 = vmatpush.bf16.msra.mxu0 %v1297
    %1393 = vmatmul.bf16.gmra.mxu0 %v1189
    %v1394 = vpop.f32.mrf.mxu0
    %v1395 = vadd.f32 %v1193, %v1394
    %v1396 = vpop.f32.mrf.mxu0
    %1397 = vdwg.mxu0
    %1398 = vmatpush.bf16.msra.mxu0 %v1326
    %1399 = vmatpush.bf16.msra.mxu0 %v1322
    %1400 = vmatpush.bf16.msra.mxu0 %v1318
    %1401 = vmatpush.bf16.msra.mxu0 %v1314
    %1402 = vmatpush.bf16.msra.mxu0 %v1310
    %1403 = vmatpush.bf16.msra.mxu0 %v1306
    %1404 = vmatpush.bf16.msra.mxu0 %v1302
    %1405 = vmatpush.bf16.msra.mxu0 %v1298
    %1406 = vmatmul.bf16.gmra.mxu0 %v1189
    %v1407 = vpop.f32.mrf.mxu0
    %v1408 = vadd.f32 %v1194, %v1407
    %v1409 = vpop.f32.mrf.mxu0
    %1410 = vdwg.mxu0
    %v1443 = vunpack.c.l.b16 %v1124
    %v1444 = vunpack.c.h.b16 %v1124
    %v1445 = vunpack.c.l.b16 %v1125
    %v1446 = vunpack.c.h.b16 %v1125
    %v1447 = vunpack.c.l.b16 %v1126
    %v1448 = vunpack.c.h.b16 %v1126
    %v1449 = vunpack.c.l.b16 %v1127
    %v1450 = vunpack.c.h.b16 %v1127
    %v1451 = vunpack.c.l.b16 %v1128
    %v1452 = vunpack.c.h.b16 %v1128
    %v1453 = vunpack.c.l.b16 %v1129
    %v1454 = vunpack.c.h.b16 %v1129
    %v1455 = vunpack.c.l.b16 %v1130
    %v1456 = vunpack.c.h.b16 %v1130
    %v1457 = vunpack.c.l.b16 %v1131
    %v1458 = vunpack.c.h.b16 %v1131
    %v1459 = vunpack.c.l.b16 %v1132
    %v1460 = vunpack.c.h.b16 %v1132
    %v1461 = vunpack.c.l.b16 %v1133
    %v1462 = vunpack.c.h.b16 %v1133
    %v1463 = vunpack.c.l.b16 %v1134
    %v1464 = vunpack.c.h.b16 %v1134
    %v1465 = vunpack.c.l.b16 %v1135
    %v1466 = vunpack.c.h.b16 %v1135
    %v1467 = vunpack.c.l.b16 %v1136
    %v1468 = vunpack.c.h.b16 %v1136
    %v1469 = vunpack.c.l.b16 %v1137
    %v1470 = vunpack.c.h.b16 %v1137
    %v1471 = vunpack.c.l.b16 %v1138
    %v1472 = vunpack.c.h.b16 %v1138
    %v1473 = vunpack.c.l.b16 %v1139
    %v1474 = vunpack.c.h.b16 %v1139
    %v1475 = vunpack.c.l.b16 %v1140
    %v1476 = vunpack.c.h.b16 %v1140
    %v1477 = vunpack.c.l.b16 %v1141
    %v1478 = vunpack.c.h.b16 %v1141
    %v1479 = vunpack.c.l.b16 %v1142
    %v1480 = vunpack.c.h.b16 %v1142
    %v1481 = vunpack.c.l.b16 %v1143
    %v1482 = vunpack.c.h.b16 %v1143
    %v1483 = vunpack.c.l.b16 %v1144
    %v1484 = vunpack.c.h.b16 %v1144
    %v1485 = vunpack.c.l.b16 %v1145
    %v1486 = vunpack.c.h.b16 %v1145
    %v1487 = vunpack.c.l.b16 %v1146
    %v1488 = vunpack.c.h.b16 %v1146
    %v1489 = vunpack.c.l.b16 %v1147
    %v1490 = vunpack.c.h.b16 %v1147
    %v1491 = vunpack.c.l.b16 %v1148
    %v1492 = vunpack.c.h.b16 %v1148
    %v1493 = vunpack.c.l.b16 %v1149
    %v1494 = vunpack.c.h.b16 %v1149
    %v1495 = vunpack.c.l.b16 %v1150
    %v1496 = vunpack.c.h.b16 %v1150
    %v1497 = vunpack.c.l.b16 %v1151
    %v1498 = vunpack.c.h.b16 %v1151
    %v1499 = vunpack.c.l.b16 %v1152
    %v1500 = vunpack.c.h.b16 %v1152
    %v1501 = vunpack.c.l.b16 %v1153
    %v1502 = vunpack.c.h.b16 %v1153
    %v1503 = vunpack.c.l.b16 %v1154
    %v1504 = vunpack.c.h.b16 %v1154
    %v1505 = vunpack.c.l.b16 %v1155
    %v1506 = vunpack.c.h.b16 %v1155
    %v1507 = vpack.c.b16 %v1447, %v1443
    %v1508 = vpack.c.b16 %v1448, %v1444
    %v1509 = vpack.c.b16 %v1449, %v1445
    %v1510 = vpack.c.b16 %v1450, %v1446
    %v1511 = vpack.c.b16 %v1455, %v1451
    %v1512 = vpack.c.b16 %v1456, %v1452
    %v1513 = vpack.c.b16 %v1457, %v1453
    %v1514 = vpack.c.b16 %v1458, %v1454
    %v1515 = vpack.c.b16 %v1463, %v1459
    %v1516 = vpack.c.b16 %v1464, %v1460
    %v1517 = vpack.c.b16 %v1465, %v1461
    %v1518 = vpack.c.b16 %v1466, %v1462
    %v1519 = vpack.c.b16 %v1471, %v1467
    %v1520 = vpack.c.b16 %v1472, %v1468
    %v1521 = vpack.c.b16 %v1473, %v1469
    %v1522 = vpack.c.b16 %v1474, %v1470
    %v1523 = vpack.c.b16 %v1479, %v1475
    %v1524 = vpack.c.b16 %v1480, %v1476
    %v1525 = vpack.c.b16 %v1481, %v1477
    %v1526 = vpack.c.b16 %v1482, %v1478
    %v1527 = vpack.c.b16 %v1487, %v1483
    %v1528 = vpack.c.b16 %v1488, %v1484
    %v1529 = vpack.c.b16 %v1489, %v1485
    %v1530 = vpack.c.b16 %v1490, %v1486
    %v1531 = vpack.c.b16 %v1495, %v1491
    %v1532 = vpack.c.b16 %v1496, %v1492
    %v1533 = vpack.c.b16 %v1497, %v1493
    %v1534 = vpack.c.b16 %v1498, %v1494
    %v1535 = vpack.c.b16 %v1503, %v1499
    %v1536 = vpack.c.b16 %v1504, %v1500
    %v1537 = vpack.c.b16 %v1505, %v1501
    %v1538 = vpack.c.b16 %v1506, %v1502
    %1571 = vmatpush.bf16.msra.mxu0 %v1535
    %1572 = vmatpush.bf16.msra.mxu0 %v1531
    %1573 = vmatpush.bf16.msra.mxu0 %v1527
    %1574 = vmatpush.bf16.msra.mxu0 %v1523
    %1575 = vmatpush.bf16.msra.mxu0 %v1519
    %1576 = vmatpush.bf16.msra.mxu0 %v1515
    %1577 = vmatpush.bf16.msra.mxu0 %v1511
    %1578 = vmatpush.bf16.msra.mxu0 %v1507
    %1579 = vmatmul.bf16.gmra.mxu0 0
    %v1580 = vpop.f32.mrf.mxu0
    %v1581 = vadd.f32 0.0, %v1580
    %v1582 = vpop.f32.mrf.mxu0
    %1583 = vdwg.mxu0
    %1584 = vmatpush.bf16.msra.mxu0 %v1536
    %1585 = vmatpush.bf16.msra.mxu0 %v1532
    %1586 = vmatpush.bf16.msra.mxu0 %v1528
    %1587 = vmatpush.bf16.msra.mxu0 %v1524
    %1588 = vmatpush.bf16.msra.mxu0 %v1520
    %1589 = vmatpush.bf16.msra.mxu0 %v1516
    %1590 = vmatpush.bf16.msra.mxu0 %v1512
    %1591 = vmatpush.bf16.msra.mxu0 %v1508
    %1592 = vmatmul.bf16.gmra.mxu0 0
    %v1593 = vpop.f32.mrf.mxu0
    %v1594 = vadd.f32 0.0, %v1593
    %v1595 = vpop.f32.mrf.mxu0
    %1596 = vdwg.mxu0
    %1597 = vmatpush.bf16.msra.mxu0 %v1537
    %1598 = vmatpush.bf16.msra.mxu0 %v1533
    %1599 = vmatpush.bf16.msra.mxu0 %v1529
    %1600 = vmatpush.bf16.msra.mxu0 %v1525
    %1601 = vmatpush.bf16.msra.mxu0 %v1521
    %1602 = vmatpush.bf16.msra.mxu0 %v1517
    %1603 = vmatpush.bf16.msra.mxu0 %v1513
    %1604 = vmatpush.bf16.msra.mxu0 %v1509
    %1605 = vmatmul.bf16.gmra.mxu0 0
    %v1606 = vpop.f32.mrf.mxu0
    %v1607 = vadd.f32 0.0, %v1606
    %v1608 = vpop.f32.mrf.mxu0
    %1609 = vdwg.mxu0
    %1610 = vmatpush.bf16.msra.mxu0 %v1538
    %1611 = vmatpush.bf16.msra.mxu0 %v1534
    %1612 = vmatpush.bf16.msra.mxu0 %v1530
    %1613 = vmatpush.bf16.msra.mxu0 %v1526
    %1614 = vmatpush.bf16.msra.mxu0 %v1522
    %1615 = vmatpush.bf16.msra.mxu0 %v1518
    %1616 = vmatpush.bf16.msra.mxu0 %v1514
    %1617 = vmatpush.bf16.msra.mxu0 %v1510
    %1618 = vmatmul.bf16.gmra.mxu0 0
    %v1619 = vpop.f32.mrf.mxu0
    %v1620 = vadd.f32 0.0, %v1619
    %v1621 = vpop.f32.mrf.mxu0
    %1622 = vdwg.mxu0
    %v1623 = vadd.f32 %v1369, %v1581
    %v1624 = vadd.f32 %v1382, %v1594
    %v1625 = vadd.f32 %v1395, %v1607
    %v1626 = vadd.f32 %v1408, %v1620
    %v1627 = vxor.u32 %v1623, 2147483648
    %v1628 = vmul.f32 %v1627, 1.442695
    %v1629 = vpow.pop %v1628
    %v1630 = vadd.f32 %v1629, 1.0
    %v1631 = vrcp.pop %v1630
    %v1632 = vmul.f32 %v1630, %v1631
    %v1633 = vsub.f32 1.0, %v1632
    %v1634 = vmul.f32 %v1631, %v1633
    %v1635 = vadd.f32 %v1631, %v1634
    %vm1636 = vweird.f32 %v1630
    %vm1637 = vweird.f32 %v1631
    %vm1638 = vmor %vm1636, %vm1637
    %v1639 = vsel %vm1638, %v1631, %v1635
    %v1640 = vand.u32 2147483647, %v1630
    %vm1641 = vcmp.eq.f32.partialorder %v1640, 8.507059e+37
    %v1642 = vand.u32 %v1630, 2147483648
    %v1643 = vor.u32 1.1754944e-38, %v1642
    %v1644 = vsel %vm1641, %v1643, %v1639
    %v1645 = vmul.f32 1.0, %v1644
    %v1646 = vxor.u32 %v1624, 2147483648
    %v1647 = vmul.f32 %v1646, 1.442695
    %v1648 = vpow.pop %v1647
    %v1649 = vadd.f32 %v1648, 1.0
    %v1650 = vrcp.pop %v1649
    %v1651 = vmul.f32 %v1649, %v1650
    %v1652 = vsub.f32 1.0, %v1651
    %v1653 = vmul.f32 %v1650, %v1652
    %v1654 = vadd.f32 %v1650, %v1653
    %vm1655 = vweird.f32 %v1649
    %vm1656 = vweird.f32 %v1650
    %vm1657 = vmor %vm1655, %vm1656
    %v1658 = vsel %vm1657, %v1650, %v1654
    %v1659 = vand.u32 2147483647, %v1649
    %vm1660 = vcmp.eq.f32.partialorder %v1659, 8.507059e+37
    %v1661 = vand.u32 %v1649, 2147483648
    %v1662 = vor.u32 1.1754944e-38, %v1661
    %v1663 = vsel %vm1660, %v1662, %v1658
    %v1664 = vmul.f32 1.0, %v1663
    %v1665 = vtanh.pop %v1625
    %v1666 = vxor.u32 %v1626, 2147483648
    %v1667 = vmul.f32 %v1666, 1.442695
    %v1668 = vpow.pop %v1667
    %v1669 = vadd.f32 %v1668, 1.0
    %v1670 = vrcp.pop %v1669
    %v1671 = vmul.f32 %v1669, %v1670
    %v1672 = vsub.f32 1.0, %v1671
    %v1673 = vmul.f32 %v1670, %v1672
    %v1674 = vadd.f32 %v1670, %v1673
    %vm1675 = vweird.f32 %v1669
    %vm1676 = vweird.f32 %v1670
    %vm1677 = vmor %vm1675, %vm1676
    %v1678 = vsel %vm1677, %v1670, %v1674
    %v1679 = vand.u32 2147483647, %v1669
    %vm1680 = vcmp.eq.f32.partialorder %v1679, 8.507059e+37
    %v1681 = vand.u32 %v1669, 2147483648
    %v1682 = vor.u32 1.1754944e-38, %v1681
    %v1683 = vsel %vm1680, %v1682, %v1678
    %v1684 = vmul.f32 1.0, %v1683
    %v1685 = vmul.f32 %v1664, 0.0
    %v1686 = vmul.f32 %v1645, %v1665
    %v1687 = vadd.f32 %v1685, %v1686
    %v1688 = vtanh.pop %v1687
    %v1689 = vmul.f32 %v1684, %v1688
    %v1690 = vld [vmem:[#allocation2 + $0x20] sm:$0xff]
    %v1691 = vld [vmem:[#allocation2 + $0x28] sm:$0xff]
    %v1692 = vld [vmem:[#allocation2 + $0x30] sm:$0xff]
    %v1693 = vld [vmem:[#allocation2 + $0x38] sm:$0xff]
    %1694 = vmatpush.bf16.msra.mxu0 %v969
    %1695 = vmatpush.bf16.msra.mxu0 %v965
    %1696 = vmatpush.bf16.msra.mxu0 %v961
    %1697 = vmatpush.bf16.msra.mxu0 %v957
    %1698 = vmatpush.bf16.msra.mxu0 %v953
    %1699 = vmatpush.bf16.msra.mxu0 %v949
    %1700 = vmatpush.bf16.msra.mxu0 %v945
    %1701 = vmatpush.bf16.msra.mxu0 %v941
    %1702 = vmatmul.bf16.gmra.mxu0 %v1189
    %v1703 = vpop.f32.mrf.mxu0
    %v1704 = vadd.f32 0.0, %v1703
    %v1705 = vpop.f32.mrf.mxu0
    %1706 = vdwg.mxu0
    %1707 = vmatpush.bf16.msra.mxu0 %v970
    %1708 = vmatpush.bf16.msra.mxu0 %v966
    %1709 = vmatpush.bf16.msra.mxu0 %v962
    %1710 = vmatpush.bf16.msra.mxu0 %v958
    %1711 = vmatpush.bf16.msra.mxu0 %v954
    %1712 = vmatpush.bf16.msra.mxu0 %v950
    %1713 = vmatpush.bf16.msra.mxu0 %v946
    %1714 = vmatpush.bf16.msra.mxu0 %v942
    %1715 = vmatmul.bf16.gmra.mxu0 %v1189
    %v1716 = vpop.f32.mrf.mxu0
    %v1717 = vadd.f32 0.0, %v1716
    %v1718 = vpop.f32.mrf.mxu0
    %1719 = vdwg.mxu0
    %1720 = vmatpush.bf16.msra.mxu0 %v971
    %1721 = vmatpush.bf16.msra.mxu0 %v967
    %1722 = vmatpush.bf16.msra.mxu0 %v963
    %1723 = vmatpush.bf16.msra.mxu0 %v959
    %1724 = vmatpush.bf16.msra.mxu0 %v955
    %1725 = vmatpush.bf16.msra.mxu0 %v951
    %1726 = vmatpush.bf16.msra.mxu0 %v947
    %1727 = vmatpush.bf16.msra.mxu0 %v943
    %1728 = vmatmul.bf16.gmra.mxu0 %v1189
    %v1729 = vpop.f32.mrf.mxu0
    %v1730 = vadd.f32 0.0, %v1729
    %v1731 = vpop.f32.mrf.mxu0
    %1732 = vdwg.mxu0
    %1733 = vmatpush.bf16.msra.mxu0 %v972
    %1734 = vmatpush.bf16.msra.mxu0 %v968
    %1735 = vmatpush.bf16.msra.mxu0 %v964
    %1736 = vmatpush.bf16.msra.mxu0 %v960
    %1737 = vmatpush.bf16.msra.mxu0 %v956
    %1738 = vmatpush.bf16.msra.mxu0 %v952
    %1739 = vmatpush.bf16.msra.mxu0 %v948
    %1740 = vmatpush.bf16.msra.mxu0 %v944
    %1741 = vmatmul.bf16.gmra.mxu0 %v1189
    %v1742 = vpop.f32.mrf.mxu0
    %v1743 = vadd.f32 0.0, %v1742
    %v1744 = vpop.f32.mrf.mxu0
    %1745 = vdwg.mxu0
    %v1746 = vadd.f32 %v1690, %v1704
    %v1747 = vadd.f32 %v1691, %v1717
    %v1748 = vadd.f32 %v1692, %v1730
    %v1749 = vadd.f32 %v1693, %v1743
    %v1750 = vxor.u32 %v1746, 2147483648
    %v1751 = vmul.f32 %v1750, 1.442695
    %v1752 = vpow.pop %v1751
    %v1753 = vadd.f32 %v1752, 1.0
    %v1754 = vrcp.pop %v1753
    %v1755 = vmul.f32 %v1753, %v1754
    %v1756 = vsub.f32 1.0, %v1755
    %v1757 = vmul.f32 %v1754, %v1756
    %v1758 = vadd.f32 %v1754, %v1757
    %vm1759 = vweird.f32 %v1753
    %vm1760 = vweird.f32 %v1754
    %vm1761 = vmor %vm1759, %vm1760
    %v1762 = vsel %vm1761, %v1754, %v1758
    %v1763 = vand.u32 2147483647, %v1753
    %vm1764 = vcmp.eq.f32.partialorder %v1763, 8.507059e+37
    %v1765 = vand.u32 %v1753, 2147483648
    %v1766 = vor.u32 1.1754944e-38, %v1765
    %v1767 = vsel %vm1764, %v1766, %v1762
    %v1768 = vmul.f32 1.0, %v1767
    %v1769 = vxor.u32 %v1747, 2147483648
    %v1770 = vmul.f32 %v1769, 1.442695
    %v1771 = vpow.pop %v1770
    %v1772 = vadd.f32 %v1771, 1.0
    %v1773 = vrcp.pop %v1772
    %v1774 = vmul.f32 %v1772, %v1773
    %v1775 = vsub.f32 1.0, %v1774
    %v1776 = vmul.f32 %v1773, %v1775
    %v1777 = vadd.f32 %v1773, %v1776
    %vm1778 = vweird.f32 %v1772
    %vm1779 = vweird.f32 %v1773
    %vm1780 = vmor %vm1778, %vm1779
    %v1781 = vsel %vm1780, %v1773, %v1777
    %v1782 = vand.u32 2147483647, %v1772
    %vm1783 = vcmp.eq.f32.partialorder %v1782, 8.507059e+37
    %v1784 = vand.u32 %v1772, 2147483648
    %v1785 = vor.u32 1.1754944e-38, %v1784
    %v1786 = vsel %vm1783, %v1785, %v1781
    %v1787 = vmul.f32 1.0, %v1786
    %v1788 = vtanh.pop %v1748
    %v1789 = vxor.u32 %v1749, 2147483648
    %v1790 = vmul.f32 %v1789, 1.442695
    %v1791 = vpow.pop %v1790
    %v1792 = vadd.f32 %v1791, 1.0
    %v1793 = vrcp.pop %v1792
    %v1794 = vmul.f32 %v1792, %v1793
    %v1795 = vsub.f32 1.0, %v1794
    %v1796 = vmul.f32 %v1793, %v1795
    %v1797 = vadd.f32 %v1793, %v1796
    %vm1798 = vweird.f32 %v1792
    %vm1799 = vweird.f32 %v1793
    %vm1800 = vmor %vm1798, %vm1799
    %v1801 = vsel %vm1800, %v1793, %v1797
    %v1802 = vand.u32 2147483647, %v1792
    %vm1803 = vcmp.eq.f32.partialorder %v1802, 8.507059e+37
    %v1804 = vand.u32 %v1792, 2147483648
    %v1805 = vor.u32 1.1754944e-38, %v1804
    %v1806 = vsel %vm1803, %v1805, %v1801
    %v1807 = vmul.f32 1.0, %v1806
    %v1808 = vmul.f32 %v1787, %v1121
    %v1809 = vmul.f32 %v1768, %v1788
    %v1810 = vadd.f32 %v1808, %v1809
    %v1811 = vtanh.pop %v1810
    %v1812 = vmul.f32 %v1807, %v1811
    %v1813 = vpack.c.bf16 %v1812, %v1812
    %1814 = vmatpush.bf16.msra.mxu0 %v1323
    %1815 = vmatpush.bf16.msra.mxu0 %v1319
    %1816 = vmatpush.bf16.msra.mxu0 %v1315
    %1817 = vmatpush.bf16.msra.mxu0 %v1311
    %1818 = vmatpush.bf16.msra.mxu0 %v1307
    %1819 = vmatpush.bf16.msra.mxu0 %v1303
    %1820 = vmatpush.bf16.msra.mxu0 %v1299
    %1821 = vmatpush.bf16.msra.mxu0 %v1295
    %1822 = vmatmul.bf16.gmra.mxu0 %v1813
    %v1823 = vpop.f32.mrf.mxu0
    %v1824 = vadd.f32 %v1191, %v1823
    %v1825 = vpop.f32.mrf.mxu0
    %1826 = vdwg.mxu0
    %1827 = vmatpush.bf16.msra.mxu0 %v1324
    %1828 = vmatpush.bf16.msra.mxu0 %v1320
    %1829 = vmatpush.bf16.msra.mxu0 %v1316
    %1830 = vmatpush.bf16.msra.mxu0 %v1312
    %1831 = vmatpush.bf16.msra.mxu0 %v1308
    %1832 = vmatpush.bf16.msra.mxu0 %v1304
    %1833 = vmatpush.bf16.msra.mxu0 %v1300
    %1834 = vmatpush.bf16.msra.mxu0 %v1296
    %1835 = vmatmul.bf16.gmra.mxu0 %v1813
    %v1836 = vpop.f32.mrf.mxu0
    %v1837 = vadd.f32 %v1192, %v1836
    %v1838 = vpop.f32.mrf.mxu0
    %1839 = vdwg.mxu0
    %1840 = vmatpush.bf16.msra.mxu0 %v1325
    %1841 = vmatpush.bf16.msra.mxu0 %v1321
    %1842 = vmatpush.bf16.msra.mxu0 %v1317
    %1843 = vmatpush.bf16.msra.mxu0 %v1313
    %1844 = vmatpush.bf16.msra.mxu0 %v1309
    %1845 = vmatpush.bf16.msra.mxu0 %v1305
    %1846 = vmatpush.bf16.msra.mxu0 %v1301
    %1847 = vmatpush.bf16.msra.mxu0 %v1297
    %1848 = vmatmul.bf16.gmra.mxu0 %v1813
    %v1849 = vpop.f32.mrf.mxu0
    %v1850 = vadd.f32 %v1193, %v1849
    %v1851 = vpop.f32.mrf.mxu0
    %1852 = vdwg.mxu0
    %1853 = vmatpush.bf16.msra.mxu0 %v1326
    %1854 = vmatpush.bf16.msra.mxu0 %v1322
    %1855 = vmatpush.bf16.msra.mxu0 %v1318
    %1856 = vmatpush.bf16.msra.mxu0 %v1314
    %1857 = vmatpush.bf16.msra.mxu0 %v1310
    %1858 = vmatpush.bf16.msra.mxu0 %v1306
    %1859 = vmatpush.bf16.msra.mxu0 %v1302
    %1860 = vmatpush.bf16.msra.mxu0 %v1298
    %1861 = vmatmul.bf16.gmra.mxu0 %v1813
    %v1862 = vpop.f32.mrf.mxu0
    %v1863 = vadd.f32 %v1194, %v1862
    %v1864 = vpop.f32.mrf.mxu0
    %1865 = vdwg.mxu0
    %v1866 = vpack.c.bf16 %v1689, %v1689
    %1867 = vmatpush.bf16.msra.mxu0 %v1535
    %1868 = vmatpush.bf16.msra.mxu0 %v1531
    %1869 = vmatpush.bf16.msra.mxu0 %v1527
    %1870 = vmatpush.bf16.msra.mxu0 %v1523
    %1871 = vmatpush.bf16.msra.mxu0 %v1519
    %1872 = vmatpush.bf16.msra.mxu0 %v1515
    %1873 = vmatpush.bf16.msra.mxu0 %v1511
    %1874 = vmatpush.bf16.msra.mxu0 %v1507
    %1875 = vmatmul.bf16.gmra.mxu0 %v1866
    %v1876 = vpop.f32.mrf.mxu0
    %v1877 = vadd.f32 0.0, %v1876
    %v1878 = vpop.f32.mrf.mxu0
    %1879 = vdwg.mxu0
    %1880 = vmatpush.bf16.msra.mxu0 %v1536
    %1881 = vmatpush.bf16.msra.mxu0 %v1532
    %1882 = vmatpush.bf16.msra.mxu0 %v1528
    %1883 = vmatpush.bf16.msra.mxu0 %v1524
    %1884 = vmatpush.bf16.msra.mxu0 %v1520
    %1885 = vmatpush.bf16.msra.mxu0 %v1516
    %1886 = vmatpush.bf16.msra.mxu0 %v1512
    %1887 = vmatpush.bf16.msra.mxu0 %v1508
    %1888 = vmatmul.bf16.gmra.mxu0 %v1866
    %v1889 = vpop.f32.mrf.mxu0
    %v1890 = vadd.f32 0.0, %v1889
    %v1891 = vpop.f32.mrf.mxu0
    %1892 = vdwg.mxu0
    %1893 = vmatpush.bf16.msra.mxu0 %v1537
    %1894 = vmatpush.bf16.msra.mxu0 %v1533
    %1895 = vmatpush.bf16.msra.mxu0 %v1529
    %1896 = vmatpush.bf16.msra.mxu0 %v1525
    %1897 = vmatpush.bf16.msra.mxu0 %v1521
    %1898 = vmatpush.bf16.msra.mxu0 %v1517
    %1899 = vmatpush.bf16.msra.mxu0 %v1513
    %1900 = vmatpush.bf16.msra.mxu0 %v1509
    %1901 = vmatmul.bf16.gmra.mxu0 %v1866
    %v1902 = vpop.f32.mrf.mxu0
    %v1903 = vadd.f32 0.0, %v1902
    %v1904 = vpop.f32.mrf.mxu0
    %1905 = vdwg.mxu0
    %1906 = vmatpush.bf16.msra.mxu0 %v1538
    %1907 = vmatpush.bf16.msra.mxu0 %v1534
    %1908 = vmatpush.bf16.msra.mxu0 %v1530
    %1909 = vmatpush.bf16.msra.mxu0 %v1526
    %1910 = vmatpush.bf16.msra.mxu0 %v1522
    %1911 = vmatpush.bf16.msra.mxu0 %v1518
    %1912 = vmatpush.bf16.msra.mxu0 %v1514
    %1913 = vmatpush.bf16.msra.mxu0 %v1510
    %1914 = vmatmul.bf16.gmra.mxu0 %v1866
    %v1915 = vpop.f32.mrf.mxu0
    %v1916 = vadd.f32 0.0, %v1915
    %v1917 = vpop.f32.mrf.mxu0
    %1918 = vdwg.mxu0
    %v1919 = vadd.f32 %v1824, %v1877
    %v1920 = vadd.f32 %v1837, %v1890
    %v1921 = vadd.f32 %v1850, %v1903
    %v1922 = vadd.f32 %v1863, %v1916
    %v1923 = vxor.u32 %v1919, 2147483648
    %v1924 = vmul.f32 %v1923, 1.442695
    %v1925 = vpow.pop %v1924
    %v1926 = vadd.f32 %v1925, 1.0
    %v1927 = vrcp.pop %v1926
    %v1928 = vmul.f32 %v1926, %v1927
    %v1929 = vsub.f32 1.0, %v1928
    %v1930 = vmul.f32 %v1927, %v1929
    %v1931 = vadd.f32 %v1927, %v1930
    %vm1932 = vweird.f32 %v1926
    %vm1933 = vweird.f32 %v1927
    %vm1934 = vmor %vm1932, %vm1933
    %v1935 = vsel %vm1934, %v1927, %v1931
    %v1936 = vand.u32 2147483647, %v1926
    %vm1937 = vcmp.eq.f32.partialorder %v1936, 8.507059e+37
    %v1938 = vand.u32 %v1926, 2147483648
    %v1939 = vor.u32 1.1754944e-38, %v1938
    %v1940 = vsel %vm1937, %v1939, %v1935
    %v1941 = vmul.f32 1.0, %v1940
    %v1942 = vxor.u32 %v1920, 2147483648
    %v1943 = vmul.f32 %v1942, 1.442695
    %v1944 = vpow.pop %v1943
    %v1945 = vadd.f32 %v1944, 1.0
    %v1946 = vrcp.pop %v1945
    %v1947 = vmul.f32 %v1945, %v1946
    %v1948 = vsub.f32 1.0, %v1947
    %v1949 = vmul.f32 %v1946, %v1948
    %v1950 = vadd.f32 %v1946, %v1949
    %vm1951 = vweird.f32 %v1945
    %vm1952 = vweird.f32 %v1946
    %vm1953 = vmor %vm1951, %vm1952
    %v1954 = vsel %vm1953, %v1946, %v1950
    %v1955 = vand.u32 2147483647, %v1945
    %vm1956 = vcmp.eq.f32.partialorder %v1955, 8.507059e+37
    %v1957 = vand.u32 %v1945, 2147483648
    %v1958 = vor.u32 1.1754944e-38, %v1957
    %v1959 = vsel %vm1956, %v1958, %v1954
    %v1960 = vmul.f32 1.0, %v1959
    %v1961 = vtanh.pop %v1921
    %v1962 = vxor.u32 %v1922, 2147483648
    %v1963 = vmul.f32 %v1962, 1.442695
    %v1964 = vpow.pop %v1963
    %v1965 = vadd.f32 %v1964, 1.0
    %v1966 = vrcp.pop %v1965
    %v1967 = vmul.f32 %v1965, %v1966
    %v1968 = vsub.f32 1.0, %v1967
    %v1969 = vmul.f32 %v1966, %v1968
    %v1970 = vadd.f32 %v1966, %v1969
    %vm1971 = vweird.f32 %v1965
    %vm1972 = vweird.f32 %v1966
    %vm1973 = vmor %vm1971, %vm1972
    %v1974 = vsel %vm1973, %v1966, %v1970
    %v1975 = vand.u32 2147483647, %v1965
    %vm1976 = vcmp.eq.f32.partialorder %v1975, 8.507059e+37
    %v1977 = vand.u32 %v1965, 2147483648
    %v1978 = vor.u32 1.1754944e-38, %v1977
    %v1979 = vsel %vm1976, %v1978, %v1974
    %v1980 = vmul.f32 1.0, %v1979
    %v1981 = vmul.f32 %v1960, %v1687
    %v1982 = vmul.f32 %v1941, %v1961
    %v1983 = vadd.f32 %v1981, %v1982
    %v1984 = vtanh.pop %v1983
    %v1985 = vmul.f32 %v1980, %v1984
    %v1986 = vld [vmem:[#allocation2 + $0x40] sm:$0xff]
    %v1987 = vld [vmem:[#allocation2 + $0x48] sm:$0xff]
    %v1988 = vld [vmem:[#allocation2 + $0x50] sm:$0xff]
    %v1989 = vld [vmem:[#allocation2 + $0x58] sm:$0xff]
    %1990 = vmatpush.bf16.msra.mxu0 %v969
    %1991 = vmatpush.bf16.msra.mxu0 %v965
    %1992 = vmatpush.bf16.msra.mxu0 %v961
    %1993 = vmatpush.bf16.msra.mxu0 %v957
    %1994 = vmatpush.bf16.msra.mxu0 %v953
    %1995 = vmatpush.bf16.msra.mxu0 %v949
    %1996 = vmatpush.bf16.msra.mxu0 %v945
    %1997 = vmatpush.bf16.msra.mxu0 %v941
    %1998 = vmatmul.bf16.gmra.mxu0 %v1813
    %v1999 = vpop.f32.mrf.mxu0
    %v2000 = vadd.f32 0.0, %v1999
    %v2001 = vpop.f32.mrf.mxu0
    %2002 = vdwg.mxu0
    %2003 = vmatpush.bf16.msra.mxu0 %v970
    %2004 = vmatpush.bf16.msra.mxu0 %v966
    %2005 = vmatpush.bf16.msra.mxu0 %v962
    %2006 = vmatpush.bf16.msra.mxu0 %v958
    %2007 = vmatpush.bf16.msra.mxu0 %v954
    %2008 = vmatpush.bf16.msra.mxu0 %v950
    %2009 = vmatpush.bf16.msra.mxu0 %v946
    %2010 = vmatpush.bf16.msra.mxu0 %v942
    %2011 = vmatmul.bf16.gmra.mxu0 %v1813
    %v2012 = vpop.f32.mrf.mxu0
    %v2013 = vadd.f32 0.0, %v2012
    %v2014 = vpop.f32.mrf.mxu0
    %2015 = vdwg.mxu0
    %2016 = vmatpush.bf16.msra.mxu0 %v971
    %2017 = vmatpush.bf16.msra.mxu0 %v967
    %2018 = vmatpush.bf16.msra.mxu0 %v963
    %2019 = vmatpush.bf16.msra.mxu0 %v959
    %2020 = vmatpush.bf16.msra.mxu0 %v955
    %2021 = vmatpush.bf16.msra.mxu0 %v951
    %2022 = vmatpush.bf16.msra.mxu0 %v947
    %2023 = vmatpush.bf16.msra.mxu0 %v943
    %2024 = vmatmul.bf16.gmra.mxu0 %v1813
    %v2025 = vpop.f32.mrf.mxu0
    %v2026 = vadd.f32 0.0, %v2025
    %v2027 = vpop.f32.mrf.mxu0
    %2028 = vdwg.mxu0
    %2029 = vmatpush.bf16.msra.mxu0 %v972
    %2030 = vmatpush.bf16.msra.mxu0 %v968
    %2031 = vmatpush.bf16.msra.mxu0 %v964
    %2032 = vmatpush.bf16.msra.mxu0 %v960
    %2033 = vmatpush.bf16.msra.mxu0 %v956
    %2034 = vmatpush.bf16.msra.mxu0 %v952
    %2035 = vmatpush.bf16.msra.mxu0 %v948
    %2036 = vmatpush.bf16.msra.mxu0 %v944
    %2037 = vmatmul.bf16.gmra.mxu0 %v1813
    %v2038 = vpop.f32.mrf.mxu0
    %v2039 = vadd.f32 0.0, %v2038
    %v2040 = vpop.f32.mrf.mxu0
    %2041 = vdwg.mxu0
    %v2042 = vadd.f32 %v1986, %v2000
    %v2043 = vadd.f32 %v1987, %v2013
    %v2044 = vadd.f32 %v1988, %v2026
    %v2045 = vadd.f32 %v1989, %v2039
    %v2046 = vxor.u32 %v2042, 2147483648
    %v2047 = vmul.f32 %v2046, 1.442695
    %v2048 = vpow.pop %v2047
    %v2049 = vadd.f32 %v2048, 1.0
    %v2050 = vrcp.pop %v2049
    %v2051 = vmul.f32 %v2049, %v2050
    %v2052 = vsub.f32 1.0, %v2051
    %v2053 = vmul.f32 %v2050, %v2052
    %v2054 = vadd.f32 %v2050, %v2053
    %vm2055 = vweird.f32 %v2049
    %vm2056 = vweird.f32 %v2050
    %vm2057 = vmor %vm2055, %vm2056
    %v2058 = vsel %vm2057, %v2050, %v2054
    %v2059 = vand.u32 2147483647, %v2049
    %vm2060 = vcmp.eq.f32.partialorder %v2059, 8.507059e+37
    %v2061 = vand.u32 %v2049, 2147483648
    %v2062 = vor.u32 1.1754944e-38, %v2061
    %v2063 = vsel %vm2060, %v2062, %v2058
    %v2064 = vmul.f32 1.0, %v2063
    %v2065 = vxor.u32 %v2043, 2147483648
    %v2066 = vmul.f32 %v2065, 1.442695
    %v2067 = vpow.pop %v2066
    %v2068 = vadd.f32 %v2067, 1.0
    %v2069 = vrcp.pop %v2068
    %v2070 = vmul.f32 %v2068, %v2069
    %v2071 = vsub.f32 1.0, %v2070
    %v2072 = vmul.f32 %v2069, %v2071
    %v2073 = vadd.f32 %v2069, %v2072
    %vm2074 = vweird.f32 %v2068
    %vm2075 = vweird.f32 %v2069
    %vm2076 = vmor %vm2074, %vm2075
    %v2077 = vsel %vm2076, %v2069, %v2073
    %v2078 = vand.u32 2147483647, %v2068
    %vm2079 = vcmp.eq.f32.partialorder %v2078, 8.507059e+37
    %v2080 = vand.u32 %v2068, 2147483648
    %v2081 = vor.u32 1.1754944e-38, %v2080
    %v2082 = vsel %vm2079, %v2081, %v2077
    %v2083 = vmul.f32 1.0, %v2082
    %v2084 = vtanh.pop %v2044
    %v2085 = vxor.u32 %v2045, 2147483648
    %v2086 = vmul.f32 %v2085, 1.442695
    %v2087 = vpow.pop %v2086
    %v2088 = vadd.f32 %v2087, 1.0
    %v2089 = vrcp.pop %v2088
    %v2090 = vmul.f32 %v2088, %v2089
    %v2091 = vsub.f32 1.0, %v2090
    %v2092 = vmul.f32 %v2089, %v2091
    %v2093 = vadd.f32 %v2089, %v2092
    %vm2094 = vweird.f32 %v2088
    %vm2095 = vweird.f32 %v2089
    %vm2096 = vmor %vm2094, %vm2095
    %v2097 = vsel %vm2096, %v2089, %v2093
    %v2098 = vand.u32 2147483647, %v2088
    %vm2099 = vcmp.eq.f32.partialorder %v2098, 8.507059e+37
    %v2100 = vand.u32 %v2088, 2147483648
    %v2101 = vor.u32 1.1754944e-38, %v2100
    %v2102 = vsel %vm2099, %v2101, %v2097
    %v2103 = vmul.f32 1.0, %v2102
    %v2104 = vmul.f32 %v2083, %v1810
    %v2105 = vmul.f32 %v2064, %v2084
    %v2106 = vadd.f32 %v2104, %v2105
    %v2107 = vtanh.pop %v2106
    %v2108 = vmul.f32 %v2103, %v2107
    %v2109 = vpack.c.bf16 %v2108, %v2108
    %2110 = vmatpush.bf16.msra.mxu0 %v1323
    %2111 = vmatpush.bf16.msra.mxu0 %v1319
    %2112 = vmatpush.bf16.msra.mxu0 %v1315
    %2113 = vmatpush.bf16.msra.mxu0 %v1311
    %2114 = vmatpush.bf16.msra.mxu0 %v1307
    %2115 = vmatpush.bf16.msra.mxu0 %v1303
    %2116 = vmatpush.bf16.msra.mxu0 %v1299
    %2117 = vmatpush.bf16.msra.mxu0 %v1295
    %2118 = vmatmul.bf16.gmra.mxu0 %v2109
    %v2119 = vpop.f32.mrf.mxu0
    %v2120 = vadd.f32 %v1191, %v2119
    %v2121 = vpop.f32.mrf.mxu0
    %2122 = vdwg.mxu0
    %2123 = vmatpush.bf16.msra.mxu0 %v1324
    %2124 = vmatpush.bf16.msra.mxu0 %v1320
    %2125 = vmatpush.bf16.msra.mxu0 %v1316
    %2126 = vmatpush.bf16.msra.mxu0 %v1312
    %2127 = vmatpush.bf16.msra.mxu0 %v1308
    %2128 = vmatpush.bf16.msra.mxu0 %v1304
    %2129 = vmatpush.bf16.msra.mxu0 %v1300
    %2130 = vmatpush.bf16.msra.mxu0 %v1296
    %2131 = vmatmul.bf16.gmra.mxu0 %v2109
    %v2132 = vpop.f32.mrf.mxu0
    %v2133 = vadd.f32 %v1192, %v2132
    %v2134 = vpop.f32.mrf.mxu0
    %2135 = vdwg.mxu0
    %2136 = vmatpush.bf16.msra.mxu0 %v1325
    %2137 = vmatpush.bf16.msra.mxu0 %v1321
    %2138 = vmatpush.bf16.msra.mxu0 %v1317
    %2139 = vmatpush.bf16.msra.mxu0 %v1313
    %2140 = vmatpush.bf16.msra.mxu0 %v1309
    %2141 = vmatpush.bf16.msra.mxu0 %v1305
    %2142 = vmatpush.bf16.msra.mxu0 %v1301
    %2143 = vmatpush.bf16.msra.mxu0 %v1297
    %2144 = vmatmul.bf16.gmra.mxu0 %v2109
    %v2145 = vpop.f32.mrf.mxu0
    %v2146 = vadd.f32 %v1193, %v2145
    %v2147 = vpop.f32.mrf.mxu0
    %2148 = vdwg.mxu0
    %2149 = vmatpush.bf16.msra.mxu0 %v1326
    %2150 = vmatpush.bf16.msra.mxu0 %v1322
    %2151 = vmatpush.bf16.msra.mxu0 %v1318
    %2152 = vmatpush.bf16.msra.mxu0 %v1314
    %2153 = vmatpush.bf16.msra.mxu0 %v1310
    %2154 = vmatpush.bf16.msra.mxu0 %v1306
    %2155 = vmatpush.bf16.msra.mxu0 %v1302
    %2156 = vmatpush.bf16.msra.mxu0 %v1298
    %2157 = vmatmul.bf16.gmra.mxu0 %v2109
    %v2158 = vpop.f32.mrf.mxu0
    %v2159 = vadd.f32 %v1194, %v2158
    %v2160 = vpop.f32.mrf.mxu0
    %2161 = vdwg.mxu0
    %v2162 = vpack.c.bf16 %v1985, %v1985
    %2163 = vmatpush.bf16.msra.mxu0 %v1535
    %2164 = vmatpush.bf16.msra.mxu0 %v1531
    %2165 = vmatpush.bf16.msra.mxu0 %v1527
    %2166 = vmatpush.bf16.msra.mxu0 %v1523
    %2167 = vmatpush.bf16.msra.mxu0 %v1519
    %2168 = vmatpush.bf16.msra.mxu0 %v1515
    %2169 = vmatpush.bf16.msra.mxu0 %v1511
    %2170 = vmatpush.bf16.msra.mxu0 %v1507
    %2171 = vmatmul.bf16.gmra.mxu0 %v2162
    %v2172 = vpop.f32.mrf.mxu0
    %v2173 = vadd.f32 0.0, %v2172
    %v2174 = vpop.f32.mrf.mxu0
    %2175 = vdwg.mxu0
    %2176 = vmatpush.bf16.msra.mxu0 %v1536
    %2177 = vmatpush.bf16.msra.mxu0 %v1532
    %2178 = vmatpush.bf16.msra.mxu0 %v1528
    %2179 = vmatpush.bf16.msra.mxu0 %v1524
    %2180 = vmatpush.bf16.msra.mxu0 %v1520
    %2181 = vmatpush.bf16.msra.mxu0 %v1516
    %2182 = vmatpush.bf16.msra.mxu0 %v1512
    %2183 = vmatpush.bf16.msra.mxu0 %v1508
    %2184 = vmatmul.bf16.gmra.mxu0 %v2162
    %v2185 = vpop.f32.mrf.mxu0
    %v2186 = vadd.f32 0.0, %v2185
    %v2187 = vpop.f32.mrf.mxu0
    %2188 = vdwg.mxu0
    %2189 = vmatpush.bf16.msra.mxu0 %v1537
    %2190 = vmatpush.bf16.msra.mxu0 %v1533
    %2191 = vmatpush.bf16.msra.mxu0 %v1529
    %2192 = vmatpush.bf16.msra.mxu0 %v1525
    %2193 = vmatpush.bf16.msra.mxu0 %v1521
    %2194 = vmatpush.bf16.msra.mxu0 %v1517
    %2195 = vmatpush.bf16.msra.mxu0 %v1513
    %2196 = vmatpush.bf16.msra.mxu0 %v1509
    %2197 = vmatmul.bf16.gmra.mxu0 %v2162
    %v2198 = vpop.f32.mrf.mxu0
    %v2199 = vadd.f32 0.0, %v2198
    %v2200 = vpop.f32.mrf.mxu0
    %2201 = vdwg.mxu0
    %2202 = vmatpush.bf16.msra.mxu0 %v1538
    %2203 = vmatpush.bf16.msra.mxu0 %v1534
    %2204 = vmatpush.bf16.msra.mxu0 %v1530
    %2205 = vmatpush.bf16.msra.mxu0 %v1526
    %2206 = vmatpush.bf16.msra.mxu0 %v1522
    %2207 = vmatpush.bf16.msra.mxu0 %v1518
    %2208 = vmatpush.bf16.msra.mxu0 %v1514
    %2209 = vmatpush.bf16.msra.mxu0 %v1510
    %2210 = vmatmul.bf16.gmra.mxu0 %v2162
    %v2211 = vpop.f32.mrf.mxu0
    %v2212 = vadd.f32 0.0, %v2211
    %v2213 = vpop.f32.mrf.mxu0
    %2214 = vdwg.mxu0
    %v2215 = vadd.f32 %v2120, %v2173
    %v2216 = vadd.f32 %v2133, %v2186
    %v2217 = vadd.f32 %v2146, %v2199
    %v2218 = vadd.f32 %v2159, %v2212
    %v2219 = vxor.u32 %v2215, 2147483648
    %v2220 = vmul.f32 %v2219, 1.442695
    %v2221 = vpow.pop %v2220
    %v2222 = vadd.f32 %v2221, 1.0
    %v2223 = vrcp.pop %v2222
    %v2224 = vmul.f32 %v2222, %v2223
    %v2225 = vsub.f32 1.0, %v2224
    %v2226 = vmul.f32 %v2223, %v2225
    %v2227 = vadd.f32 %v2223, %v2226
    %vm2228 = vweird.f32 %v2222
    %vm2229 = vweird.f32 %v2223
    %vm2230 = vmor %vm2228, %vm2229
    %v2231 = vsel %vm2230, %v2223, %v2227
    %v2232 = vand.u32 2147483647, %v2222
    %vm2233 = vcmp.eq.f32.partialorder %v2232, 8.507059e+37
    %v2234 = vand.u32 %v2222, 2147483648
    %v2235 = vor.u32 1.1754944e-38, %v2234
    %v2236 = vsel %vm2233, %v2235, %v2231
    %v2237 = vmul.f32 1.0, %v2236
    %v2238 = vxor.u32 %v2216, 2147483648
    %v2239 = vmul.f32 %v2238, 1.442695
    %v2240 = vpow.pop %v2239
    %v2241 = vadd.f32 %v2240, 1.0
    %v2242 = vrcp.pop %v2241
    %v2243 = vmul.f32 %v2241, %v2242
    %v2244 = vsub.f32 1.0, %v2243
    %v2245 = vmul.f32 %v2242, %v2244
    %v2246 = vadd.f32 %v2242, %v2245
    %vm2247 = vweird.f32 %v2241
    %vm2248 = vweird.f32 %v2242
    %vm2249 = vmor %vm2247, %vm2248
    %v2250 = vsel %vm2249, %v2242, %v2246
    %v2251 = vand.u32 2147483647, %v2241
    %vm2252 = vcmp.eq.f32.partialorder %v2251, 8.507059e+37
    %v2253 = vand.u32 %v2241, 2147483648
    %v2254 = vor.u32 1.1754944e-38, %v2253
    %v2255 = vsel %vm2252, %v2254, %v2250
    %v2256 = vmul.f32 1.0, %v2255
    %v2257 = vtanh.pop %v2217
    %v2258 = vxor.u32 %v2218, 2147483648
    %v2259 = vmul.f32 %v2258, 1.442695
    %v2260 = vpow.pop %v2259
    %v2261 = vadd.f32 %v2260, 1.0
    %v2262 = vrcp.pop %v2261
    %v2263 = vmul.f32 %v2261, %v2262
    %v2264 = vsub.f32 1.0, %v2263
    %v2265 = vmul.f32 %v2262, %v2264
    %v2266 = vadd.f32 %v2262, %v2265
    %vm2267 = vweird.f32 %v2261
    %vm2268 = vweird.f32 %v2262
    %vm2269 = vmor %vm2267, %vm2268
    %v2270 = vsel %vm2269, %v2262, %v2266
    %v2271 = vand.u32 2147483647, %v2261
    %vm2272 = vcmp.eq.f32.partialorder %v2271, 8.507059e+37
    %v2273 = vand.u32 %v2261, 2147483648
    %v2274 = vor.u32 1.1754944e-38, %v2273
    %v2275 = vsel %vm2272, %v2274, %v2270
    %v2276 = vmul.f32 1.0, %v2275
    %v2277 = vmul.f32 %v2256, %v1983
    %v2278 = vmul.f32 %v2237, %v2257
    %v2279 = vadd.f32 %v2277, %v2278
    %v2280 = vtanh.pop %v2279
    %v2281 = vmul.f32 %v2276, %v2280
    %v2282 = vld [vmem:[#allocation2 + $0x60] sm:$0xff]
    %v2283 = vld [vmem:[#allocation2 + $0x68] sm:$0xff]
    %v2284 = vld [vmem:[#allocation2 + $0x70] sm:$0xff]
    %v2285 = vld [vmem:[#allocation2 + $0x78] sm:$0xff]
    %2286 = vmatpush.bf16.msra.mxu0 %v969
    %2287 = vmatpush.bf16.msra.mxu0 %v965
    %2288 = vmatpush.bf16.msra.mxu0 %v961
    %2289 = vmatpush.bf16.msra.mxu0 %v957
    %2290 = vmatpush.bf16.msra.mxu0 %v953
    %2291 = vmatpush.bf16.msra.mxu0 %v949
    %2292 = vmatpush.bf16.msra.mxu0 %v945
    %2293 = vmatpush.bf16.msra.mxu0 %v941
    %2294 = vmatmul.bf16.gmra.mxu0 %v2109
    %v2295 = vpop.f32.mrf.mxu0
    %v2296 = vadd.f32 0.0, %v2295
    %v2297 = vpop.f32.mrf.mxu0
    %2298 = vdwg.mxu0
    %2299 = vmatpush.bf16.msra.mxu0 %v970
    %2300 = vmatpush.bf16.msra.mxu0 %v966
    %2301 = vmatpush.bf16.msra.mxu0 %v962
    %2302 = vmatpush.bf16.msra.mxu0 %v958
    %2303 = vmatpush.bf16.msra.mxu0 %v954
    %2304 = vmatpush.bf16.msra.mxu0 %v950
    %2305 = vmatpush.bf16.msra.mxu0 %v946
    %2306 = vmatpush.bf16.msra.mxu0 %v942
    %2307 = vmatmul.bf16.gmra.mxu0 %v2109
    %v2308 = vpop.f32.mrf.mxu0
    %v2309 = vadd.f32 0.0, %v2308
    %v2310 = vpop.f32.mrf.mxu0
    %2311 = vdwg.mxu0
    %2312 = vmatpush.bf16.msra.mxu0 %v971
    %2313 = vmatpush.bf16.msra.mxu0 %v967
    %2314 = vmatpush.bf16.msra.mxu0 %v963
    %2315 = vmatpush.bf16.msra.mxu0 %v959
    %2316 = vmatpush.bf16.msra.mxu0 %v955
    %2317 = vmatpush.bf16.msra.mxu0 %v951
    %2318 = vmatpush.bf16.msra.mxu0 %v947
    %2319 = vmatpush.bf16.msra.mxu0 %v943
    %2320 = vmatmul.bf16.gmra.mxu0 %v2109
    %v2321 = vpop.f32.mrf.mxu0
    %v2322 = vadd.f32 0.0, %v2321
    %v2323 = vpop.f32.mrf.mxu0
    %2324 = vdwg.mxu0
    %2325 = vmatpush.bf16.msra.mxu0 %v972
    %2326 = vmatpush.bf16.msra.mxu0 %v968
    %2327 = vmatpush.bf16.msra.mxu0 %v964
    %2328 = vmatpush.bf16.msra.mxu0 %v960
    %2329 = vmatpush.bf16.msra.mxu0 %v956
    %2330 = vmatpush.bf16.msra.mxu0 %v952
    %2331 = vmatpush.bf16.msra.mxu0 %v948
    %2332 = vmatpush.bf16.msra.mxu0 %v944
    %2333 = vmatmul.bf16.gmra.mxu0 %v2109
    %v2334 = vpop.f32.mrf.mxu0
    %v2335 = vadd.f32 0.0, %v2334
    %v2336 = vpop.f32.mrf.mxu0
    %2337 = vdwg.mxu0
    %v2338 = vadd.f32 %v2282, %v2296
    %v2339 = vadd.f32 %v2283, %v2309
    %v2340 = vadd.f32 %v2284, %v2322
    %v2341 = vadd.f32 %v2285, %v2335
    %v2342 = vxor.u32 %v2338, 2147483648
    %v2343 = vmul.f32 %v2342, 1.442695
    %v2344 = vpow.pop %v2343
    %v2345 = vadd.f32 %v2344, 1.0
    %v2346 = vrcp.pop %v2345
    %v2347 = vmul.f32 %v2345, %v2346
    %v2348 = vsub.f32 1.0, %v2347
    %v2349 = vmul.f32 %v2346, %v2348
    %v2350 = vadd.f32 %v2346, %v2349
    %vm2351 = vweird.f32 %v2345
    %vm2352 = vweird.f32 %v2346
    %vm2353 = vmor %vm2351, %vm2352
    %v2354 = vsel %vm2353, %v2346, %v2350
    %v2355 = vand.u32 2147483647, %v2345
    %vm2356 = vcmp.eq.f32.partialorder %v2355, 8.507059e+37
    %v2357 = vand.u32 %v2345, 2147483648
    %v2358 = vor.u32 1.1754944e-38, %v2357
    %v2359 = vsel %vm2356, %v2358, %v2354
    %v2360 = vmul.f32 1.0, %v2359
    %v2361 = vxor.u32 %v2339, 2147483648
    %v2362 = vmul.f32 %v2361, 1.442695
    %v2363 = vpow.pop %v2362
    %v2364 = vadd.f32 %v2363, 1.0
    %v2365 = vrcp.pop %v2364
    %v2366 = vmul.f32 %v2364, %v2365
    %v2367 = vsub.f32 1.0, %v2366
    %v2368 = vmul.f32 %v2365, %v2367
    %v2369 = vadd.f32 %v2365, %v2368
    %vm2370 = vweird.f32 %v2364
    %vm2371 = vweird.f32 %v2365
    %vm2372 = vmor %vm2370, %vm2371
    %v2373 = vsel %vm2372, %v2365, %v2369
    %v2374 = vand.u32 2147483647, %v2364
    %vm2375 = vcmp.eq.f32.partialorder %v2374, 8.507059e+37
    %v2376 = vand.u32 %v2364, 2147483648
    %v2377 = vor.u32 1.1754944e-38, %v2376
    %v2378 = vsel %vm2375, %v2377, %v2373
    %v2379 = vmul.f32 1.0, %v2378
    %v2380 = vtanh.pop %v2340
    %v2381 = vxor.u32 %v2341, 2147483648
    %v2382 = vmul.f32 %v2381, 1.442695
    %v2383 = vpow.pop %v2382
    %v2384 = vadd.f32 %v2383, 1.0
    %v2385 = vrcp.pop %v2384
    %v2386 = vmul.f32 %v2384, %v2385
    %v2387 = vsub.f32 1.0, %v2386
    %v2388 = vmul.f32 %v2385, %v2387
    %v2389 = vadd.f32 %v2385, %v2388
    %vm2390 = vweird.f32 %v2384
    %vm2391 = vweird.f32 %v2385
    %vm2392 = vmor %vm2390, %vm2391
    %v2393 = vsel %vm2392, %v2385, %v2389
    %v2394 = vand.u32 2147483647, %v2384
    %vm2395 = vcmp.eq.f32.partialorder %v2394, 8.507059e+37
    %v2396 = vand.u32 %v2384, 2147483648
    %v2397 = vor.u32 1.1754944e-38, %v2396
    %v2398 = vsel %vm2395, %v2397, %v2393
    %v2399 = vmul.f32 1.0, %v2398
    %v2400 = vmul.f32 %v2379, %v2106
    %v2401 = vmul.f32 %v2360, %v2380
    %v2402 = vadd.f32 %v2400, %v2401
    %v2403 = vtanh.pop %v2402
    %v2404 = vmul.f32 %v2399, %v2403
    %v2405 = vpack.c.bf16 %v2404, %v2404
    %2406 = vmatpush.bf16.msra.mxu0 %v1323
    %2407 = vmatpush.bf16.msra.mxu0 %v1319
    %2408 = vmatpush.bf16.msra.mxu0 %v1315
    %2409 = vmatpush.bf16.msra.mxu0 %v1311
    %2410 = vmatpush.bf16.msra.mxu0 %v1307
    %2411 = vmatpush.bf16.msra.mxu0 %v1303
    %2412 = vmatpush.bf16.msra.mxu0 %v1299
    %2413 = vmatpush.bf16.msra.mxu0 %v1295
    %2414 = vmatmul.bf16.gmra.mxu0 %v2405
    %v2415 = vpop.f32.mrf.mxu0
    %v2416 = vadd.f32 %v1191, %v2415
    %v2417 = vpop.f32.mrf.mxu0
    %2418 = vdwg.mxu0
    %2419 = vmatpush.bf16.msra.mxu0 %v1324
    %2420 = vmatpush.bf16.msra.mxu0 %v1320
    %2421 = vmatpush.bf16.msra.mxu0 %v1316
    %2422 = vmatpush.bf16.msra.mxu0 %v1312
    %2423 = vmatpush.bf16.msra.mxu0 %v1308
    %2424 = vmatpush.bf16.msra.mxu0 %v1304
    %2425 = vmatpush.bf16.msra.mxu0 %v1300
    %2426 = vmatpush.bf16.msra.mxu0 %v1296
    %2427 = vmatmul.bf16.gmra.mxu0 %v2405
    %v2428 = vpop.f32.mrf.mxu0
    %v2429 = vadd.f32 %v1192, %v2428
    %v2430 = vpop.f32.mrf.mxu0
    %2431 = vdwg.mxu0
    %2432 = vmatpush.bf16.msra.mxu0 %v1325
    %2433 = vmatpush.bf16.msra.mxu0 %v1321
    %2434 = vmatpush.bf16.msra.mxu0 %v1317
    %2435 = vmatpush.bf16.msra.mxu0 %v1313
    %2436 = vmatpush.bf16.msra.mxu0 %v1309
    %2437 = vmatpush.bf16.msra.mxu0 %v1305
    %2438 = vmatpush.bf16.msra.mxu0 %v1301
    %2439 = vmatpush.bf16.msra.mxu0 %v1297
    %2440 = vmatmul.bf16.gmra.mxu0 %v2405
    %v2441 = vpop.f32.mrf.mxu0
    %v2442 = vadd.f32 %v1193, %v2441
    %v2443 = vpop.f32.mrf.mxu0
    %2444 = vdwg.mxu0
    %2445 = vmatpush.bf16.msra.mxu0 %v1326
    %2446 = vmatpush.bf16.msra.mxu0 %v1322
    %2447 = vmatpush.bf16.msra.mxu0 %v1318
    %2448 = vmatpush.bf16.msra.mxu0 %v1314
    %2449 = vmatpush.bf16.msra.mxu0 %v1310
    %2450 = vmatpush.bf16.msra.mxu0 %v1306
    %2451 = vmatpush.bf16.msra.mxu0 %v1302
    %2452 = vmatpush.bf16.msra.mxu0 %v1298
    %2453 = vmatmul.bf16.gmra.mxu0 %v2405
    %v2454 = vpop.f32.mrf.mxu0
    %v2455 = vadd.f32 %v1194, %v2454
    %v2456 = vpop.f32.mrf.mxu0
    %2457 = vdwg.mxu0
    %v2458 = vpack.c.bf16 %v2281, %v2281
    %2459 = vmatpush.bf16.msra.mxu0 %v1535
    %2460 = vmatpush.bf16.msra.mxu0 %v1531
    %2461 = vmatpush.bf16.msra.mxu0 %v1527
    %2462 = vmatpush.bf16.msra.mxu0 %v1523
    %2463 = vmatpush.bf16.msra.mxu0 %v1519
    %2464 = vmatpush.bf16.msra.mxu0 %v1515
    %2465 = vmatpush.bf16.msra.mxu0 %v1511
    %2466 = vmatpush.bf16.msra.mxu0 %v1507
    %2467 = vmatmul.bf16.gmra.mxu0 %v2458
    %v2468 = vpop.f32.mrf.mxu0
    %v2469 = vadd.f32 0.0, %v2468
    %v2470 = vpop.f32.mrf.mxu0
    %2471 = vdwg.mxu0
    %2472 = vmatpush.bf16.msra.mxu0 %v1536
    %2473 = vmatpush.bf16.msra.mxu0 %v1532
    %2474 = vmatpush.bf16.msra.mxu0 %v1528
    %2475 = vmatpush.bf16.msra.mxu0 %v1524
    %2476 = vmatpush.bf16.msra.mxu0 %v1520
    %2477 = vmatpush.bf16.msra.mxu0 %v1516
    %2478 = vmatpush.bf16.msra.mxu0 %v1512
    %2479 = vmatpush.bf16.msra.mxu0 %v1508
    %2480 = vmatmul.bf16.gmra.mxu0 %v2458
    %v2481 = vpop.f32.mrf.mxu0
    %v2482 = vadd.f32 0.0, %v2481
    %v2483 = vpop.f32.mrf.mxu0
    %2484 = vdwg.mxu0
    %2485 = vmatpush.bf16.msra.mxu0 %v1537
    %2486 = vmatpush.bf16.msra.mxu0 %v1533
    %2487 = vmatpush.bf16.msra.mxu0 %v1529
    %2488 = vmatpush.bf16.msra.mxu0 %v1525
    %2489 = vmatpush.bf16.msra.mxu0 %v1521
    %2490 = vmatpush.bf16.msra.mxu0 %v1517
    %2491 = vmatpush.bf16.msra.mxu0 %v1513
    %2492 = vmatpush.bf16.msra.mxu0 %v1509
    %2493 = vmatmul.bf16.gmra.mxu0 %v2458
    %v2494 = vpop.f32.mrf.mxu0
    %v2495 = vadd.f32 0.0, %v2494
    %v2496 = vpop.f32.mrf.mxu0
    %2497 = vdwg.mxu0
    %2498 = vmatpush.bf16.msra.mxu0 %v1538
    %2499 = vmatpush.bf16.msra.mxu0 %v1534
    %2500 = vmatpush.bf16.msra.mxu0 %v1530
    %2501 = vmatpush.bf16.msra.mxu0 %v1526
    %2502 = vmatpush.bf16.msra.mxu0 %v1522
    %2503 = vmatpush.bf16.msra.mxu0 %v1518
    %2504 = vmatpush.bf16.msra.mxu0 %v1514
    %2505 = vmatpush.bf16.msra.mxu0 %v1510
    %2506 = vmatmul.bf16.gmra.mxu0 %v2458
    %v2507 = vpop.f32.mrf.mxu0
    %v2508 = vadd.f32 0.0, %v2507
    %v2509 = vpop.f32.mrf.mxu0
    %2510 = vdwg.mxu0
    %v2511 = vadd.f32 %v2416, %v2469
    %v2512 = vadd.f32 %v2429, %v2482
    %v2513 = vadd.f32 %v2442, %v2495
    %v2514 = vadd.f32 %v2455, %v2508
    %v2515 = vxor.u32 %v2511, 2147483648
    %v2516 = vmul.f32 %v2515, 1.442695
    %v2517 = vpow.pop %v2516
    %v2518 = vadd.f32 %v2517, 1.0
    %v2519 = vrcp.pop %v2518
    %v2520 = vmul.f32 %v2518, %v2519
    %v2521 = vsub.f32 1.0, %v2520
    %v2522 = vmul.f32 %v2519, %v2521
    %v2523 = vadd.f32 %v2519, %v2522
    %vm2524 = vweird.f32 %v2518
    %vm2525 = vweird.f32 %v2519
    %vm2526 = vmor %vm2524, %vm2525
    %v2527 = vsel %vm2526, %v2519, %v2523
    %v2528 = vand.u32 2147483647, %v2518
    %vm2529 = vcmp.eq.f32.partialorder %v2528, 8.507059e+37
    %v2530 = vand.u32 %v2518, 2147483648
    %v2531 = vor.u32 1.1754944e-38, %v2530
    %v2532 = vsel %vm2529, %v2531, %v2527
    %v2533 = vmul.f32 1.0, %v2532
    %v2534 = vxor.u32 %v2512, 2147483648
    %v2535 = vmul.f32 %v2534, 1.442695
    %v2536 = vpow.pop %v2535
    %v2537 = vadd.f32 %v2536, 1.0
    %v2538 = vrcp.pop %v2537
    %v2539 = vmul.f32 %v2537, %v2538
    %v2540 = vsub.f32 1.0, %v2539
    %v2541 = vmul.f32 %v2538, %v2540
    %v2542 = vadd.f32 %v2538, %v2541
    %vm2543 = vweird.f32 %v2537
    %vm2544 = vweird.f32 %v2538
    %vm2545 = vmor %vm2543, %vm2544
    %v2546 = vsel %vm2545, %v2538, %v2542
    %v2547 = vand.u32 2147483647, %v2537
    %vm2548 = vcmp.eq.f32.partialorder %v2547, 8.507059e+37
    %v2549 = vand.u32 %v2537, 2147483648
    %v2550 = vor.u32 1.1754944e-38, %v2549
    %v2551 = vsel %vm2548, %v2550, %v2546
    %v2552 = vmul.f32 1.0, %v2551
    %v2553 = vtanh.pop %v2513
    %v2554 = vxor.u32 %v2514, 2147483648
    %v2555 = vmul.f32 %v2554, 1.442695
    %v2556 = vpow.pop %v2555
    %v2557 = vadd.f32 %v2556, 1.0
    %v2558 = vrcp.pop %v2557
    %v2559 = vmul.f32 %v2557, %v2558
    %v2560 = vsub.f32 1.0, %v2559
    %v2561 = vmul.f32 %v2558, %v2560
    %v2562 = vadd.f32 %v2558, %v2561
    %vm2563 = vweird.f32 %v2557
    %vm2564 = vweird.f32 %v2558
    %vm2565 = vmor %vm2563, %vm2564
    %v2566 = vsel %vm2565, %v2558, %v2562
    %v2567 = vand.u32 2147483647, %v2557
    %vm2568 = vcmp.eq.f32.partialorder %v2567, 8.507059e+37
    %v2569 = vand.u32 %v2557, 2147483648
    %v2570 = vor.u32 1.1754944e-38, %v2569
    %v2571 = vsel %vm2568, %v2570, %v2566
    %v2572 = vmul.f32 1.0, %v2571
    %v2573 = vmul.f32 %v2552, %v2279
    %v2574 = vmul.f32 %v2533, %v2553
    %v2575 = vadd.f32 %v2573, %v2574
    %v2576 = vtanh.pop %v2575
    %v2577 = vmul.f32 %v2572, %v2576
    %2578 = vst [vmem:[%s9] sm:$0xff] %v2577
    // Predicated region
    $region54: #{_lambda_.3} parent=1 // pred_check
      _
    $region55: #{_lambda_.3} parent=1 // pred_check_branch
      %2580 = sbr.rel (0) target = $region57
    $region56: #{_lambda_.3} parent=1 // pred_region
      _
    $region57: #{_lambda_.3} parent=1 // pred_fallthru
      _
    // Predicated region
    $region58: #{_lambda_.3} parent=1 // pred_check
      _
    $region59: #{_lambda_.3} parent=1 // pred_check_branch
      %2582 = sbr.rel (0) target = $region61
    $region60: #{_lambda_.3} parent=1 // pred_region
      _
    $region61: #{_lambda_.3} parent=1 // pred_fallthru
      _
    %2583 = vsyncpa [#allocation4], 1
    %2584 = vsyncpa [#allocation6], 1
    %2585 = vsyncpa [#allocation9], 1

// kernel: _lambda_.2
$region0: #{_lambda_.2}
  #allocation0 [shape = 'u32[]', space=smem, size = 0x4, offset = 0x4, fixed_abs, tag = 'smem constant byte address 0x4 - core index']
  #allocation1 [shape = 'u32[72,128]{1,0:T(1,128)}', space=vmem, size = 0x9000, scoped, tag = 'internal scratch']
  #allocation2 [shape = 'f32[24,512]{1,0:T(8,128)}', space=vmem, size = 0xc000, scoped, tag = 'scratch operand']
  %s0 = inlined_call_operand.vmem [shape: bf16[2,24,128], index: 0, kind: input, shape index: {}]
  %s1 = inlined_call_operand.hbm [shape: bf16[128,384], index: 1, kind: input, shape index: {}]
  %s2 = inlined_call_operand.hbm [shape: f32[1,384], index: 2, kind: input, shape index: {}]
  %s3 = inlined_call_operand.hbm [shape: bf16[128,512], index: 3, kind: input, shape index: {}]
  %s4 = inlined_call_operand.hbm [shape: bf16[128,512], index: 4, kind: input, shape index: {}]
  %s5 = inlined_call_operand.hbm [shape: f32[1,512], index: 5, kind: input, shape index: {}]
  %s6 = inlined_call_operand.hbm [shape: bf16[128,512], index: 6, kind: input, shape index: {}]
  %s7 = inlined_call_operand.hbm [shape: bf16[128,512], index: 7, kind: input, shape index: {}]
  %s8 = inlined_call_operand.hbm [shape: f32[1,512], index: 8, kind: input, shape index: {}]
  %s9 = inlined_call_operand.vmem [shape: f32[16,128], index: 9, kind: output, shape index: {}]
  %s10 = sld [smem:[#allocation0]]
  $region101: #{_lambda_.2} parent=0
    _
  %s12 = ssub.s32 1, %s10
  %s13 = scalar_select 0, %s12, %s10
  $region1: #{_lambda_.2} parent=0
    #allocation3 [shape = 'u8[98304]{0}', space=vmem, size = 0x18000, scoped, tag = 'input window, operand 1, single buffered']
    #allocation4 [shape = 's32[2]{0}', space=sflag, size = 0x8, scoped, tag = 'scoped memory for _lambda_.2']
    #allocation5 [shape = 'u8[1536]{0}', space=vmem, size = 0x800, scoped, tag = 'input window, operand 2, single buffered']
    #allocation6 [shape = 's32[1]{0}', space=sflag, size = 0x4, scoped, tag = 'scoped memory for _lambda_.2']
    #allocation7 [shape = 'u8[131072]{0}', space=vmem, size = 0x20000, scoped, tag = 'input window, operand 3, single buffered']
    #allocation8 [shape = 'u8[131072]{0}', space=vmem, size = 0x20000, scoped, tag = 'input window, operand 4, single buffered']
    #allocation9 [shape = 's32[1]{0}', space=sflag, size = 0x4, scoped, tag = 'scoped memory for _lambda_.2']
    #allocation10 [shape = 'u8[2048]{0}', space=vmem, size = 0x800, scoped, tag = 'input window, operand 5, single buffered']
    #allocation11 [shape = 'u8[131072]{0}', space=vmem, size = 0x20000, scoped, tag = 'input window, operand 6, single buffered']
    #allocation12 [shape = 's32[1]{0}', space=sflag, size = 0x4, scoped, tag = 'scoped memory for _lambda_.2']
    #allocation13 [shape = 'u8[131072]{0}', space=vmem, size = 0x20000, scoped, tag = 'input window, operand 7, single buffered']
    #allocation14 [shape = 'u8[2048]{0}', space=vmem, size = 0x800, scoped, tag = 'input window, operand 8, single buffered']
    #allocation15 [shape = 's32[1]{0}', space=sflag, size = 0x4, scoped, tag = 'scoped memory for _lambda_.2']
    %14 = vsyncpa [#allocation4], 0
    %15 = vsyncpa [#allocation6], 0
    %16 = vsyncpa [#allocation9], 0
    %17 = vsyncpa [#allocation12], 0
    %18 = vsyncpa [#allocation15], 0
    loop: start=0, step=1, limit=4
    $region2: #{_lambda_.2} parent=1 // loop_pre_header
      _
    $region3: #{_lambda_.2} parent=1 // loop_header
      %s20 = sphi 0, %s24
      %p21 = scmp.ge.s32.totalorder %s20, 4
      %s30 = sphi 0, %s32
      %s33 = sphi 0, %s30
      %s34 = sphi 0, %s33
      %s50 = sphi 0, %s34
      %s54 = sphi 0, %s54
      %s56 = sphi 0, %s54
      %s57 = sphi 0, %s56
      %s71 = sphi 0, %s57
      %s75 = sphi 0, %s75
      %s77 = sphi 0, %s75
      %s78 = sphi 0, %s77
      %s92 = sphi 0, %s78
      %s96 = sphi 0, %s96
      %s98 = sphi 0, %s96
      %s99 = sphi 0, %s98
      %s113 = sphi 0, %s99
      %s117 = sphi 0, %s117
      %s119 = sphi 0, %s117
      %s120 = sphi 0, %s119
      %s134 = sphi 0, %s120
      %s138 = sphi 0, %s138
      %s140 = sphi 0, %s138
      %s141 = sphi 0, %s140
      %s155 = sphi 0, %s141
      %s159 = sphi 0, %s159
      %s161 = sphi 0, %s159
      %s162 = sphi 0, %s161
      %s176 = sphi 0, %s162
      %s180 = sphi 0, %s180
      %s182 = sphi 0, %s180
      %s183 = sphi 0, %s182
      %s197 = sphi 0, %s183
      %s201 = sphi 0, %s201
      %s203 = sphi 0, %s201
      %s204 = sphi 0, %s203
      %s218 = sphi 0, %s204
      %s224 = sphi 0, %s226
      %s227 = sphi 0, %s224
      %s228 = sphi 0, %s227
      %s244 = sphi 0, %s228
    $region4: #{_lambda_.2} parent=1 // loop_header_branch
      %23 = sbr.rel (%p21) target = $region8
    $region5: #{_lambda_.2} parent=1 // loop_body
      %s25 = ssub.s32 %s20, 1
      %s26 = ssub.s32 %s20, 2
      %s27 = sadd.s32 %s20, 1
      %s28 = ssub.s32 %s20, %s27
      %p29 = scmp.eq.s32.totalorder %s28, 0
      %s31 = sadd.s32 %s30, 1
      %s32 = scalar_select %p29, %s30, %s31
      %p35 = pneg %p29
      %p36 = scmp.eq.s32.totalorder %s20, 1
      %p37 = por %p35, %p36
      %p38 = scmp.ne.s32.totalorder %s30, %s33
      %p39 = scmp.eq.s32.totalorder %s20, 0
      %p40 = por %p38, %p39
      %p41 = scmp.ne.s32.totalorder %s30, %s33
      %p42 = scmp.eq.s32.totalorder %s25, 1
      %p43 = por %p41, %p42
      %p44 = scmp.ne.s32.totalorder %s33, %s34
      %p45 = scmp.eq.s32.totalorder %s25, 0
      %p46 = por %p44, %p45
      %p47 = scmp.ne.s32.totalorder %s33, %s34
      %p48 = scmp.eq.s32.totalorder %s26, 1
      %p49 = por %p47, %p48
      %p51 = scmp.ne.s32.totalorder %s34, %s50
      %p52 = scmp.eq.s32.totalorder %s26, 0
      %p53 = por %p51, %p52
      %s55 = sadd.s32 %s54, 1
      %p58 = scmp.eq.s32.totalorder %s20, 1
      %p59 = scmp.ne.s32.totalorder %s54, %s56
      %p60 = scmp.eq.s32.totalorder %s20, 0
      %p61 = por %p59, %p60
      %p62 = scmp.ne.s32.totalorder %s54, %s56
      %p63 = scmp.eq.s32.totalorder %s25, 1
      %p64 = por %p62, %p63
      %p65 = scmp.ne.s32.totalorder %s56, %s57
      %p66 = scmp.eq.s32.totalorder %s25, 0
      %p67 = por %p65, %p66
      %p68 = scmp.ne.s32.totalorder %s56, %s57
      %p69 = scmp.eq.s32.totalorder %s26, 1
      %p70 = por %p68, %p69
      %p72 = scmp.ne.s32.totalorder %s57, %s71
      %p73 = scmp.eq.s32.totalorder %s26, 0
      %p74 = por %p72, %p73
      %s76 = sadd.s32 %s75, 1
      %p79 = scmp.eq.s32.totalorder %s20, 1
      %p80 = scmp.ne.s32.totalorder %s75, %s77
      %p81 = scmp.eq.s32.totalorder %s20, 0
      %p82 = por %p80, %p81
      %p83 = scmp.ne.s32.totalorder %s75, %s77
      %p84 = scmp.eq.s32.totalorder %s25, 1
      %p85 = por %p83, %p84
      %p86 = scmp.ne.s32.totalorder %s77, %s78
      %p87 = scmp.eq.s32.totalorder %s25, 0
      %p88 = por %p86, %p87
      %p89 = scmp.ne.s32.totalorder %s77, %s78
      %p90 = scmp.eq.s32.totalorder %s26, 1
      %p91 = por %p89, %p90
      %p93 = scmp.ne.s32.totalorder %s78, %s92
      %p94 = scmp.eq.s32.totalorder %s26, 0
      %p95 = por %p93, %p94
      %s97 = sadd.s32 %s96, 1
      %p100 = scmp.eq.s32.totalorder %s20, 1
      %p101 = scmp.ne.s32.totalorder %s96, %s98
      %p102 = scmp.eq.s32.totalorder %s20, 0
      %p103 = por %p101, %p102
      %p104 = scmp.ne.s32.totalorder %s96, %s98
      %p105 = scmp.eq.s32.totalorder %s25, 1
      %p106 = por %p104, %p105
      %p107 = scmp.ne.s32.totalorder %s98, %s99
      %p108 = scmp.eq.s32.totalorder %s25, 0
      %p109 = por %p107, %p108
      %p110 = scmp.ne.s32.totalorder %s98, %s99
      %p111 = scmp.eq.s32.totalorder %s26, 1
      %p112 = por %p110, %p111
      %p114 = scmp.ne.s32.totalorder %s99, %s113
      %p115 = scmp.eq.s32.totalorder %s26, 0
      %p116 = por %p114, %p115
      %s118 = sadd.s32 %s117, 1
      %p121 = scmp.eq.s32.totalorder %s20, 1
      %p122 = scmp.ne.s32.totalorder %s117, %s119
      %p123 = scmp.eq.s32.totalorder %s20, 0
      %p124 = por %p122, %p123
      %p125 = scmp.ne.s32.totalorder %s117, %s119
      %p126 = scmp.eq.s32.totalorder %s25, 1
      %p127 = por %p125, %p126
      %p128 = scmp.ne.s32.totalorder %s119, %s120
      %p129 = scmp.eq.s32.totalorder %s25, 0
      %p130 = por %p128, %p129
      %p131 = scmp.ne.s32.totalorder %s119, %s120
      %p132 = scmp.eq.s32.totalorder %s26, 1
      %p133 = por %p131, %p132
      %p135 = scmp.ne.s32.totalorder %s120, %s134
      %p136 = scmp.eq.s32.totalorder %s26, 0
      %p137 = por %p135, %p136
      %s139 = sadd.s32 %s138, 1
      %p142 = scmp.eq.s32.totalorder %s20, 1
      %p143 = scmp.ne.s32.totalorder %s138, %s140
      %p144 = scmp.eq.s32.totalorder %s20, 0
      %p145 = por %p143, %p144
      %p146 = scmp.ne.s32.totalorder %s138, %s140
      %p147 = scmp.eq.s32.totalorder %s25, 1
      %p148 = por %p146, %p147
      %p149 = scmp.ne.s32.totalorder %s140, %s141
      %p150 = scmp.eq.s32.totalorder %s25, 0
      %p151 = por %p149, %p150
      %p152 = scmp.ne.s32.totalorder %s140, %s141
      %p153 = scmp.eq.s32.totalorder %s26, 1
      %p154 = por %p152, %p153
      %p156 = scmp.ne.s32.totalorder %s141, %s155
      %p157 = scmp.eq.s32.totalorder %s26, 0
      %p158 = por %p156, %p157
      %s160 = sadd.s32 %s159, 1
      %p163 = scmp.eq.s32.totalorder %s20, 1
      %p164 = scmp.ne.s32.totalorder %s159, %s161
      %p165 = scmp.eq.s32.totalorder %s20, 0
      %p166 = por %p164, %p165
      %p167 = scmp.ne.s32.totalorder %s159, %s161
      %p168 = scmp.eq.s32.totalorder %s25, 1
      %p169 = por %p167, %p168
      %p170 = scmp.ne.s32.totalorder %s161, %s162
      %p171 = scmp.eq.s32.totalorder %s25, 0
      %p172 = por %p170, %p171
      %p173 = scmp.ne.s32.totalorder %s161, %s162
      %p174 = scmp.eq.s32.totalorder %s26, 1
      %p175 = por %p173, %p174
      %p177 = scmp.ne.s32.totalorder %s162, %s176
      %p178 = scmp.eq.s32.totalorder %s26, 0
      %p179 = por %p177, %p178
      %s181 = sadd.s32 %s180, 1
      %p184 = scmp.eq.s32.totalorder %s20, 1
      %p185 = scmp.ne.s32.totalorder %s180, %s182
      %p186 = scmp.eq.s32.totalorder %s20, 0
      %p187 = por %p185, %p186
      %p188 = scmp.ne.s32.totalorder %s180, %s182
      %p189 = scmp.eq.s32.totalorder %s25, 1
      %p190 = por %p188, %p189
      %p191 = scmp.ne.s32.totalorder %s182, %s183
      %p192 = scmp.eq.s32.totalorder %s25, 0
      %p193 = por %p191, %p192
      %p194 = scmp.ne.s32.totalorder %s182, %s183
      %p195 = scmp.eq.s32.totalorder %s26, 1
      %p196 = por %p194, %p195
      %p198 = scmp.ne.s32.totalorder %s183, %s197
      %p199 = scmp.eq.s32.totalorder %s26, 0
      %p200 = por %p198, %p199
      %s202 = sadd.s32 %s201, 1
      %p205 = scmp.eq.s32.totalorder %s20, 1
      %p206 = scmp.ne.s32.totalorder %s201, %s203
      %p207 = scmp.eq.s32.totalorder %s20, 0
      %p208 = por %p206, %p207
      %p209 = scmp.ne.s32.totalorder %s201, %s203
      %p210 = scmp.eq.s32.totalorder %s25, 1
      %p211 = por %p209, %p210
      %p212 = scmp.ne.s32.totalorder %s203, %s204
      %p213 = scmp.eq.s32.totalorder %s25, 0
      %p214 = por %p212, %p213
      %p215 = scmp.ne.s32.totalorder %s203, %s204
      %p216 = scmp.eq.s32.totalorder %s26, 1
      %p217 = por %p215, %p216
      %p219 = scmp.ne.s32.totalorder %s204, %s218
      %p220 = scmp.eq.s32.totalorder %s26, 0
      %p221 = por %p219, %p220
      %s222 = ssub.s32 %s20, %s27
      %p223 = scmp.eq.s32.totalorder %s222, 0
      %s225 = sadd.s32 %s224, 1
      %s226 = scalar_select %p223, %s224, %s225
      %p229 = pneg %p223
      %p230 = scmp.eq.s32.totalorder %s20, 1
      %p231 = por %p229, %p230
      %p232 = scmp.ne.s32.totalorder %s224, %s227
      %p233 = scmp.eq.s32.totalorder %s20, 0
      %p234 = por %p232, %p233
      %p235 = scmp.ne.s32.totalorder %s224, %s227
      %p236 = scmp.eq.s32.totalorder %s25, 1
      %p237 = por %p235, %p236
      %p238 = scmp.ne.s32.totalorder %s227, %s228
      %p239 = scmp.eq.s32.totalorder %s25, 0
      %p240 = por %p238, %p239
      %p241 = scmp.ne.s32.totalorder %s227, %s228
      %p242 = scmp.eq.s32.totalorder %s26, 1
      %p243 = por %p241, %p242
      %p245 = scmp.ne.s32.totalorder %s228, %s244
      %p246 = scmp.eq.s32.totalorder %s26, 0
      %p247 = por %p245, %p246
      %p248 = scmp.le.s32.totalorder 1, %s20
      %p249 = scmp.lt.s32.totalorder %s20, 3
      %p250 = pnand %p248, %p249
      %p251 = pneg %p250
      // Predicated region
      $region9: #{_lambda_.2} parent=5 // pred_check
        _
      $region10: #{_lambda_.2} parent=5 // pred_check_branch
        %253 = sbr.rel (%p250) target = $region12
      $region11: #{_lambda_.2} parent=5 // pred_region
        %s254 = ssub.s32 %s20, 1
        // Predicated region
        $region13: #{_lambda_.2} parent=11 // pred_check
          %p255 = pneg %p67
        $region14: #{_lambda_.2} parent=11 // pred_check_branch
          %257 = sbr.rel (%p255) target = $region16
        $region15: #{_lambda_.2} parent=11 // pred_region
          %259 = vsyncadd [#allocation4], 0
          %s260 = sshll.u32 %s1, 4
          %s261 = int_to_ptr.hbm [resolvable:$true] %s260
          %s262 = sshll.u32 [#allocation3], 4
          %s263 = int_to_ptr.vmem [resolvable:$true] %s262
          %268 = dma.hbm_to_vmem [thread:$0]  %s261, 3072, %s263, [#allocation4], 192, 192, 12
        $region16: #{_lambda_.2} parent=11 // pred_fallthru
          _
        // Predicated region
        $region17: #{_lambda_.2} parent=11 // pred_check
          %p269 = pneg %p88
        $region18: #{_lambda_.2} parent=11 // pred_check_branch
          %271 = sbr.rel (%p269) target = $region20
        $region19: #{_lambda_.2} parent=11 // pred_region
          %273 = vsyncadd [#allocation6], 0
          %s275 = sshll.u32 %s2, 4
          %s276 = int_to_ptr.hbm [resolvable:$true] %s275
          %s277 = sshll.u32 [#allocation5], 4
          %s278 = int_to_ptr.vmem [resolvable:$true] %s277
          %280 = dma.hbm_to_vmem [thread:$0]  %s276, 48, %s278, [#allocation6]
        $region20: #{_lambda_.2} parent=11 // pred_fallthru
          _
        // Predicated region
        $region21: #{_lambda_.2} parent=11 // pred_check
          %p281 = pneg %p109
        $region22: #{_lambda_.2} parent=11 // pred_check_branch
          %283 = sbr.rel (%p281) target = $region24
        $region23: #{_lambda_.2} parent=11 // pred_region
          %285 = vsyncadd [#allocation6], 0
          %s286 = sshll.u32 %s3, 4
          %s287 = int_to_ptr.hbm [resolvable:$true] %s286
          %s288 = sshll.u32 [#allocation7], 4
          %s289 = int_to_ptr.vmem [resolvable:$true] %s288
          %294 = dma.hbm_to_vmem [thread:$0]  %s287, 4096, %s289, [#allocation6], 256, 256, 16
        $region24: #{_lambda_.2} parent=11 // pred_fallthru
          _
        // Predicated region
        $region25: #{_lambda_.2} parent=11 // pred_check
          %p295 = pneg %p130
        $region26: #{_lambda_.2} parent=11 // pred_check_branch
          %297 = sbr.rel (%p295) target = $region28
        $region27: #{_lambda_.2} parent=11 // pred_region
          %299 = vsyncadd [#allocation9], 0
          %s300 = sshll.u32 %s4, 4
          %s301 = int_to_ptr.hbm [resolvable:$true] %s300
          %s302 = sshll.u32 [#allocation8], 4
          %s303 = int_to_ptr.vmem [resolvable:$true] %s302
          %308 = dma.hbm_to_vmem [thread:$0]  %s301, 4096, %s303, [#allocation9], 256, 256, 16
        $region28: #{_lambda_.2} parent=11 // pred_fallthru
          _
        // Predicated region
        $region29: #{_lambda_.2} parent=11 // pred_check
          %p309 = pneg %p151
        $region30: #{_lambda_.2} parent=11 // pred_check_branch
          %311 = sbr.rel (%p309) target = $region32
        $region31: #{_lambda_.2} parent=11 // pred_region
          %313 = vsyncadd [#allocation9], 0
          %s315 = sshll.u32 %s5, 4
          %s316 = int_to_ptr.hbm [resolvable:$true] %s315
          %s317 = sshll.u32 [#allocation10], 4
          %s318 = int_to_ptr.vmem [resolvable:$true] %s317
          %320 = dma.hbm_to_vmem [thread:$0]  %s316, 64, %s318, [#allocation9]
        $region32: #{_lambda_.2} parent=11 // pred_fallthru
          _
        // Predicated region
        $region33: #{_lambda_.2} parent=11 // pred_check
          %p321 = pneg %p172
        $region34: #{_lambda_.2} parent=11 // pred_check_branch
          %323 = sbr.rel (%p321) target = $region36
        $region35: #{_lambda_.2} parent=11 // pred_region
          %325 = vsyncadd [#allocation12], 0
          %s326 = sshll.u32 %s6, 4
          %s327 = int_to_ptr.hbm [resolvable:$true] %s326
          %s328 = sshll.u32 [#allocation11], 4
          %s329 = int_to_ptr.vmem [resolvable:$true] %s328
          %334 = dma.hbm_to_vmem [thread:$0]  %s327, 4096, %s329, [#allocation12], 256, 256, 16
        $region36: #{_lambda_.2} parent=11 // pred_fallthru
          _
        // Predicated region
        $region37: #{_lambda_.2} parent=11 // pred_check
          %p335 = pneg %p193
        $region38: #{_lambda_.2} parent=11 // pred_check_branch
          %337 = sbr.rel (%p335) target = $region40
        $region39: #{_lambda_.2} parent=11 // pred_region
          %339 = vsyncadd [#allocation12], 0
          %s340 = sshll.u32 %s7, 4
          %s341 = int_to_ptr.hbm [resolvable:$true] %s340
          %s342 = sshll.u32 [#allocation13], 4
          %s343 = int_to_ptr.vmem [resolvable:$true] %s342
          %348 = dma.hbm_to_vmem [thread:$0]  %s341, 4096, %s343, [#allocation12], 256, 256, 16
        $region40: #{_lambda_.2} parent=11 // pred_fallthru
          _
        // Predicated region
        $region41: #{_lambda_.2} parent=11 // pred_check
          %p349 = pneg %p214
        $region42: #{_lambda_.2} parent=11 // pred_check_branch
          %351 = sbr.rel (%p349) target = $region44
        $region43: #{_lambda_.2} parent=11 // pred_region
          %353 = vsyncadd [#allocation15], 0
          %s355 = sshll.u32 %s8, 4
          %s356 = int_to_ptr.hbm [resolvable:$true] %s355
          %s357 = sshll.u32 [#allocation14], 4
          %s358 = int_to_ptr.vmem [resolvable:$true] %s357
          %360 = dma.hbm_to_vmem [thread:$0]  %s356, 64, %s358, [#allocation15]
        $region44: #{_lambda_.2} parent=11 // pred_fallthru
          _
      $region12: #{_lambda_.2} parent=5 // pred_fallthru
        _
      %p361 = scmp.lt.s32.totalorder %s20, 2
      // Predicated region
      $region45: #{_lambda_.2} parent=5 // pred_check
        %p362 = pneg %p361
      $region46: #{_lambda_.2} parent=5 // pred_check_branch
        %364 = sbr.rel (%p362) target = $region48
      $region47: #{_lambda_.2} parent=5 // pred_region
        // Predicated region
        $region49: #{_lambda_.2} parent=47 // pred_check
          %p365 = pneg %p40
        $region50: #{_lambda_.2} parent=47 // pred_check_branch
          %367 = sbr.rel (%p365) target = $region52
        $region51: #{_lambda_.2} parent=47 // pred_region
          %p368 = scmp.lt.s32.totalorder %s20, 1
          %s369 = scalar_select %p368, %s20, 1
          %s370 = smul.addr %s369, 3
          %s371 = smul.addr %s370, 4
          %s372 = scalar_lea.vmem %s0, %s371
        $region52: #{_lambda_.2} parent=47 // pred_fallthru
          _
      $region48: #{_lambda_.2} parent=5 // pred_fallthru
        _
      %p373 = scmp.le.s32.totalorder 1, %s20
      %p374 = scmp.lt.s32.totalorder %s20, 3
      %p375 = pnand %p373, %p374
      %p376 = pneg %p375
      // Predicated region
      $region53: #{_lambda_.2} parent=5 // pred_check
        _
      $region54: #{_lambda_.2} parent=5 // pred_check_branch
        %378 = sbr.rel (%p375) target = $region56
      $region55: #{_lambda_.2} parent=5 // pred_region
        %s379 = ssub.s32 %s20, 1
        // Predicated region
        $region57: #{_lambda_.2} parent=55 // pred_check
          %p380 = pneg %p67
        $region58: #{_lambda_.2} parent=55 // pred_check_branch
          %382 = sbr.rel (%p380) target = $region60
        $region59: #{_lambda_.2} parent=55 // pred_region
          %384 = dma.done [#allocation4], 3072
        $region60: #{_lambda_.2} parent=55 // pred_fallthru
          _
        // Predicated region
        $region61: #{_lambda_.2} parent=55 // pred_check
          %p385 = pneg %p88
        $region62: #{_lambda_.2} parent=55 // pred_check_branch
          %387 = sbr.rel (%p385) target = $region64
        $region63: #{_lambda_.2} parent=55 // pred_region
          %389 = dma.done [#allocation6], 48
        $region64: #{_lambda_.2} parent=55 // pred_fallthru
          _
        // Predicated region
        $region65: #{_lambda_.2} parent=55 // pred_check
          %p390 = pneg %p109
        $region66: #{_lambda_.2} parent=55 // pred_check_branch
          %392 = sbr.rel (%p390) target = $region68
        $region67: #{_lambda_.2} parent=55 // pred_region
          %394 = dma.done [#allocation6], 4096
        $region68: #{_lambda_.2} parent=55 // pred_fallthru
          _
        // Predicated region
        $region69: #{_lambda_.2} parent=55 // pred_check
          %p395 = pneg %p130
        $region70: #{_lambda_.2} parent=55 // pred_check_branch
          %397 = sbr.rel (%p395) target = $region72
        $region71: #{_lambda_.2} parent=55 // pred_region
          %399 = dma.done [#allocation9], 4096
        $region72: #{_lambda_.2} parent=55 // pred_fallthru
          _
        // Predicated region
        $region73: #{_lambda_.2} parent=55 // pred_check
          %p400 = pneg %p151
        $region74: #{_lambda_.2} parent=55 // pred_check_branch
          %402 = sbr.rel (%p400) target = $region76
        $region75: #{_lambda_.2} parent=55 // pred_region
          %404 = dma.done [#allocation9], 64
        $region76: #{_lambda_.2} parent=55 // pred_fallthru
          _
        // Predicated region
        $region77: #{_lambda_.2} parent=55 // pred_check
          %p405 = pneg %p172
        $region78: #{_lambda_.2} parent=55 // pred_check_branch
          %407 = sbr.rel (%p405) target = $region80
        $region79: #{_lambda_.2} parent=55 // pred_region
          %409 = dma.done [#allocation12], 4096
        $region80: #{_lambda_.2} parent=55 // pred_fallthru
          _
        // Predicated region
        $region81: #{_lambda_.2} parent=55 // pred_check
          %p410 = pneg %p193
        $region82: #{_lambda_.2} parent=55 // pred_check_branch
          %412 = sbr.rel (%p410) target = $region84
        $region83: #{_lambda_.2} parent=55 // pred_region
          %414 = dma.done [#allocation12], 4096
        $region84: #{_lambda_.2} parent=55 // pred_fallthru
          _
        // Predicated region
        $region85: #{_lambda_.2} parent=55 // pred_check
          %p415 = pneg %p214
        $region86: #{_lambda_.2} parent=55 // pred_check_branch
          %417 = sbr.rel (%p415) target = $region88
        $region87: #{_lambda_.2} parent=55 // pred_region
          %419 = dma.done [#allocation15], 64
        $region88: #{_lambda_.2} parent=55 // pred_fallthru
          _
        %p420 = scmp.lt.s32.totalorder %s25, 1
        %s421 = scalar_select %p420, %s25, 1
        %s422 = smul.addr %s421, 3
        %s423 = smul.addr %s422, 4
        %s424 = scalar_lea.vmem %s0, %s423
        %p425 = pneg %p46
        %p426 = pneg %p43
        %p427 = pneg %p67
        %p428 = pneg %p64
        %p429 = pneg %p88
        %p430 = pneg %p85
        %p431 = pneg %p109
        %p432 = pneg %p106
        %p433 = pneg %p130
        %p434 = pneg %p127
        %p435 = pneg %p151
        %p436 = pneg %p148
        %p437 = pneg %p172
        %p438 = pneg %p169
        %p439 = pneg %p193
        %p440 = pneg %p190
        %p441 = pneg %p214
        %p442 = pneg %p211
        %p443 = pneg %p240
        %p444 = pneg %p237
        %p445 = scmp.lt.s32.totalorder %s25, 1
        %s446 = scalar_select %p445, %s25, 1
        %s447 = smul.addr %s446, 8
        %s448 = scalar_lea.vmem %s9, %s447
        %p449 = scmp.lt.s32.totalorder %s25, 1
        %s450 = scalar_select %p449, %s25, 1
        %s451 = smul.addr %s450, 3
        %s452 = smul.addr %s451, 4
        %s453 = scalar_lea.vmem %s0, %s452
        %p454 = scmp.lt.s32.totalorder %s25, 1
        %s455 = scalar_select %p454, %s25, 1
        %s456 = smul.addr %s455, 8
        %s457 = scalar_lea.vmem %s9, %s456
        %v459 = vld [vmem:[%s453] sm:$0xf]
        %v460 = vld [vmem:[%s453 + $0x4] sm:$0xf]
        %v461 = vld [vmem:[%s453 + $0x8] sm:$0xf]
        %v462 = vld [vmem:[#allocation3] sm:$0xff]
        %v463 = vld [vmem:[#allocation3 + $0x8] sm:$0xf]
        %v464 = vld [vmem:[#allocation3 + $0xc] sm:$0xff]
        %v465 = vld [vmem:[#allocation3 + $0x14] sm:$0xf]
        %v466 = vld [vmem:[#allocation3 + $0x18] sm:$0xff]
        %v467 = vld [vmem:[#allocation3 + $0x20] sm:$0xf]
        %v468 = vld [vmem:[#allocation3 + $0x24] sm:$0xff]
        %v469 = vld [vmem:[#allocation3 + $0x2c] sm:$0xf]
        %v470 = vld [vmem:[#allocation3 + $0x30] sm:$0xff]
        %v471 = vld [vmem:[#allocation3 + $0x38] sm:$0xf]
        %v472 = vld [vmem:[#allocation3 + $0x3c] sm:$0xff]
        %v473 = vld [vmem:[#allocation3 + $0x44] sm:$0xf]
        %v474 = vld [vmem:[#allocation3 + $0x48] sm:$0xff]
        %v475 = vld [vmem:[#allocation3 + $0x50] sm:$0xf]
        %v476 = vld [vmem:[#allocation3 + $0x54] sm:$0xff]
        %v477 = vld [vmem:[#allocation3 + $0x5c] sm:$0xf]
        %v478 = vld [vmem:[#allocation3 + $0x60] sm:$0xff]
        %v479 = vld [vmem:[#allocation3 + $0x68] sm:$0xf]
        %v480 = vld [vmem:[#allocation3 + $0x6c] sm:$0xff]
        %v481 = vld [vmem:[#allocation3 + $0x74] sm:$0xf]
        %v482 = vld [vmem:[#allocation3 + $0x78] sm:$0xff]
        %v483 = vld [vmem:[#allocation3 + $0x80] sm:$0xf]
        %v484 = vld [vmem:[#allocation3 + $0x84] sm:$0xff]
        %v485 = vld [vmem:[#allocation3 + $0x8c] sm:$0xf]
        %v486 = vld [vmem:[#allocation3 + $0x90] sm:$0xff]
        %v487 = vld [vmem:[#allocation3 + $0x98] sm:$0xf]
        %v488 = vld [vmem:[#allocation3 + $0x9c] sm:$0xff]
        %v489 = vld [vmem:[#allocation3 + $0xa4] sm:$0xf]
        %v490 = vld [vmem:[#allocation3 + $0xa8] sm:$0xff]
        %v491 = vld [vmem:[#allocation3 + $0xb0] sm:$0xf]
        %v492 = vld [vmem:[#allocation3 + $0xb4] sm:$0xff]
        %v493 = vld [vmem:[#allocation3 + $0xbc] sm:$0xf]
        %v494 = vld [vmem:[#allocation5] sm:$0x7]
        %v496 = vperm.slane %v494, 0
        %v497 = vperm.slane %v494, 1
        %v498 = vperm.slane %v494, 2
        %v505 = vunpack.c.l.b16 %v459
        %v506 = vunpack.c.l.b16 %v460
        %v507 = vunpack.c.l.b16 %v461
        %v508 = vpack.c.b16 %v506, %v505
        %v509 = vpack.c.b16 %v507, %v507
        %v544 = vunpack.c.l.b16 %v462
        %v545 = vunpack.c.h.b16 %v462
        %v546 = vunpack.c.l.b16 %v463
        %v547 = vunpack.c.l.b16 %v464
        %v548 = vunpack.c.h.b16 %v464
        %v549 = vunpack.c.l.b16 %v465
        %v550 = vunpack.c.l.b16 %v466
        %v551 = vunpack.c.h.b16 %v466
        %v552 = vunpack.c.l.b16 %v467
        %v553 = vunpack.c.l.b16 %v468
        %v554 = vunpack.c.h.b16 %v468
        %v555 = vunpack.c.l.b16 %v469
        %v556 = vunpack.c.l.b16 %v470
        %v557 = vunpack.c.h.b16 %v470
        %v558 = vunpack.c.l.b16 %v471
        %v559 = vunpack.c.l.b16 %v472
        %v560 = vunpack.c.h.b16 %v472
        %v561 = vunpack.c.l.b16 %v473
        %v562 = vunpack.c.l.b16 %v474
        %v563 = vunpack.c.h.b16 %v474
        %v564 = vunpack.c.l.b16 %v475
        %v565 = vunpack.c.l.b16 %v476
        %v566 = vunpack.c.h.b16 %v476
        %v567 = vunpack.c.l.b16 %v477
        %v568 = vunpack.c.l.b16 %v478
        %v569 = vunpack.c.h.b16 %v478
        %v570 = vunpack.c.l.b16 %v479
        %v571 = vunpack.c.l.b16 %v480
        %v572 = vunpack.c.h.b16 %v480
        %v573 = vunpack.c.l.b16 %v481
        %v574 = vunpack.c.l.b16 %v482
        %v575 = vunpack.c.h.b16 %v482
        %v576 = vunpack.c.l.b16 %v483
        %v577 = vunpack.c.l.b16 %v484
        %v578 = vunpack.c.h.b16 %v484
        %v579 = vunpack.c.l.b16 %v485
        %v580 = vunpack.c.l.b16 %v486
        %v581 = vunpack.c.h.b16 %v486
        %v582 = vunpack.c.l.b16 %v487
        %v583 = vunpack.c.l.b16 %v488
        %v584 = vunpack.c.h.b16 %v488
        %v585 = vunpack.c.l.b16 %v489
        %v586 = vunpack.c.l.b16 %v490
        %v587 = vunpack.c.h.b16 %v490
        %v588 = vunpack.c.l.b16 %v491
        %v589 = vunpack.c.l.b16 %v492
        %v590 = vunpack.c.h.b16 %v492
        %v591 = vunpack.c.l.b16 %v493
        %v592 = vpack.c.b16 %v547, %v544
        %v593 = vpack.c.b16 %v548, %v545
        %v594 = vpack.c.b16 %v549, %v546
        %v595 = vpack.c.b16 %v553, %v550
        %v596 = vpack.c.b16 %v554, %v551
        %v597 = vpack.c.b16 %v555, %v552
        %v598 = vpack.c.b16 %v559, %v556
        %v599 = vpack.c.b16 %v560, %v557
        %v600 = vpack.c.b16 %v561, %v558
        %v601 = vpack.c.b16 %v565, %v562
        %v602 = vpack.c.b16 %v566, %v563
        %v603 = vpack.c.b16 %v567, %v564
        %v604 = vpack.c.b16 %v571, %v568
        %v605 = vpack.c.b16 %v572, %v569
        %v606 = vpack.c.b16 %v573, %v570
        %v607 = vpack.c.b16 %v577, %v574
        %v608 = vpack.c.b16 %v578, %v575
        %v609 = vpack.c.b16 %v579, %v576
        %v610 = vpack.c.b16 %v583, %v580
        %v611 = vpack.c.b16 %v584, %v581
        %v612 = vpack.c.b16 %v585, %v582
        %v613 = vpack.c.b16 %v589, %v586
        %v614 = vpack.c.b16 %v590, %v587
        %v615 = vpack.c.b16 %v591, %v588
        %640 = vmatpush.bf16.msra.mxu0 %v613
        %641 = vmatpush.bf16.msra.mxu0 %v610
        %642 = vmatpush.bf16.msra.mxu0 %v607
        %643 = vmatpush.bf16.msra.mxu0 %v604
        %644 = vmatpush.bf16.msra.mxu0 %v601
        %645 = vmatpush.bf16.msra.mxu0 %v598
        %646 = vmatpush.bf16.msra.mxu0 %v595
        %647 = vmatpush.bf16.msra.mxu0 %v592
        %648 = vmatmul.bf16.gmra.mxu0 %v508
        %v649 = vpop.f32.mrf.mxu0
        %v650 = vadd.f32 %v496, %v649
        %v651 = vpop.f32.mrf.mxu0
        %v652 = vadd.f32 %v496, %v651
        %653 = vmatmul.bf16.gmra.mxu0 %v509
        %v654 = vpop.f32.mrf.mxu0
        %v655 = vadd.f32 %v496, %v654
        %v656 = vpop.f32.mrf.mxu0
        %657 = vdwg.mxu0
        %658 = vmatpush.bf16.msra.mxu0 %v614
        %659 = vmatpush.bf16.msra.mxu0 %v611
        %660 = vmatpush.bf16.msra.mxu0 %v608
        %661 = vmatpush.bf16.msra.mxu0 %v605
        %662 = vmatpush.bf16.msra.mxu0 %v602
        %663 = vmatpush.bf16.msra.mxu0 %v599
        %664 = vmatpush.bf16.msra.mxu0 %v596
        %665 = vmatpush.bf16.msra.mxu0 %v593
        %666 = vmatmul.bf16.gmra.mxu0 %v508
        %v667 = vpop.f32.mrf.mxu0
        %v668 = vadd.f32 %v497, %v667
        %v669 = vpop.f32.mrf.mxu0
        %v670 = vadd.f32 %v497, %v669
        %671 = vmatmul.bf16.gmra.mxu0 %v509
        %v672 = vpop.f32.mrf.mxu0
        %v673 = vadd.f32 %v497, %v672
        %v674 = vpop.f32.mrf.mxu0
        %675 = vdwg.mxu0
        %676 = vmatpush.bf16.msra.mxu0 %v615
        %677 = vmatpush.bf16.msra.mxu0 %v612
        %678 = vmatpush.bf16.msra.mxu0 %v609
        %679 = vmatpush.bf16.msra.mxu0 %v606
        %680 = vmatpush.bf16.msra.mxu0 %v603
        %681 = vmatpush.bf16.msra.mxu0 %v600
        %682 = vmatpush.bf16.msra.mxu0 %v597
        %683 = vmatpush.bf16.msra.mxu0 %v594
        %684 = vmatmul.bf16.gmra.mxu0 %v508
        %v685 = vpop.f32.mrf.mxu0
        %v686 = vadd.f32 %v498, %v685
        %v687 = vpop.f32.mrf.mxu0
        %v688 = vadd.f32 %v498, %v687
        %689 = vmatmul.bf16.gmra.mxu0 %v509
        %v690 = vpop.f32.mrf.mxu0
        %v691 = vadd.f32 %v498, %v690
        %v692 = vpop.f32.mrf.mxu0
        %693 = vdwg.mxu0
        %v694 = vpack.c.bf16 %v652, %v650
        %v695 = vpack.c.bf16 %v655, %v655
        %v696 = vpack.c.bf16 %v670, %v668
        %v697 = vpack.c.bf16 %v673, %v673
        %v698 = vpack.c.bf16 %v688, %v686
        %v699 = vpack.c.bf16 %v691, %v691
        %700 = vmatpush.bf16.xpose.msra.mxu0 0
        %701 = vmatpush.bf16.xpose.msra.mxu0 0
        %702 = vmatpush.bf16.xpose.msra.mxu0 0
        %703 = vmatpush.bf16.xpose.msra.mxu0 0
        %704 = vmatpush.bf16.xpose.msra.mxu0 0
        %705 = vmatpush.bf16.xpose.msra.mxu0 0
        %706 = vmatpush.bf16.xpose.msra.mxu0 %v697
        %707 = vmatpush.bf16.xpose.msra.mxu0 %v696
        %708 = vmatmul.bf16.gmra.mxu0 %v694
        %v709 = vpop.f32.mrf.mxu0
        %v710 = vadd.f32 0.0, %v709
        %v711 = vpop.f32.mrf.mxu0
        %v712 = vadd.f32 0.0, %v711
        %713 = vmatmul.bf16.gmra.mxu0 %v695
        %v714 = vpop.f32.mrf.mxu0
        %v715 = vadd.f32 0.0, %v714
        %v716 = vpop.f32.mrf.mxu0
        %717 = vdwg.mxu0
        %v718 = vlaneseq
        %v719 = vshrl.u32 %v718, 7
        %v720 = vadd.s32 %v719, 8
        %v721 = vadd.s32 %v719, 16
        %vm722 = vcmp.lt.s32.totalorder %v719, 0
        %v723 = vsub.s32 0, %v719
        %v724 = vsel %vm722, %v723, %v719
        %v725 = vshrl.u32 %v724, 3
        %v726 = vand.u32 %v724, 7
        %v727 = vsub.s32 0, %v726
        %v728 = vsel %vm722, %v727, %v726
        %vm729 = vcmp.lt.s32.totalorder %v720, 0
        %v730 = vsub.s32 0, %v720
        %v731 = vsel %vm729, %v730, %v720
        %v732 = vshrl.u32 %v731, 3
        %v733 = vand.u32 %v731, 7
        %v734 = vsub.s32 0, %v733
        %v735 = vsel %vm729, %v734, %v733
        %vm736 = vcmp.lt.s32.totalorder %v721, 0
        %v737 = vsub.s32 0, %v721
        %v738 = vsel %vm736, %v737, %v721
        %v739 = vshrl.u32 %v738, 3
        %v740 = vand.u32 %v738, 7
        %v741 = vsub.s32 0, %v740
        %v742 = vsel %vm736, %v741, %v740
        %vm743 = vcmp.ne.s32.totalorder %v728, 0
        %vm744 = vcmp.ne.s32.totalorder %v735, 0
        %vm745 = vcmp.ne.s32.totalorder %v742, 0
        %vm746 = vcmp.lt.s32.totalorder %v728, 0
        %vm747 = vcmp.lt.s32.totalorder %v735, 0
        %vm748 = vcmp.lt.s32.totalorder %v742, 0
        %vm749 = vmand %vm746, %vm743
        %vm750 = vmand %vm747, %vm744
        %vm751 = vmand %vm748, %vm745
        %v752 = vadd.s32 %v728, 8
        %v753 = vadd.s32 %v735, 8
        %v754 = vadd.s32 %v742, 8
        %v755 = vsel %vm749, %v752, %v728
        %v756 = vsel %vm750, %v753, %v735
        %v757 = vsel %vm751, %v754, %v742
        %v758 = vlaneseq
        %v759 = vand.u32 %v758, 127
        %vm760 = vcmp.lt.s32.totalorder %v759, 0
        %v761 = vsub.s32 0, %v759
        %v762 = vsel %vm760, %v761, %v759
        %v763 = vshrl.u32 %v762, 3
        %v764 = vand.u32 %v762, 7
        %v765 = vsub.s32 0, %v764
        %v766 = vsel %vm760, %v765, %v764
        %vm767 = vcmp.ne.s32.totalorder %v766, 0
        %vm768 = vcmp.lt.s32.totalorder %v766, 0
        %vm769 = vmand %vm768, %vm767
        %v770 = vadd.s32 %v766, 8
        %v771 = vsel %vm769, %v770, %v766
        %vm772 = vcmp.eq.s32.totalorder %v755, %v771
        %vm773 = vcmp.eq.s32.totalorder %v756, %v771
        %vm774 = vcmp.eq.s32.totalorder %v757, %v771
        %v775 = vmul.f32 %v710, 0.022097087
        %v776 = vmul.f32 %v712, 0.022097087
        %v777 = vmul.f32 %v715, 0.022097087
        %v778 = vsel %vm772, %v775, -1e+30
        %v779 = vsel %vm773, %v776, -1e+30
        %v780 = vsel %vm774, %v777, -1e+30
        %vm781 = vcmask 195584
        %v782 = vsel %vm781, %v778, -inf
        %783 = vmax.xlane.f32.xlu0 %v782
        %v784 = vpop.xlane.xlu0 %783
        %v785 = vsel %vm781, %v779, -inf
        %786 = vmax.xlane.f32.xlu0 %v785
        %v787 = vpop.xlane.xlu0 %786
        %v788 = vsel %vm781, %v780, -inf
        %789 = vmax.xlane.f32.xlu0 %v788
        %v790 = vpop.xlane.xlu0 %789
        %v791 = vsub.f32 %v778, %v784
        %v792 = vsub.f32 %v779, %v787
        %v793 = vsub.f32 %v780, %v790
        %v794 = vmul.f32 %v791, 1.442695
        %v795 = vpow.pop %v794
        %v796 = vmul.f32 %v792, 1.442695
        %v797 = vpow.pop %v796
        %v798 = vmul.f32 %v793, 1.442695
        %v799 = vpow.pop %v798
        %v800 = vsel %vm781, %v795, 0.0
        %801 = vadd.xlane.f32.xlu0 %v800
        %v802 = vpop.xlane.xlu0 %801
        %v803 = vsel %vm781, %v797, 0.0
        %804 = vadd.xlane.f32.xlu0 %v803
        %v805 = vpop.xlane.xlu0 %804
        %v806 = vsel %vm781, %v799, 0.0
        %807 = vadd.xlane.f32.xlu0 %v806
        %v808 = vpop.xlane.xlu0 %807
        %v809 = vrcp.pop %v802
        %v810 = vrcp.pop %v805
        %v811 = vrcp.pop %v808
        %v812 = vmul.f32 %v795, %v809
        %v813 = vmul.f32 %v797, %v810
        %v814 = vmul.f32 %v799, %v811
        %v815 = vpack.c.bf16 %v813, %v812
        %v816 = vpack.c.bf16 %v814, %v814
        %v818 = vsel %vm781, %v815, 0
        %v821 = vsel %vm781, %v816, 0
        %vm823 = vcmask 1043456
        %v825 = vsel %vm823, %v699, 0
        %827 = vmatpush.bf16.msra.mxu0 0
        %828 = vmatpush.bf16.msra.mxu0 0
        %829 = vmatpush.bf16.msra.mxu0 0
        %830 = vmatpush.bf16.msra.mxu0 0
        %831 = vmatpush.bf16.msra.mxu0 0
        %832 = vmatpush.bf16.msra.mxu0 0
        %833 = vmatpush.bf16.msra.mxu0 %v825
        %834 = vmatpush.bf16.msra.mxu0 %v698
        %835 = vmatmul.bf16.gmra.mxu0 %v818
        %v836 = vpop.f32.mrf.mxu0
        %v837 = vadd.f32 0.0, %v836
        %v838 = vpop.f32.mrf.mxu0
        %v839 = vadd.f32 0.0, %v838
        %840 = vmatmul.bf16.gmra.mxu0 %v821
        %v841 = vpop.f32.mrf.mxu0
        %v842 = vadd.f32 0.0, %v841
        %v843 = vpop.f32.mrf.mxu0
        %844 = vdwg.mxu0
        %v845 = vpack.c.bf16 %v839, %v837
        %v846 = vpack.c.bf16 %v842, %v842
        %v847 = vld [vmem:[#allocation7] sm:$0xff]
        %v848 = vld [vmem:[#allocation7 + $0x8] sm:$0xff]
        %v849 = vld [vmem:[#allocation7 + $0x10] sm:$0xff]
        %v850 = vld [vmem:[#allocation7 + $0x18] sm:$0xff]
        %v851 = vld [vmem:[#allocation7 + $0x20] sm:$0xff]
        %v852 = vld [vmem:[#allocation7 + $0x28] sm:$0xff]
        %v853 = vld [vmem:[#allocation7 + $0x30] sm:$0xff]
        %v854 = vld [vmem:[#allocation7 + $0x38] sm:$0xff]
        %v855 = vld [vmem:[#allocation7 + $0x40] sm:$0xff]
        %v856 = vld [vmem:[#allocation7 + $0x48] sm:$0xff]
        %v857 = vld [vmem:[#allocation7 + $0x50] sm:$0xff]
        %v858 = vld [vmem:[#allocation7 + $0x58] sm:$0xff]
        %v859 = vld [vmem:[#allocation7 + $0x60] sm:$0xff]
        %v860 = vld [vmem:[#allocation7 + $0x68] sm:$0xff]
        %v861 = vld [vmem:[#allocation7 + $0x70] sm:$0xff]
        %v862 = vld [vmem:[#allocation7 + $0x78] sm:$0xff]
        %v863 = vld [vmem:[#allocation7 + $0x80] sm:$0xff]
        %v864 = vld [vmem:[#allocation7 + $0x88] sm:$0xff]
        %v865 = vld [vmem:[#allocation7 + $0x90] sm:$0xff]
        %v866 = vld [vmem:[#allocation7 + $0x98] sm:$0xff]
        %v867 = vld [vmem:[#allocation7 + $0xa0] sm:$0xff]
        %v868 = vld [vmem:[#allocation7 + $0xa8] sm:$0xff]
        %v869 = vld [vmem:[#allocation7 + $0xb0] sm:$0xff]
        %v870 = vld [vmem:[#allocation7 + $0xb8] sm:$0xff]
        %v871 = vld [vmem:[#allocation7 + $0xc0] sm:$0xff]
        %v872 = vld [vmem:[#allocation7 + $0xc8] sm:$0xff]
        %v873 = vld [vmem:[#allocation7 + $0xd0] sm:$0xff]
        %v874 = vld [vmem:[#allocation7 + $0xd8] sm:$0xff]
        %v875 = vld [vmem:[#allocation7 + $0xe0] sm:$0xff]
        %v876 = vld [vmem:[#allocation7 + $0xe8] sm:$0xff]
        %v877 = vld [vmem:[#allocation7 + $0xf0] sm:$0xff]
        %v878 = vld [vmem:[#allocation7 + $0xf8] sm:$0xff]
        %v879 = vld [vmem:[#allocation10] sm:$0xf]
        %v881 = vperm.slane %v879, 0
        %v882 = vperm.slane %v879, 1
        %v883 = vperm.slane %v879, 2
        %v884 = vperm.slane %v879, 3
        %v921 = vunpack.c.l.b16 %v847
        %v922 = vunpack.c.h.b16 %v847
        %v923 = vunpack.c.l.b16 %v848
        %v924 = vunpack.c.h.b16 %v848
        %v925 = vunpack.c.l.b16 %v849
        %v926 = vunpack.c.h.b16 %v849
        %v927 = vunpack.c.l.b16 %v850
        %v928 = vunpack.c.h.b16 %v850
        %v929 = vunpack.c.l.b16 %v851
        %v930 = vunpack.c.h.b16 %v851
        %v931 = vunpack.c.l.b16 %v852
        %v932 = vunpack.c.h.b16 %v852
        %v933 = vunpack.c.l.b16 %v853
        %v934 = vunpack.c.h.b16 %v853
        %v935 = vunpack.c.l.b16 %v854
        %v936 = vunpack.c.h.b16 %v854
        %v937 = vunpack.c.l.b16 %v855
        %v938 = vunpack.c.h.b16 %v855
        %v939 = vunpack.c.l.b16 %v856
        %v940 = vunpack.c.h.b16 %v856
        %v941 = vunpack.c.l.b16 %v857
        %v942 = vunpack.c.h.b16 %v857
        %v943 = vunpack.c.l.b16 %v858
        %v944 = vunpack.c.h.b16 %v858
        %v945 = vunpack.c.l.b16 %v859
        %v946 = vunpack.c.h.b16 %v859
        %v947 = vunpack.c.l.b16 %v860
        %v948 = vunpack.c.h.b16 %v860
        %v949 = vunpack.c.l.b16 %v861
        %v950 = vunpack.c.h.b16 %v861
        %v951 = vunpack.c.l.b16 %v862
        %v952 = vunpack.c.h.b16 %v862
        %v953 = vunpack.c.l.b16 %v863
        %v954 = vunpack.c.h.b16 %v863
        %v955 = vunpack.c.l.b16 %v864
        %v956 = vunpack.c.h.b16 %v864
        %v957 = vunpack.c.l.b16 %v865
        %v958 = vunpack.c.h.b16 %v865
        %v959 = vunpack.c.l.b16 %v866
        %v960 = vunpack.c.h.b16 %v866
        %v961 = vunpack.c.l.b16 %v867
        %v962 = vunpack.c.h.b16 %v867
        %v963 = vunpack.c.l.b16 %v868
        %v964 = vunpack.c.h.b16 %v868
        %v965 = vunpack.c.l.b16 %v869
        %v966 = vunpack.c.h.b16 %v869
        %v967 = vunpack.c.l.b16 %v870
        %v968 = vunpack.c.h.b16 %v870
        %v969 = vunpack.c.l.b16 %v871
        %v970 = vunpack.c.h.b16 %v871
        %v971 = vunpack.c.l.b16 %v872
        %v972 = vunpack.c.h.b16 %v872
        %v973 = vunpack.c.l.b16 %v873
        %v974 = vunpack.c.h.b16 %v873
        %v975 = vunpack.c.l.b16 %v874
        %v976 = vunpack.c.h.b16 %v874
        %v977 = vunpack.c.l.b16 %v875
        %v978 = vunpack.c.h.b16 %v875
        %v979 = vunpack.c.l.b16 %v876
        %v980 = vunpack.c.h.b16 %v876
        %v981 = vunpack.c.l.b16 %v877
        %v982 = vunpack.c.h.b16 %v877
        %v983 = vunpack.c.l.b16 %v878
        %v984 = vunpack.c.h.b16 %v878
        %v985 = vpack.c.b16 %v925, %v921
        %v986 = vpack.c.b16 %v926, %v922
        %v987 = vpack.c.b16 %v927, %v923
        %v988 = vpack.c.b16 %v928, %v924
        %v989 = vpack.c.b16 %v933, %v929
        %v990 = vpack.c.b16 %v934, %v930
        %v991 = vpack.c.b16 %v935, %v931
        %v992 = vpack.c.b16 %v936, %v932
        %v993 = vpack.c.b16 %v941, %v937
        %v994 = vpack.c.b16 %v942, %v938
        %v995 = vpack.c.b16 %v943, %v939
        %v996 = vpack.c.b16 %v944, %v940
        %v997 = vpack.c.b16 %v949, %v945
        %v998 = vpack.c.b16 %v950, %v946
        %v999 = vpack.c.b16 %v951, %v947
        %v1000 = vpack.c.b16 %v952, %v948
        %v1001 = vpack.c.b16 %v957, %v953
        %v1002 = vpack.c.b16 %v958, %v954
        %v1003 = vpack.c.b16 %v959, %v955
        %v1004 = vpack.c.b16 %v960, %v956
        %v1005 = vpack.c.b16 %v965, %v961
        %v1006 = vpack.c.b16 %v966, %v962
        %v1007 = vpack.c.b16 %v967, %v963
        %v1008 = vpack.c.b16 %v968, %v964
        %v1009 = vpack.c.b16 %v973, %v969
        %v1010 = vpack.c.b16 %v974, %v970
        %v1011 = vpack.c.b16 %v975, %v971
        %v1012 = vpack.c.b16 %v976, %v972
        %v1013 = vpack.c.b16 %v981, %v977
        %v1014 = vpack.c.b16 %v982, %v978
        %v1015 = vpack.c.b16 %v983, %v979
        %v1016 = vpack.c.b16 %v984, %v980
        %1049 = vmatpush.bf16.msra.mxu0 %v1013
        %1050 = vmatpush.bf16.msra.mxu0 %v1009
        %1051 = vmatpush.bf16.msra.mxu0 %v1005
        %1052 = vmatpush.bf16.msra.mxu0 %v1001
        %1053 = vmatpush.bf16.msra.mxu0 %v997
        %1054 = vmatpush.bf16.msra.mxu0 %v993
        %1055 = vmatpush.bf16.msra.mxu0 %v989
        %1056 = vmatpush.bf16.msra.mxu0 %v985
        %1057 = vmatmul.bf16.gmra.mxu0 %v845
        %v1058 = vpop.f32.mrf.mxu0
        %v1059 = vadd.f32 %v881, %v1058
        %v1060 = vpop.f32.mrf.mxu0
        %v1061 = vadd.f32 %v881, %v1060
        %1062 = vmatmul.bf16.gmra.mxu0 %v846
        %v1063 = vpop.f32.mrf.mxu0
        %v1064 = vadd.f32 %v881, %v1063
        %v1065 = vpop.f32.mrf.mxu0
        %1066 = vdwg.mxu0
        %1067 = vmatpush.bf16.msra.mxu0 %v1014
        %1068 = vmatpush.bf16.msra.mxu0 %v1010
        %1069 = vmatpush.bf16.msra.mxu0 %v1006
        %1070 = vmatpush.bf16.msra.mxu0 %v1002
        %1071 = vmatpush.bf16.msra.mxu0 %v998
        %1072 = vmatpush.bf16.msra.mxu0 %v994
        %1073 = vmatpush.bf16.msra.mxu0 %v990
        %1074 = vmatpush.bf16.msra.mxu0 %v986
        %1075 = vmatmul.bf16.gmra.mxu0 %v845
        %v1076 = vpop.f32.mrf.mxu0
        %v1077 = vadd.f32 %v882, %v1076
        %v1078 = vpop.f32.mrf.mxu0
        %v1079 = vadd.f32 %v882, %v1078
        %1080 = vmatmul.bf16.gmra.mxu0 %v846
        %v1081 = vpop.f32.mrf.mxu0
        %v1082 = vadd.f32 %v882, %v1081
        %v1083 = vpop.f32.mrf.mxu0
        %1084 = vdwg.mxu0
        %1085 = vmatpush.bf16.msra.mxu0 %v1015
        %1086 = vmatpush.bf16.msra.mxu0 %v1011
        %1087 = vmatpush.bf16.msra.mxu0 %v1007
        %1088 = vmatpush.bf16.msra.mxu0 %v1003
        %1089 = vmatpush.bf16.msra.mxu0 %v999
        %1090 = vmatpush.bf16.msra.mxu0 %v995
        %1091 = vmatpush.bf16.msra.mxu0 %v991
        %1092 = vmatpush.bf16.msra.mxu0 %v987
        %1093 = vmatmul.bf16.gmra.mxu0 %v845
        %v1094 = vpop.f32.mrf.mxu0
        %v1095 = vadd.f32 %v883, %v1094
        %v1096 = vpop.f32.mrf.mxu0
        %v1097 = vadd.f32 %v883, %v1096
        %1098 = vmatmul.bf16.gmra.mxu0 %v846
        %v1099 = vpop.f32.mrf.mxu0
        %v1100 = vadd.f32 %v883, %v1099
        %v1101 = vpop.f32.mrf.mxu0
        %1102 = vdwg.mxu0
        %1103 = vmatpush.bf16.msra.mxu0 %v1016
        %1104 = vmatpush.bf16.msra.mxu0 %v1012
        %1105 = vmatpush.bf16.msra.mxu0 %v1008
        %1106 = vmatpush.bf16.msra.mxu0 %v1004
        %1107 = vmatpush.bf16.msra.mxu0 %v1000
        %1108 = vmatpush.bf16.msra.mxu0 %v996
        %1109 = vmatpush.bf16.msra.mxu0 %v992
        %1110 = vmatpush.bf16.msra.mxu0 %v988
        %1111 = vmatmul.bf16.gmra.mxu0 %v845
        %v1112 = vpop.f32.mrf.mxu0
        %v1113 = vadd.f32 %v884, %v1112
        %v1114 = vpop.f32.mrf.mxu0
        %v1115 = vadd.f32 %v884, %v1114
        %1116 = vmatmul.bf16.gmra.mxu0 %v846
        %v1117 = vpop.f32.mrf.mxu0
        %v1118 = vadd.f32 %v884, %v1117
        %v1119 = vpop.f32.mrf.mxu0
        %1120 = vdwg.mxu0
        %1121 = vst [vmem:[#allocation2] sm:$0xff] %v1059
        %1122 = vst [vmem:[#allocation2 + $0x8] sm:$0xff] %v1077
        %1123 = vst [vmem:[#allocation2 + $0x10] sm:$0xff] %v1095
        %1124 = vst [vmem:[#allocation2 + $0x18] sm:$0xff] %v1113
        %1125 = vst [vmem:[#allocation2 + $0x20] sm:$0xff] %v1061
        %1126 = vst [vmem:[#allocation2 + $0x28] sm:$0xff] %v1079
        %1127 = vst [vmem:[#allocation2 + $0x30] sm:$0xff] %v1097
        %1128 = vst [vmem:[#allocation2 + $0x38] sm:$0xff] %v1115
        %1129 = vst [vmem:[#allocation2 + $0x40] sm:$0xff] %v1064
        %1130 = vst [vmem:[#allocation2 + $0x48] sm:$0xff] %v1082
        %1131 = vst [vmem:[#allocation2 + $0x50] sm:$0xff] %v1100
        %1132 = vst [vmem:[#allocation2 + $0x58] sm:$0xff] %v1118
        %v1133 = vld [vmem:[#allocation8] sm:$0xff]
        %v1134 = vld [vmem:[#allocation8 + $0x8] sm:$0xff]
        %v1135 = vld [vmem:[#allocation8 + $0x10] sm:$0xff]
        %v1136 = vld [vmem:[#allocation8 + $0x18] sm:$0xff]
        %v1137 = vld [vmem:[#allocation8 + $0x20] sm:$0xff]
        %v1138 = vld [vmem:[#allocation8 + $0x28] sm:$0xff]
        %v1139 = vld [vmem:[#allocation8 + $0x30] sm:$0xff]
        %v1140 = vld [vmem:[#allocation8 + $0x38] sm:$0xff]
        %v1141 = vld [vmem:[#allocation8 + $0x40] sm:$0xff]
        %v1142 = vld [vmem:[#allocation8 + $0x48] sm:$0xff]
        %v1143 = vld [vmem:[#allocation8 + $0x50] sm:$0xff]
        %v1144 = vld [vmem:[#allocation8 + $0x58] sm:$0xff]
        %v1145 = vld [vmem:[#allocation8 + $0x60] sm:$0xff]
        %v1146 = vld [vmem:[#allocation8 + $0x68] sm:$0xff]
        %v1147 = vld [vmem:[#allocation8 + $0x70] sm:$0xff]
        %v1148 = vld [vmem:[#allocation8 + $0x78] sm:$0xff]
        %v1149 = vld [vmem:[#allocation8 + $0x80] sm:$0xff]
        %v1150 = vld [vmem:[#allocation8 + $0x88] sm:$0xff]
        %v1151 = vld [vmem:[#allocation8 + $0x90] sm:$0xff]
        %v1152 = vld [vmem:[#allocation8 + $0x98] sm:$0xff]
        %v1153 = vld [vmem:[#allocation8 + $0xa0] sm:$0xff]
        %v1154 = vld [vmem:[#allocation8 + $0xa8] sm:$0xff]
        %v1155 = vld [vmem:[#allocation8 + $0xb0] sm:$0xff]
        %v1156 = vld [vmem:[#allocation8 + $0xb8] sm:$0xff]
        %v1157 = vld [vmem:[#allocation8 + $0xc0] sm:$0xff]
        %v1158 = vld [vmem:[#allocation8 + $0xc8] sm:$0xff]
        %v1159 = vld [vmem:[#allocation8 + $0xd0] sm:$0xff]
        %v1160 = vld [vmem:[#allocation8 + $0xd8] sm:$0xff]
        %v1161 = vld [vmem:[#allocation8 + $0xe0] sm:$0xff]
        %v1162 = vld [vmem:[#allocation8 + $0xe8] sm:$0xff]
        %v1163 = vld [vmem:[#allocation8 + $0xf0] sm:$0xff]
        %v1164 = vld [vmem:[#allocation8 + $0xf8] sm:$0xff]
        %v1165 = vld [vmem:[#allocation2] sm:$0xff]
        %v1166 = vld [vmem:[#allocation2 + $0x8] sm:$0xff]
        %v1167 = vld [vmem:[#allocation2 + $0x10] sm:$0xff]
        %v1168 = vld [vmem:[#allocation2 + $0x18] sm:$0xff]
        %v1201 = vunpack.c.l.b16 %v1133
        %v1202 = vunpack.c.h.b16 %v1133
        %v1203 = vunpack.c.l.b16 %v1134
        %v1204 = vunpack.c.h.b16 %v1134
        %v1205 = vunpack.c.l.b16 %v1135
        %v1206 = vunpack.c.h.b16 %v1135
        %v1207 = vunpack.c.l.b16 %v1136
        %v1208 = vunpack.c.h.b16 %v1136
        %v1209 = vunpack.c.l.b16 %v1137
        %v1210 = vunpack.c.h.b16 %v1137
        %v1211 = vunpack.c.l.b16 %v1138
        %v1212 = vunpack.c.h.b16 %v1138
        %v1213 = vunpack.c.l.b16 %v1139
        %v1214 = vunpack.c.h.b16 %v1139
        %v1215 = vunpack.c.l.b16 %v1140
        %v1216 = vunpack.c.h.b16 %v1140
        %v1217 = vunpack.c.l.b16 %v1141
        %v1218 = vunpack.c.h.b16 %v1141
        %v1219 = vunpack.c.l.b16 %v1142
        %v1220 = vunpack.c.h.b16 %v1142
        %v1221 = vunpack.c.l.b16 %v1143
        %v1222 = vunpack.c.h.b16 %v1143
        %v1223 = vunpack.c.l.b16 %v1144
        %v1224 = vunpack.c.h.b16 %v1144
        %v1225 = vunpack.c.l.b16 %v1145
        %v1226 = vunpack.c.h.b16 %v1145
        %v1227 = vunpack.c.l.b16 %v1146
        %v1228 = vunpack.c.h.b16 %v1146
        %v1229 = vunpack.c.l.b16 %v1147
        %v1230 = vunpack.c.h.b16 %v1147
        %v1231 = vunpack.c.l.b16 %v1148
        %v1232 = vunpack.c.h.b16 %v1148
        %v1233 = vunpack.c.l.b16 %v1149
        %v1234 = vunpack.c.h.b16 %v1149
        %v1235 = vunpack.c.l.b16 %v1150
        %v1236 = vunpack.c.h.b16 %v1150
        %v1237 = vunpack.c.l.b16 %v1151
        %v1238 = vunpack.c.h.b16 %v1151
        %v1239 = vunpack.c.l.b16 %v1152
        %v1240 = vunpack.c.h.b16 %v1152
        %v1241 = vunpack.c.l.b16 %v1153
        %v1242 = vunpack.c.h.b16 %v1153
        %v1243 = vunpack.c.l.b16 %v1154
        %v1244 = vunpack.c.h.b16 %v1154
        %v1245 = vunpack.c.l.b16 %v1155
        %v1246 = vunpack.c.h.b16 %v1155
        %v1247 = vunpack.c.l.b16 %v1156
        %v1248 = vunpack.c.h.b16 %v1156
        %v1249 = vunpack.c.l.b16 %v1157
        %v1250 = vunpack.c.h.b16 %v1157
        %v1251 = vunpack.c.l.b16 %v1158
        %v1252 = vunpack.c.h.b16 %v1158
        %v1253 = vunpack.c.l.b16 %v1159
        %v1254 = vunpack.c.h.b16 %v1159
        %v1255 = vunpack.c.l.b16 %v1160
        %v1256 = vunpack.c.h.b16 %v1160
        %v1257 = vunpack.c.l.b16 %v1161
        %v1258 = vunpack.c.h.b16 %v1161
        %v1259 = vunpack.c.l.b16 %v1162
        %v1260 = vunpack.c.h.b16 %v1162
        %v1261 = vunpack.c.l.b16 %v1163
        %v1262 = vunpack.c.h.b16 %v1163
        %v1263 = vunpack.c.l.b16 %v1164
        %v1264 = vunpack.c.h.b16 %v1164
        %v1265 = vpack.c.b16 %v1205, %v1201
        %v1266 = vpack.c.b16 %v1206, %v1202
        %v1267 = vpack.c.b16 %v1207, %v1203
        %v1268 = vpack.c.b16 %v1208, %v1204
        %v1269 = vpack.c.b16 %v1213, %v1209
        %v1270 = vpack.c.b16 %v1214, %v1210
        %v1271 = vpack.c.b16 %v1215, %v1211
        %v1272 = vpack.c.b16 %v1216, %v1212
        %v1273 = vpack.c.b16 %v1221, %v1217
        %v1274 = vpack.c.b16 %v1222, %v1218
        %v1275 = vpack.c.b16 %v1223, %v1219
        %v1276 = vpack.c.b16 %v1224, %v1220
        %v1277 = vpack.c.b16 %v1229, %v1225
        %v1278 = vpack.c.b16 %v1230, %v1226
        %v1279 = vpack.c.b16 %v1231, %v1227
        %v1280 = vpack.c.b16 %v1232, %v1228
        %v1281 = vpack.c.b16 %v1237, %v1233
        %v1282 = vpack.c.b16 %v1238, %v1234
        %v1283 = vpack.c.b16 %v1239, %v1235
        %v1284 = vpack.c.b16 %v1240, %v1236
        %v1285 = vpack.c.b16 %v1245, %v1241
        %v1286 = vpack.c.b16 %v1246, %v1242
        %v1287 = vpack.c.b16 %v1247, %v1243
        %v1288 = vpack.c.b16 %v1248, %v1244
        %v1289 = vpack.c.b16 %v1253, %v1249
        %v1290 = vpack.c.b16 %v1254, %v1250
        %v1291 = vpack.c.b16 %v1255, %v1251
        %v1292 = vpack.c.b16 %v1256, %v1252
        %v1293 = vpack.c.b16 %v1261, %v1257
        %v1294 = vpack.c.b16 %v1262, %v1258
        %v1295 = vpack.c.b16 %v1263, %v1259
        %v1296 = vpack.c.b16 %v1264, %v1260
        %1329 = vmatpush.bf16.msra.mxu0 %v1293
        %1330 = vmatpush.bf16.msra.mxu0 %v1289
        %1331 = vmatpush.bf16.msra.mxu0 %v1285
        %1332 = vmatpush.bf16.msra.mxu0 %v1281
        %1333 = vmatpush.bf16.msra.mxu0 %v1277
        %1334 = vmatpush.bf16.msra.mxu0 %v1273
        %1335 = vmatpush.bf16.msra.mxu0 %v1269
        %1336 = vmatpush.bf16.msra.mxu0 %v1265
        %1337 = vmatmul.bf16.gmra.mxu0 0
        %v1338 = vpop.f32.mrf.mxu0
        %v1339 = vadd.f32 0.0, %v1338
        %v1340 = vpop.f32.mrf.mxu0
        %1341 = vdwg.mxu0
        %1342 = vmatpush.bf16.msra.mxu0 %v1294
        %1343 = vmatpush.bf16.msra.mxu0 %v1290
        %1344 = vmatpush.bf16.msra.mxu0 %v1286
        %1345 = vmatpush.bf16.msra.mxu0 %v1282
        %1346 = vmatpush.bf16.msra.mxu0 %v1278
        %1347 = vmatpush.bf16.msra.mxu0 %v1274
        %1348 = vmatpush.bf16.msra.mxu0 %v1270
        %1349 = vmatpush.bf16.msra.mxu0 %v1266
        %1350 = vmatmul.bf16.gmra.mxu0 0
        %v1351 = vpop.f32.mrf.mxu0
        %v1352 = vadd.f32 0.0, %v1351
        %v1353 = vpop.f32.mrf.mxu0
        %1354 = vdwg.mxu0
        %1355 = vmatpush.bf16.msra.mxu0 %v1295
        %1356 = vmatpush.bf16.msra.mxu0 %v1291
        %1357 = vmatpush.bf16.msra.mxu0 %v1287
        %1358 = vmatpush.bf16.msra.mxu0 %v1283
        %1359 = vmatpush.bf16.msra.mxu0 %v1279
        %1360 = vmatpush.bf16.msra.mxu0 %v1275
        %1361 = vmatpush.bf16.msra.mxu0 %v1271
        %1362 = vmatpush.bf16.msra.mxu0 %v1267
        %1363 = vmatmul.bf16.gmra.mxu0 0
        %v1364 = vpop.f32.mrf.mxu0
        %v1365 = vadd.f32 0.0, %v1364
        %v1366 = vpop.f32.mrf.mxu0
        %1367 = vdwg.mxu0
        %1368 = vmatpush.bf16.msra.mxu0 %v1296
        %1369 = vmatpush.bf16.msra.mxu0 %v1292
        %1370 = vmatpush.bf16.msra.mxu0 %v1288
        %1371 = vmatpush.bf16.msra.mxu0 %v1284
        %1372 = vmatpush.bf16.msra.mxu0 %v1280
        %1373 = vmatpush.bf16.msra.mxu0 %v1276
        %1374 = vmatpush.bf16.msra.mxu0 %v1272
        %1375 = vmatpush.bf16.msra.mxu0 %v1268
        %1376 = vmatmul.bf16.gmra.mxu0 0
        %v1377 = vpop.f32.mrf.mxu0
        %v1378 = vadd.f32 0.0, %v1377
        %v1379 = vpop.f32.mrf.mxu0
        %1380 = vdwg.mxu0
        %v1381 = vadd.f32 %v1165, %v1339
        %v1382 = vadd.f32 %v1166, %v1352
        %v1383 = vadd.f32 %v1167, %v1365
        %v1384 = vadd.f32 %v1168, %v1378
        %v1385 = vxor.u32 %v1381, 2147483648
        %v1386 = vmul.f32 %v1385, 1.442695
        %v1387 = vpow.pop %v1386
        %v1388 = vadd.f32 %v1387, 1.0
        %v1389 = vrcp.pop %v1388
        %v1390 = vmul.f32 %v1388, %v1389
        %v1391 = vsub.f32 1.0, %v1390
        %v1392 = vmul.f32 %v1389, %v1391
        %v1393 = vadd.f32 %v1389, %v1392
        %vm1394 = vweird.f32 %v1388
        %vm1395 = vweird.f32 %v1389
        %vm1396 = vmor %vm1394, %vm1395
        %v1397 = vsel %vm1396, %v1389, %v1393
        %v1398 = vand.u32 2147483647, %v1388
        %vm1399 = vcmp.eq.f32.partialorder %v1398, 8.507059e+37
        %v1400 = vand.u32 %v1388, 2147483648
        %v1401 = vor.u32 1.1754944e-38, %v1400
        %v1402 = vsel %vm1399, %v1401, %v1397
        %v1403 = vmul.f32 1.0, %v1402
        %v1404 = vxor.u32 %v1382, 2147483648
        %v1405 = vmul.f32 %v1404, 1.442695
        %v1406 = vpow.pop %v1405
        %v1407 = vadd.f32 %v1406, 1.0
        %v1408 = vrcp.pop %v1407
        %v1409 = vmul.f32 %v1407, %v1408
        %v1410 = vsub.f32 1.0, %v1409
        %v1411 = vmul.f32 %v1408, %v1410
        %v1412 = vadd.f32 %v1408, %v1411
        %vm1413 = vweird.f32 %v1407
        %vm1414 = vweird.f32 %v1408
        %vm1415 = vmor %vm1413, %vm1414
        %v1416 = vsel %vm1415, %v1408, %v1412
        %v1417 = vand.u32 2147483647, %v1407
        %vm1418 = vcmp.eq.f32.partialorder %v1417, 8.507059e+37
        %v1419 = vand.u32 %v1407, 2147483648
        %v1420 = vor.u32 1.1754944e-38, %v1419
        %v1421 = vsel %vm1418, %v1420, %v1416
        %v1422 = vmul.f32 1.0, %v1421
        %v1423 = vtanh.pop %v1383
        %v1424 = vxor.u32 %v1384, 2147483648
        %v1425 = vmul.f32 %v1424, 1.442695
        %v1426 = vpow.pop %v1425
        %v1427 = vadd.f32 %v1426, 1.0
        %v1428 = vrcp.pop %v1427
        %v1429 = vmul.f32 %v1427, %v1428
        %v1430 = vsub.f32 1.0, %v1429
        %v1431 = vmul.f32 %v1428, %v1430
        %v1432 = vadd.f32 %v1428, %v1431
        %vm1433 = vweird.f32 %v1427
        %vm1434 = vweird.f32 %v1428
        %vm1435 = vmor %vm1433, %vm1434
        %v1436 = vsel %vm1435, %v1428, %v1432
        %v1437 = vand.u32 2147483647, %v1427
        %vm1438 = vcmp.eq.f32.partialorder %v1437, 8.507059e+37
        %v1439 = vand.u32 %v1427, 2147483648
        %v1440 = vor.u32 1.1754944e-38, %v1439
        %v1441 = vsel %vm1438, %v1440, %v1436
        %v1442 = vmul.f32 1.0, %v1441
        %v1443 = vmul.f32 %v1422, 0.0
        %v1444 = vmul.f32 %v1403, %v1423
        %v1445 = vadd.f32 %v1443, %v1444
        %v1446 = vtanh.pop %v1445
        %v1447 = vmul.f32 %v1442, %v1446
        %v1448 = vld [vmem:[#allocation13] sm:$0xff]
        %v1449 = vld [vmem:[#allocation13 + $0x8] sm:$0xff]
        %v1450 = vld [vmem:[#allocation13 + $0x10] sm:$0xff]
        %v1451 = vld [vmem:[#allocation13 + $0x18] sm:$0xff]
        %v1452 = vld [vmem:[#allocation13 + $0x20] sm:$0xff]
        %v1453 = vld [vmem:[#allocation13 + $0x28] sm:$0xff]
        %v1454 = vld [vmem:[#allocation13 + $0x30] sm:$0xff]
        %v1455 = vld [vmem:[#allocation13 + $0x38] sm:$0xff]
        %v1456 = vld [vmem:[#allocation13 + $0x40] sm:$0xff]
        %v1457 = vld [vmem:[#allocation13 + $0x48] sm:$0xff]
        %v1458 = vld [vmem:[#allocation13 + $0x50] sm:$0xff]
        %v1459 = vld [vmem:[#allocation13 + $0x58] sm:$0xff]
        %v1460 = vld [vmem:[#allocation13 + $0x60] sm:$0xff]
        %v1461 = vld [vmem:[#allocation13 + $0x68] sm:$0xff]
        %v1462 = vld [vmem:[#allocation13 + $0x70] sm:$0xff]
        %v1463 = vld [vmem:[#allocation13 + $0x78] sm:$0xff]
        %v1464 = vld [vmem:[#allocation13 + $0x80] sm:$0xff]
        %v1465 = vld [vmem:[#allocation13 + $0x88] sm:$0xff]
        %v1466 = vld [vmem:[#allocation13 + $0x90] sm:$0xff]
        %v1467 = vld [vmem:[#allocation13 + $0x98] sm:$0xff]
        %v1468 = vld [vmem:[#allocation13 + $0xa0] sm:$0xff]
        %v1469 = vld [vmem:[#allocation13 + $0xa8] sm:$0xff]
        %v1470 = vld [vmem:[#allocation13 + $0xb0] sm:$0xff]
        %v1471 = vld [vmem:[#allocation13 + $0xb8] sm:$0xff]
        %v1472 = vld [vmem:[#allocation13 + $0xc0] sm:$0xff]
        %v1473 = vld [vmem:[#allocation13 + $0xc8] sm:$0xff]
        %v1474 = vld [vmem:[#allocation13 + $0xd0] sm:$0xff]
        %v1475 = vld [vmem:[#allocation13 + $0xd8] sm:$0xff]
        %v1476 = vld [vmem:[#allocation13 + $0xe0] sm:$0xff]
        %v1477 = vld [vmem:[#allocation13 + $0xe8] sm:$0xff]
        %v1478 = vld [vmem:[#allocation13 + $0xf0] sm:$0xff]
        %v1479 = vld [vmem:[#allocation13 + $0xf8] sm:$0xff]
        %v1480 = vld [vmem:[#allocation11] sm:$0xff]
        %v1481 = vld [vmem:[#allocation11 + $0x8] sm:$0xff]
        %v1482 = vld [vmem:[#allocation11 + $0x10] sm:$0xff]
        %v1483 = vld [vmem:[#allocation11 + $0x18] sm:$0xff]
        %v1484 = vld [vmem:[#allocation11 + $0x20] sm:$0xff]
        %v1485 = vld [vmem:[#allocation11 + $0x28] sm:$0xff]
        %v1486 = vld [vmem:[#allocation11 + $0x30] sm:$0xff]
        %v1487 = vld [vmem:[#allocation11 + $0x38] sm:$0xff]
        %v1488 = vld [vmem:[#allocation11 + $0x40] sm:$0xff]
        %v1489 = vld [vmem:[#allocation11 + $0x48] sm:$0xff]
        %v1490 = vld [vmem:[#allocation11 + $0x50] sm:$0xff]
        %v1491 = vld [vmem:[#allocation11 + $0x58] sm:$0xff]
        %v1492 = vld [vmem:[#allocation11 + $0x60] sm:$0xff]
        %v1493 = vld [vmem:[#allocation11 + $0x68] sm:$0xff]
        %v1494 = vld [vmem:[#allocation11 + $0x70] sm:$0xff]
        %v1495 = vld [vmem:[#allocation11 + $0x78] sm:$0xff]
        %v1496 = vld [vmem:[#allocation11 + $0x80] sm:$0xff]
        %v1497 = vld [vmem:[#allocation11 + $0x88] sm:$0xff]
        %v1498 = vld [vmem:[#allocation11 + $0x90] sm:$0xff]
        %v1499 = vld [vmem:[#allocation11 + $0x98] sm:$0xff]
        %v1500 = vld [vmem:[#allocation11 + $0xa0] sm:$0xff]
        %v1501 = vld [vmem:[#allocation11 + $0xa8] sm:$0xff]
        %v1502 = vld [vmem:[#allocation11 + $0xb0] sm:$0xff]
        %v1503 = vld [vmem:[#allocation11 + $0xb8] sm:$0xff]
        %v1504 = vld [vmem:[#allocation11 + $0xc0] sm:$0xff]
        %v1505 = vld [vmem:[#allocation11 + $0xc8] sm:$0xff]
        %v1506 = vld [vmem:[#allocation11 + $0xd0] sm:$0xff]
        %v1507 = vld [vmem:[#allocation11 + $0xd8] sm:$0xff]
        %v1508 = vld [vmem:[#allocation11 + $0xe0] sm:$0xff]
        %v1509 = vld [vmem:[#allocation11 + $0xe8] sm:$0xff]
        %v1510 = vld [vmem:[#allocation11 + $0xf0] sm:$0xff]
        %v1511 = vld [vmem:[#allocation11 + $0xf8] sm:$0xff]
        %v1512 = vld [vmem:[#allocation14] sm:$0xf]
        %v1513 = vpack.c.bf16 %v1447, %v1447
        %v1515 = vperm.slane %v1512, 0
        %v1516 = vperm.slane %v1512, 1
        %v1517 = vperm.slane %v1512, 2
        %v1518 = vperm.slane %v1512, 3
        %v1555 = vunpack.c.l.b16 %v1480
        %v1556 = vunpack.c.h.b16 %v1480
        %v1557 = vunpack.c.l.b16 %v1481
        %v1558 = vunpack.c.h.b16 %v1481
        %v1559 = vunpack.c.l.b16 %v1482
        %v1560 = vunpack.c.h.b16 %v1482
        %v1561 = vunpack.c.l.b16 %v1483
        %v1562 = vunpack.c.h.b16 %v1483
        %v1563 = vunpack.c.l.b16 %v1484
        %v1564 = vunpack.c.h.b16 %v1484
        %v1565 = vunpack.c.l.b16 %v1485
        %v1566 = vunpack.c.h.b16 %v1485
        %v1567 = vunpack.c.l.b16 %v1486
        %v1568 = vunpack.c.h.b16 %v1486
        %v1569 = vunpack.c.l.b16 %v1487
        %v1570 = vunpack.c.h.b16 %v1487
        %v1571 = vunpack.c.l.b16 %v1488
        %v1572 = vunpack.c.h.b16 %v1488
        %v1573 = vunpack.c.l.b16 %v1489
        %v1574 = vunpack.c.h.b16 %v1489
        %v1575 = vunpack.c.l.b16 %v1490
        %v1576 = vunpack.c.h.b16 %v1490
        %v1577 = vunpack.c.l.b16 %v1491
        %v1578 = vunpack.c.h.b16 %v1491
        %v1579 = vunpack.c.l.b16 %v1492
        %v1580 = vunpack.c.h.b16 %v1492
        %v1581 = vunpack.c.l.b16 %v1493
        %v1582 = vunpack.c.h.b16 %v1493
        %v1583 = vunpack.c.l.b16 %v1494
        %v1584 = vunpack.c.h.b16 %v1494
        %v1585 = vunpack.c.l.b16 %v1495
        %v1586 = vunpack.c.h.b16 %v1495
        %v1587 = vunpack.c.l.b16 %v1496
        %v1588 = vunpack.c.h.b16 %v1496
        %v1589 = vunpack.c.l.b16 %v1497
        %v1590 = vunpack.c.h.b16 %v1497
        %v1591 = vunpack.c.l.b16 %v1498
        %v1592 = vunpack.c.h.b16 %v1498
        %v1593 = vunpack.c.l.b16 %v1499
        %v1594 = vunpack.c.h.b16 %v1499
        %v1595 = vunpack.c.l.b16 %v1500
        %v1596 = vunpack.c.h.b16 %v1500
        %v1597 = vunpack.c.l.b16 %v1501
        %v1598 = vunpack.c.h.b16 %v1501
        %v1599 = vunpack.c.l.b16 %v1502
        %v1600 = vunpack.c.h.b16 %v1502
        %v1601 = vunpack.c.l.b16 %v1503
        %v1602 = vunpack.c.h.b16 %v1503
        %v1603 = vunpack.c.l.b16 %v1504
        %v1604 = vunpack.c.h.b16 %v1504
        %v1605 = vunpack.c.l.b16 %v1505
        %v1606 = vunpack.c.h.b16 %v1505
        %v1607 = vunpack.c.l.b16 %v1506
        %v1608 = vunpack.c.h.b16 %v1506
        %v1609 = vunpack.c.l.b16 %v1507
        %v1610 = vunpack.c.h.b16 %v1507
        %v1611 = vunpack.c.l.b16 %v1508
        %v1612 = vunpack.c.h.b16 %v1508
        %v1613 = vunpack.c.l.b16 %v1509
        %v1614 = vunpack.c.h.b16 %v1509
        %v1615 = vunpack.c.l.b16 %v1510
        %v1616 = vunpack.c.h.b16 %v1510
        %v1617 = vunpack.c.l.b16 %v1511
        %v1618 = vunpack.c.h.b16 %v1511
        %v1619 = vpack.c.b16 %v1559, %v1555
        %v1620 = vpack.c.b16 %v1560, %v1556
        %v1621 = vpack.c.b16 %v1561, %v1557
        %v1622 = vpack.c.b16 %v1562, %v1558
        %v1623 = vpack.c.b16 %v1567, %v1563
        %v1624 = vpack.c.b16 %v1568, %v1564
        %v1625 = vpack.c.b16 %v1569, %v1565
        %v1626 = vpack.c.b16 %v1570, %v1566
        %v1627 = vpack.c.b16 %v1575, %v1571
        %v1628 = vpack.c.b16 %v1576, %v1572
        %v1629 = vpack.c.b16 %v1577, %v1573
        %v1630 = vpack.c.b16 %v1578, %v1574
        %v1631 = vpack.c.b16 %v1583, %v1579
        %v1632 = vpack.c.b16 %v1584, %v1580
        %v1633 = vpack.c.b16 %v1585, %v1581
        %v1634 = vpack.c.b16 %v1586, %v1582
        %v1635 = vpack.c.b16 %v1591, %v1587
        %v1636 = vpack.c.b16 %v1592, %v1588
        %v1637 = vpack.c.b16 %v1593, %v1589
        %v1638 = vpack.c.b16 %v1594, %v1590
        %v1639 = vpack.c.b16 %v1599, %v1595
        %v1640 = vpack.c.b16 %v1600, %v1596
        %v1641 = vpack.c.b16 %v1601, %v1597
        %v1642 = vpack.c.b16 %v1602, %v1598
        %v1643 = vpack.c.b16 %v1607, %v1603
        %v1644 = vpack.c.b16 %v1608, %v1604
        %v1645 = vpack.c.b16 %v1609, %v1605
        %v1646 = vpack.c.b16 %v1610, %v1606
        %v1647 = vpack.c.b16 %v1615, %v1611
        %v1648 = vpack.c.b16 %v1616, %v1612
        %v1649 = vpack.c.b16 %v1617, %v1613
        %v1650 = vpack.c.b16 %v1618, %v1614
        %1683 = vmatpush.bf16.msra.mxu0 %v1647
        %1684 = vmatpush.bf16.msra.mxu0 %v1643
        %1685 = vmatpush.bf16.msra.mxu0 %v1639
        %1686 = vmatpush.bf16.msra.mxu0 %v1635
        %1687 = vmatpush.bf16.msra.mxu0 %v1631
        %1688 = vmatpush.bf16.msra.mxu0 %v1627
        %1689 = vmatpush.bf16.msra.mxu0 %v1623
        %1690 = vmatpush.bf16.msra.mxu0 %v1619
        %1691 = vmatmul.bf16.gmra.mxu0 %v1513
        %v1692 = vpop.f32.mrf.mxu0
        %v1693 = vadd.f32 %v1515, %v1692
        %v1694 = vpop.f32.mrf.mxu0
        %1695 = vdwg.mxu0
        %1696 = vmatpush.bf16.msra.mxu0 %v1648
        %1697 = vmatpush.bf16.msra.mxu0 %v1644
        %1698 = vmatpush.bf16.msra.mxu0 %v1640
        %1699 = vmatpush.bf16.msra.mxu0 %v1636
        %1700 = vmatpush.bf16.msra.mxu0 %v1632
        %1701 = vmatpush.bf16.msra.mxu0 %v1628
        %1702 = vmatpush.bf16.msra.mxu0 %v1624
        %1703 = vmatpush.bf16.msra.mxu0 %v1620
        %1704 = vmatmul.bf16.gmra.mxu0 %v1513
        %v1705 = vpop.f32.mrf.mxu0
        %v1706 = vadd.f32 %v1516, %v1705
        %v1707 = vpop.f32.mrf.mxu0
        %1708 = vdwg.mxu0
        %1709 = vmatpush.bf16.msra.mxu0 %v1649
        %1710 = vmatpush.bf16.msra.mxu0 %v1645
        %1711 = vmatpush.bf16.msra.mxu0 %v1641
        %1712 = vmatpush.bf16.msra.mxu0 %v1637
        %1713 = vmatpush.bf16.msra.mxu0 %v1633
        %1714 = vmatpush.bf16.msra.mxu0 %v1629
        %1715 = vmatpush.bf16.msra.mxu0 %v1625
        %1716 = vmatpush.bf16.msra.mxu0 %v1621
        %1717 = vmatmul.bf16.gmra.mxu0 %v1513
        %v1718 = vpop.f32.mrf.mxu0
        %v1719 = vadd.f32 %v1517, %v1718
        %v1720 = vpop.f32.mrf.mxu0
        %1721 = vdwg.mxu0
        %1722 = vmatpush.bf16.msra.mxu0 %v1650
        %1723 = vmatpush.bf16.msra.mxu0 %v1646
        %1724 = vmatpush.bf16.msra.mxu0 %v1642
        %1725 = vmatpush.bf16.msra.mxu0 %v1638
        %1726 = vmatpush.bf16.msra.mxu0 %v1634
        %1727 = vmatpush.bf16.msra.mxu0 %v1630
        %1728 = vmatpush.bf16.msra.mxu0 %v1626
        %1729 = vmatpush.bf16.msra.mxu0 %v1622
        %1730 = vmatmul.bf16.gmra.mxu0 %v1513
        %v1731 = vpop.f32.mrf.mxu0
        %v1732 = vadd.f32 %v1518, %v1731
        %v1733 = vpop.f32.mrf.mxu0
        %1734 = vdwg.mxu0
        %v1767 = vunpack.c.l.b16 %v1448
        %v1768 = vunpack.c.h.b16 %v1448
        %v1769 = vunpack.c.l.b16 %v1449
        %v1770 = vunpack.c.h.b16 %v1449
        %v1771 = vunpack.c.l.b16 %v1450
        %v1772 = vunpack.c.h.b16 %v1450
        %v1773 = vunpack.c.l.b16 %v1451
        %v1774 = vunpack.c.h.b16 %v1451
        %v1775 = vunpack.c.l.b16 %v1452
        %v1776 = vunpack.c.h.b16 %v1452
        %v1777 = vunpack.c.l.b16 %v1453
        %v1778 = vunpack.c.h.b16 %v1453
        %v1779 = vunpack.c.l.b16 %v1454
        %v1780 = vunpack.c.h.b16 %v1454
        %v1781 = vunpack.c.l.b16 %v1455
        %v1782 = vunpack.c.h.b16 %v1455
        %v1783 = vunpack.c.l.b16 %v1456
        %v1784 = vunpack.c.h.b16 %v1456
        %v1785 = vunpack.c.l.b16 %v1457
        %v1786 = vunpack.c.h.b16 %v1457
        %v1787 = vunpack.c.l.b16 %v1458
        %v1788 = vunpack.c.h.b16 %v1458
        %v1789 = vunpack.c.l.b16 %v1459
        %v1790 = vunpack.c.h.b16 %v1459
        %v1791 = vunpack.c.l.b16 %v1460
        %v1792 = vunpack.c.h.b16 %v1460
        %v1793 = vunpack.c.l.b16 %v1461
        %v1794 = vunpack.c.h.b16 %v1461
        %v1795 = vunpack.c.l.b16 %v1462
        %v1796 = vunpack.c.h.b16 %v1462
        %v1797 = vunpack.c.l.b16 %v1463
        %v1798 = vunpack.c.h.b16 %v1463
        %v1799 = vunpack.c.l.b16 %v1464
        %v1800 = vunpack.c.h.b16 %v1464
        %v1801 = vunpack.c.l.b16 %v1465
        %v1802 = vunpack.c.h.b16 %v1465
        %v1803 = vunpack.c.l.b16 %v1466
        %v1804 = vunpack.c.h.b16 %v1466
        %v1805 = vunpack.c.l.b16 %v1467
        %v1806 = vunpack.c.h.b16 %v1467
        %v1807 = vunpack.c.l.b16 %v1468
        %v1808 = vunpack.c.h.b16 %v1468
        %v1809 = vunpack.c.l.b16 %v1469
        %v1810 = vunpack.c.h.b16 %v1469
        %v1811 = vunpack.c.l.b16 %v1470
        %v1812 = vunpack.c.h.b16 %v1470
        %v1813 = vunpack.c.l.b16 %v1471
        %v1814 = vunpack.c.h.b16 %v1471
        %v1815 = vunpack.c.l.b16 %v1472
        %v1816 = vunpack.c.h.b16 %v1472
        %v1817 = vunpack.c.l.b16 %v1473
        %v1818 = vunpack.c.h.b16 %v1473
        %v1819 = vunpack.c.l.b16 %v1474
        %v1820 = vunpack.c.h.b16 %v1474
        %v1821 = vunpack.c.l.b16 %v1475
        %v1822 = vunpack.c.h.b16 %v1475
        %v1823 = vunpack.c.l.b16 %v1476
        %v1824 = vunpack.c.h.b16 %v1476
        %v1825 = vunpack.c.l.b16 %v1477
        %v1826 = vunpack.c.h.b16 %v1477
        %v1827 = vunpack.c.l.b16 %v1478
        %v1828 = vunpack.c.h.b16 %v1478
        %v1829 = vunpack.c.l.b16 %v1479
        %v1830 = vunpack.c.h.b16 %v1479
        %v1831 = vpack.c.b16 %v1771, %v1767
        %v1832 = vpack.c.b16 %v1772, %v1768
        %v1833 = vpack.c.b16 %v1773, %v1769
        %v1834 = vpack.c.b16 %v1774, %v1770
        %v1835 = vpack.c.b16 %v1779, %v1775
        %v1836 = vpack.c.b16 %v1780, %v1776
        %v1837 = vpack.c.b16 %v1781, %v1777
        %v1838 = vpack.c.b16 %v1782, %v1778
        %v1839 = vpack.c.b16 %v1787, %v1783
        %v1840 = vpack.c.b16 %v1788, %v1784
        %v1841 = vpack.c.b16 %v1789, %v1785
        %v1842 = vpack.c.b16 %v1790, %v1786
        %v1843 = vpack.c.b16 %v1795, %v1791
        %v1844 = vpack.c.b16 %v1796, %v1792
        %v1845 = vpack.c.b16 %v1797, %v1793
        %v1846 = vpack.c.b16 %v1798, %v1794
        %v1847 = vpack.c.b16 %v1803, %v1799
        %v1848 = vpack.c.b16 %v1804, %v1800
        %v1849 = vpack.c.b16 %v1805, %v1801
        %v1850 = vpack.c.b16 %v1806, %v1802
        %v1851 = vpack.c.b16 %v1811, %v1807
        %v1852 = vpack.c.b16 %v1812, %v1808
        %v1853 = vpack.c.b16 %v1813, %v1809
        %v1854 = vpack.c.b16 %v1814, %v1810
        %v1855 = vpack.c.b16 %v1819, %v1815
        %v1856 = vpack.c.b16 %v1820, %v1816
        %v1857 = vpack.c.b16 %v1821, %v1817
        %v1858 = vpack.c.b16 %v1822, %v1818
        %v1859 = vpack.c.b16 %v1827, %v1823
        %v1860 = vpack.c.b16 %v1828, %v1824
        %v1861 = vpack.c.b16 %v1829, %v1825
        %v1862 = vpack.c.b16 %v1830, %v1826
        %1895 = vmatpush.bf16.msra.mxu0 %v1859
        %1896 = vmatpush.bf16.msra.mxu0 %v1855
        %1897 = vmatpush.bf16.msra.mxu0 %v1851
        %1898 = vmatpush.bf16.msra.mxu0 %v1847
        %1899 = vmatpush.bf16.msra.mxu0 %v1843
        %1900 = vmatpush.bf16.msra.mxu0 %v1839
        %1901 = vmatpush.bf16.msra.mxu0 %v1835
        %1902 = vmatpush.bf16.msra.mxu0 %v1831
        %1903 = vmatmul.bf16.gmra.mxu0 0
        %v1904 = vpop.f32.mrf.mxu0
        %v1905 = vadd.f32 0.0, %v1904
        %v1906 = vpop.f32.mrf.mxu0
        %1907 = vdwg.mxu0
        %1908 = vmatpush.bf16.msra.mxu0 %v1860
        %1909 = vmatpush.bf16.msra.mxu0 %v1856
        %1910 = vmatpush.bf16.msra.mxu0 %v1852
        %1911 = vmatpush.bf16.msra.mxu0 %v1848
        %1912 = vmatpush.bf16.msra.mxu0 %v1844
        %1913 = vmatpush.bf16.msra.mxu0 %v1840
        %1914 = vmatpush.bf16.msra.mxu0 %v1836
        %1915 = vmatpush.bf16.msra.mxu0 %v1832
        %1916 = vmatmul.bf16.gmra.mxu0 0
        %v1917 = vpop.f32.mrf.mxu0
        %v1918 = vadd.f32 0.0, %v1917
        %v1919 = vpop.f32.mrf.mxu0
        %1920 = vdwg.mxu0
        %1921 = vmatpush.bf16.msra.mxu0 %v1861
        %1922 = vmatpush.bf16.msra.mxu0 %v1857
        %1923 = vmatpush.bf16.msra.mxu0 %v1853
        %1924 = vmatpush.bf16.msra.mxu0 %v1849
        %1925 = vmatpush.bf16.msra.mxu0 %v1845
        %1926 = vmatpush.bf16.msra.mxu0 %v1841
        %1927 = vmatpush.bf16.msra.mxu0 %v1837
        %1928 = vmatpush.bf16.msra.mxu0 %v1833
        %1929 = vmatmul.bf16.gmra.mxu0 0
        %v1930 = vpop.f32.mrf.mxu0
        %v1931 = vadd.f32 0.0, %v1930
        %v1932 = vpop.f32.mrf.mxu0
        %1933 = vdwg.mxu0
        %1934 = vmatpush.bf16.msra.mxu0 %v1862
        %1935 = vmatpush.bf16.msra.mxu0 %v1858
        %1936 = vmatpush.bf16.msra.mxu0 %v1854
        %1937 = vmatpush.bf16.msra.mxu0 %v1850
        %1938 = vmatpush.bf16.msra.mxu0 %v1846
        %1939 = vmatpush.bf16.msra.mxu0 %v1842
        %1940 = vmatpush.bf16.msra.mxu0 %v1838
        %1941 = vmatpush.bf16.msra.mxu0 %v1834
        %1942 = vmatmul.bf16.gmra.mxu0 0
        %v1943 = vpop.f32.mrf.mxu0
        %v1944 = vadd.f32 0.0, %v1943
        %v1945 = vpop.f32.mrf.mxu0
        %1946 = vdwg.mxu0
        %v1947 = vadd.f32 %v1693, %v1905
        %v1948 = vadd.f32 %v1706, %v1918
        %v1949 = vadd.f32 %v1719, %v1931
        %v1950 = vadd.f32 %v1732, %v1944
        %v1951 = vxor.u32 %v1947, 2147483648
        %v1952 = vmul.f32 %v1951, 1.442695
        %v1953 = vpow.pop %v1952
        %v1954 = vadd.f32 %v1953, 1.0
        %v1955 = vrcp.pop %v1954
        %v1956 = vmul.f32 %v1954, %v1955
        %v1957 = vsub.f32 1.0, %v1956
        %v1958 = vmul.f32 %v1955, %v1957
        %v1959 = vadd.f32 %v1955, %v1958
        %vm1960 = vweird.f32 %v1954
        %vm1961 = vweird.f32 %v1955
        %vm1962 = vmor %vm1960, %vm1961
        %v1963 = vsel %vm1962, %v1955, %v1959
        %v1964 = vand.u32 2147483647, %v1954
        %vm1965 = vcmp.eq.f32.partialorder %v1964, 8.507059e+37
        %v1966 = vand.u32 %v1954, 2147483648
        %v1967 = vor.u32 1.1754944e-38, %v1966
        %v1968 = vsel %vm1965, %v1967, %v1963
        %v1969 = vmul.f32 1.0, %v1968
        %v1970 = vxor.u32 %v1948, 2147483648
        %v1971 = vmul.f32 %v1970, 1.442695
        %v1972 = vpow.pop %v1971
        %v1973 = vadd.f32 %v1972, 1.0
        %v1974 = vrcp.pop %v1973
        %v1975 = vmul.f32 %v1973, %v1974
        %v1976 = vsub.f32 1.0, %v1975
        %v1977 = vmul.f32 %v1974, %v1976
        %v1978 = vadd.f32 %v1974, %v1977
        %vm1979 = vweird.f32 %v1973
        %vm1980 = vweird.f32 %v1974
        %vm1981 = vmor %vm1979, %vm1980
        %v1982 = vsel %vm1981, %v1974, %v1978
        %v1983 = vand.u32 2147483647, %v1973
        %vm1984 = vcmp.eq.f32.partialorder %v1983, 8.507059e+37
        %v1985 = vand.u32 %v1973, 2147483648
        %v1986 = vor.u32 1.1754944e-38, %v1985
        %v1987 = vsel %vm1984, %v1986, %v1982
        %v1988 = vmul.f32 1.0, %v1987
        %v1989 = vtanh.pop %v1949
        %v1990 = vxor.u32 %v1950, 2147483648
        %v1991 = vmul.f32 %v1990, 1.442695
        %v1992 = vpow.pop %v1991
        %v1993 = vadd.f32 %v1992, 1.0
        %v1994 = vrcp.pop %v1993
        %v1995 = vmul.f32 %v1993, %v1994
        %v1996 = vsub.f32 1.0, %v1995
        %v1997 = vmul.f32 %v1994, %v1996
        %v1998 = vadd.f32 %v1994, %v1997
        %vm1999 = vweird.f32 %v1993
        %vm2000 = vweird.f32 %v1994
        %vm2001 = vmor %vm1999, %vm2000
        %v2002 = vsel %vm2001, %v1994, %v1998
        %v2003 = vand.u32 2147483647, %v1993
        %vm2004 = vcmp.eq.f32.partialorder %v2003, 8.507059e+37
        %v2005 = vand.u32 %v1993, 2147483648
        %v2006 = vor.u32 1.1754944e-38, %v2005
        %v2007 = vsel %vm2004, %v2006, %v2002
        %v2008 = vmul.f32 1.0, %v2007
        %v2009 = vmul.f32 %v1988, 0.0
        %v2010 = vmul.f32 %v1969, %v1989
        %v2011 = vadd.f32 %v2009, %v2010
        %v2012 = vtanh.pop %v2011
        %v2013 = vmul.f32 %v2008, %v2012
        %v2014 = vld [vmem:[#allocation2 + $0x20] sm:$0xff]
        %v2015 = vld [vmem:[#allocation2 + $0x28] sm:$0xff]
        %v2016 = vld [vmem:[#allocation2 + $0x30] sm:$0xff]
        %v2017 = vld [vmem:[#allocation2 + $0x38] sm:$0xff]
        %2018 = vmatpush.bf16.msra.mxu0 %v1293
        %2019 = vmatpush.bf16.msra.mxu0 %v1289
        %2020 = vmatpush.bf16.msra.mxu0 %v1285
        %2021 = vmatpush.bf16.msra.mxu0 %v1281
        %2022 = vmatpush.bf16.msra.mxu0 %v1277
        %2023 = vmatpush.bf16.msra.mxu0 %v1273
        %2024 = vmatpush.bf16.msra.mxu0 %v1269
        %2025 = vmatpush.bf16.msra.mxu0 %v1265
        %2026 = vmatmul.bf16.gmra.mxu0 %v1513
        %v2027 = vpop.f32.mrf.mxu0
        %v2028 = vadd.f32 0.0, %v2027
        %v2029 = vpop.f32.mrf.mxu0
        %2030 = vdwg.mxu0
        %2031 = vmatpush.bf16.msra.mxu0 %v1294
        %2032 = vmatpush.bf16.msra.mxu0 %v1290
        %2033 = vmatpush.bf16.msra.mxu0 %v1286
        %2034 = vmatpush.bf16.msra.mxu0 %v1282
        %2035 = vmatpush.bf16.msra.mxu0 %v1278
        %2036 = vmatpush.bf16.msra.mxu0 %v1274
        %2037 = vmatpush.bf16.msra.mxu0 %v1270
        %2038 = vmatpush.bf16.msra.mxu0 %v1266
        %2039 = vmatmul.bf16.gmra.mxu0 %v1513
        %v2040 = vpop.f32.mrf.mxu0
        %v2041 = vadd.f32 0.0, %v2040
        %v2042 = vpop.f32.mrf.mxu0
        %2043 = vdwg.mxu0
        %2044 = vmatpush.bf16.msra.mxu0 %v1295
        %2045 = vmatpush.bf16.msra.mxu0 %v1291
        %2046 = vmatpush.bf16.msra.mxu0 %v1287
        %2047 = vmatpush.bf16.msra.mxu0 %v1283
        %2048 = vmatpush.bf16.msra.mxu0 %v1279
        %2049 = vmatpush.bf16.msra.mxu0 %v1275
        %2050 = vmatpush.bf16.msra.mxu0 %v1271
        %2051 = vmatpush.bf16.msra.mxu0 %v1267
        %2052 = vmatmul.bf16.gmra.mxu0 %v1513
        %v2053 = vpop.f32.mrf.mxu0
        %v2054 = vadd.f32 0.0, %v2053
        %v2055 = vpop.f32.mrf.mxu0
        %2056 = vdwg.mxu0
        %2057 = vmatpush.bf16.msra.mxu0 %v1296
        %2058 = vmatpush.bf16.msra.mxu0 %v1292
        %2059 = vmatpush.bf16.msra.mxu0 %v1288
        %2060 = vmatpush.bf16.msra.mxu0 %v1284
        %2061 = vmatpush.bf16.msra.mxu0 %v1280
        %2062 = vmatpush.bf16.msra.mxu0 %v1276
        %2063 = vmatpush.bf16.msra.mxu0 %v1272
        %2064 = vmatpush.bf16.msra.mxu0 %v1268
        %2065 = vmatmul.bf16.gmra.mxu0 %v1513
        %v2066 = vpop.f32.mrf.mxu0
        %v2067 = vadd.f32 0.0, %v2066
        %v2068 = vpop.f32.mrf.mxu0
        %2069 = vdwg.mxu0
        %v2070 = vadd.f32 %v2014, %v2028
        %v2071 = vadd.f32 %v2015, %v2041
        %v2072 = vadd.f32 %v2016, %v2054
        %v2073 = vadd.f32 %v2017, %v2067
        %v2074 = vxor.u32 %v2070, 2147483648
        %v2075 = vmul.f32 %v2074, 1.442695
        %v2076 = vpow.pop %v2075
        %v2077 = vadd.f32 %v2076, 1.0
        %v2078 = vrcp.pop %v2077
        %v2079 = vmul.f32 %v2077, %v2078
        %v2080 = vsub.f32 1.0, %v2079
        %v2081 = vmul.f32 %v2078, %v2080
        %v2082 = vadd.f32 %v2078, %v2081
        %vm2083 = vweird.f32 %v2077
        %vm2084 = vweird.f32 %v2078
        %vm2085 = vmor %vm2083, %vm2084
        %v2086 = vsel %vm2085, %v2078, %v2082
        %v2087 = vand.u32 2147483647, %v2077
        %vm2088 = vcmp.eq.f32.partialorder %v2087, 8.507059e+37
        %v2089 = vand.u32 %v2077, 2147483648
        %v2090 = vor.u32 1.1754944e-38, %v2089
        %v2091 = vsel %vm2088, %v2090, %v2086
        %v2092 = vmul.f32 1.0, %v2091
        %v2093 = vxor.u32 %v2071, 2147483648
        %v2094 = vmul.f32 %v2093, 1.442695
        %v2095 = vpow.pop %v2094
        %v2096 = vadd.f32 %v2095, 1.0
        %v2097 = vrcp.pop %v2096
        %v2098 = vmul.f32 %v2096, %v2097
        %v2099 = vsub.f32 1.0, %v2098
        %v2100 = vmul.f32 %v2097, %v2099
        %v2101 = vadd.f32 %v2097, %v2100
        %vm2102 = vweird.f32 %v2096
        %vm2103 = vweird.f32 %v2097
        %vm2104 = vmor %vm2102, %vm2103
        %v2105 = vsel %vm2104, %v2097, %v2101
        %v2106 = vand.u32 2147483647, %v2096
        %vm2107 = vcmp.eq.f32.partialorder %v2106, 8.507059e+37
        %v2108 = vand.u32 %v2096, 2147483648
        %v2109 = vor.u32 1.1754944e-38, %v2108
        %v2110 = vsel %vm2107, %v2109, %v2105
        %v2111 = vmul.f32 1.0, %v2110
        %v2112 = vtanh.pop %v2072
        %v2113 = vxor.u32 %v2073, 2147483648
        %v2114 = vmul.f32 %v2113, 1.442695
        %v2115 = vpow.pop %v2114
        %v2116 = vadd.f32 %v2115, 1.0
        %v2117 = vrcp.pop %v2116
        %v2118 = vmul.f32 %v2116, %v2117
        %v2119 = vsub.f32 1.0, %v2118
        %v2120 = vmul.f32 %v2117, %v2119
        %v2121 = vadd.f32 %v2117, %v2120
        %vm2122 = vweird.f32 %v2116
        %vm2123 = vweird.f32 %v2117
        %vm2124 = vmor %vm2122, %vm2123
        %v2125 = vsel %vm2124, %v2117, %v2121
        %v2126 = vand.u32 2147483647, %v2116
        %vm2127 = vcmp.eq.f32.partialorder %v2126, 8.507059e+37
        %v2128 = vand.u32 %v2116, 2147483648
        %v2129 = vor.u32 1.1754944e-38, %v2128
        %v2130 = vsel %vm2127, %v2129, %v2125
        %v2131 = vmul.f32 1.0, %v2130
        %v2132 = vmul.f32 %v2111, %v1445
        %v2133 = vmul.f32 %v2092, %v2112
        %v2134 = vadd.f32 %v2132, %v2133
        %v2135 = vtanh.pop %v2134
        %v2136 = vmul.f32 %v2131, %v2135
        %v2137 = vpack.c.bf16 %v2136, %v2136
        %2138 = vmatpush.bf16.msra.mxu0 %v1647
        %2139 = vmatpush.bf16.msra.mxu0 %v1643
        %2140 = vmatpush.bf16.msra.mxu0 %v1639
        %2141 = vmatpush.bf16.msra.mxu0 %v1635
        %2142 = vmatpush.bf16.msra.mxu0 %v1631
        %2143 = vmatpush.bf16.msra.mxu0 %v1627
        %2144 = vmatpush.bf16.msra.mxu0 %v1623
        %2145 = vmatpush.bf16.msra.mxu0 %v1619
        %2146 = vmatmul.bf16.gmra.mxu0 %v2137
        %v2147 = vpop.f32.mrf.mxu0
        %v2148 = vadd.f32 %v1515, %v2147
        %v2149 = vpop.f32.mrf.mxu0
        %2150 = vdwg.mxu0
        %2151 = vmatpush.bf16.msra.mxu0 %v1648
        %2152 = vmatpush.bf16.msra.mxu0 %v1644
        %2153 = vmatpush.bf16.msra.mxu0 %v1640
        %2154 = vmatpush.bf16.msra.mxu0 %v1636
        %2155 = vmatpush.bf16.msra.mxu0 %v1632
        %2156 = vmatpush.bf16.msra.mxu0 %v1628
        %2157 = vmatpush.bf16.msra.mxu0 %v1624
        %2158 = vmatpush.bf16.msra.mxu0 %v1620
        %2159 = vmatmul.bf16.gmra.mxu0 %v2137
        %v2160 = vpop.f32.mrf.mxu0
        %v2161 = vadd.f32 %v1516, %v2160
        %v2162 = vpop.f32.mrf.mxu0
        %2163 = vdwg.mxu0
        %2164 = vmatpush.bf16.msra.mxu0 %v1649
        %2165 = vmatpush.bf16.msra.mxu0 %v1645
        %2166 = vmatpush.bf16.msra.mxu0 %v1641
        %2167 = vmatpush.bf16.msra.mxu0 %v1637
        %2168 = vmatpush.bf16.msra.mxu0 %v1633
        %2169 = vmatpush.bf16.msra.mxu0 %v1629
        %2170 = vmatpush.bf16.msra.mxu0 %v1625
        %2171 = vmatpush.bf16.msra.mxu0 %v1621
        %2172 = vmatmul.bf16.gmra.mxu0 %v2137
        %v2173 = vpop.f32.mrf.mxu0
        %v2174 = vadd.f32 %v1517, %v2173
        %v2175 = vpop.f32.mrf.mxu0
        %2176 = vdwg.mxu0
        %2177 = vmatpush.bf16.msra.mxu0 %v1650
        %2178 = vmatpush.bf16.msra.mxu0 %v1646
        %2179 = vmatpush.bf16.msra.mxu0 %v1642
        %2180 = vmatpush.bf16.msra.mxu0 %v1638
        %2181 = vmatpush.bf16.msra.mxu0 %v1634
        %2182 = vmatpush.bf16.msra.mxu0 %v1630
        %2183 = vmatpush.bf16.msra.mxu0 %v1626
        %2184 = vmatpush.bf16.msra.mxu0 %v1622
        %2185 = vmatmul.bf16.gmra.mxu0 %v2137
        %v2186 = vpop.f32.mrf.mxu0
        %v2187 = vadd.f32 %v1518, %v2186
        %v2188 = vpop.f32.mrf.mxu0
        %2189 = vdwg.mxu0
        %v2190 = vpack.c.bf16 %v2013, %v2013
        %2191 = vmatpush.bf16.msra.mxu0 %v1859
        %2192 = vmatpush.bf16.msra.mxu0 %v1855
        %2193 = vmatpush.bf16.msra.mxu0 %v1851
        %2194 = vmatpush.bf16.msra.mxu0 %v1847
        %2195 = vmatpush.bf16.msra.mxu0 %v1843
        %2196 = vmatpush.bf16.msra.mxu0 %v1839
        %2197 = vmatpush.bf16.msra.mxu0 %v1835
        %2198 = vmatpush.bf16.msra.mxu0 %v1831
        %2199 = vmatmul.bf16.gmra.mxu0 %v2190
        %v2200 = vpop.f32.mrf.mxu0
        %v2201 = vadd.f32 0.0, %v2200
        %v2202 = vpop.f32.mrf.mxu0
        %2203 = vdwg.mxu0
        %2204 = vmatpush.bf16.msra.mxu0 %v1860
        %2205 = vmatpush.bf16.msra.mxu0 %v1856
        %2206 = vmatpush.bf16.msra.mxu0 %v1852
        %2207 = vmatpush.bf16.msra.mxu0 %v1848
        %2208 = vmatpush.bf16.msra.mxu0 %v1844
        %2209 = vmatpush.bf16.msra.mxu0 %v1840
        %2210 = vmatpush.bf16.msra.mxu0 %v1836
        %2211 = vmatpush.bf16.msra.mxu0 %v1832
        %2212 = vmatmul.bf16.gmra.mxu0 %v2190
        %v2213 = vpop.f32.mrf.mxu0
        %v2214 = vadd.f32 0.0, %v2213
        %v2215 = vpop.f32.mrf.mxu0
        %2216 = vdwg.mxu0
        %2217 = vmatpush.bf16.msra.mxu0 %v1861
        %2218 = vmatpush.bf16.msra.mxu0 %v1857
        %2219 = vmatpush.bf16.msra.mxu0 %v1853
        %2220 = vmatpush.bf16.msra.mxu0 %v1849
        %2221 = vmatpush.bf16.msra.mxu0 %v1845
        %2222 = vmatpush.bf16.msra.mxu0 %v1841
        %2223 = vmatpush.bf16.msra.mxu0 %v1837
        %2224 = vmatpush.bf16.msra.mxu0 %v1833
        %2225 = vmatmul.bf16.gmra.mxu0 %v2190
        %v2226 = vpop.f32.mrf.mxu0
        %v2227 = vadd.f32 0.0, %v2226
        %v2228 = vpop.f32.mrf.mxu0
        %2229 = vdwg.mxu0
        %2230 = vmatpush.bf16.msra.mxu0 %v1862
        %2231 = vmatpush.bf16.msra.mxu0 %v1858
        %2232 = vmatpush.bf16.msra.mxu0 %v1854
        %2233 = vmatpush.bf16.msra.mxu0 %v1850
        %2234 = vmatpush.bf16.msra.mxu0 %v1846
        %2235 = vmatpush.bf16.msra.mxu0 %v1842
        %2236 = vmatpush.bf16.msra.mxu0 %v1838
        %2237 = vmatpush.bf16.msra.mxu0 %v1834
        %2238 = vmatmul.bf16.gmra.mxu0 %v2190
        %v2239 = vpop.f32.mrf.mxu0
        %v2240 = vadd.f32 0.0, %v2239
        %v2241 = vpop.f32.mrf.mxu0
        %2242 = vdwg.mxu0
        %v2243 = vadd.f32 %v2148, %v2201
        %v2244 = vadd.f32 %v2161, %v2214
        %v2245 = vadd.f32 %v2174, %v2227
        %v2246 = vadd.f32 %v2187, %v2240
        %v2247 = vxor.u32 %v2243, 2147483648
        %v2248 = vmul.f32 %v2247, 1.442695
        %v2249 = vpow.pop %v2248
        %v2250 = vadd.f32 %v2249, 1.0
        %v2251 = vrcp.pop %v2250
        %v2252 = vmul.f32 %v2250, %v2251
        %v2253 = vsub.f32 1.0, %v2252
        %v2254 = vmul.f32 %v2251, %v2253
        %v2255 = vadd.f32 %v2251, %v2254
        %vm2256 = vweird.f32 %v2250
        %vm2257 = vweird.f32 %v2251
        %vm2258 = vmor %vm2256, %vm2257
        %v2259 = vsel %vm2258, %v2251, %v2255
        %v2260 = vand.u32 2147483647, %v2250
        %vm2261 = vcmp.eq.f32.partialorder %v2260, 8.507059e+37
        %v2262 = vand.u32 %v2250, 2147483648
        %v2263 = vor.u32 1.1754944e-38, %v2262
        %v2264 = vsel %vm2261, %v2263, %v2259
        %v2265 = vmul.f32 1.0, %v2264
        %v2266 = vxor.u32 %v2244, 2147483648
        %v2267 = vmul.f32 %v2266, 1.442695
        %v2268 = vpow.pop %v2267
        %v2269 = vadd.f32 %v2268, 1.0
        %v2270 = vrcp.pop %v2269
        %v2271 = vmul.f32 %v2269, %v2270
        %v2272 = vsub.f32 1.0, %v2271
        %v2273 = vmul.f32 %v2270, %v2272
        %v2274 = vadd.f32 %v2270, %v2273
        %vm2275 = vweird.f32 %v2269
        %vm2276 = vweird.f32 %v2270
        %vm2277 = vmor %vm2275, %vm2276
        %v2278 = vsel %vm2277, %v2270, %v2274
        %v2279 = vand.u32 2147483647, %v2269
        %vm2280 = vcmp.eq.f32.partialorder %v2279, 8.507059e+37
        %v2281 = vand.u32 %v2269, 2147483648
        %v2282 = vor.u32 1.1754944e-38, %v2281
        %v2283 = vsel %vm2280, %v2282, %v2278
        %v2284 = vmul.f32 1.0, %v2283
        %v2285 = vtanh.pop %v2245
        %v2286 = vxor.u32 %v2246, 2147483648
        %v2287 = vmul.f32 %v2286, 1.442695
        %v2288 = vpow.pop %v2287
        %v2289 = vadd.f32 %v2288, 1.0
        %v2290 = vrcp.pop %v2289
        %v2291 = vmul.f32 %v2289, %v2290
        %v2292 = vsub.f32 1.0, %v2291
        %v2293 = vmul.f32 %v2290, %v2292
        %v2294 = vadd.f32 %v2290, %v2293
        %vm2295 = vweird.f32 %v2289
        %vm2296 = vweird.f32 %v2290
        %vm2297 = vmor %vm2295, %vm2296
        %v2298 = vsel %vm2297, %v2290, %v2294
        %v2299 = vand.u32 2147483647, %v2289
        %vm2300 = vcmp.eq.f32.partialorder %v2299, 8.507059e+37
        %v2301 = vand.u32 %v2289, 2147483648
        %v2302 = vor.u32 1.1754944e-38, %v2301
        %v2303 = vsel %vm2300, %v2302, %v2298
        %v2304 = vmul.f32 1.0, %v2303
        %v2305 = vmul.f32 %v2284, %v2011
        %v2306 = vmul.f32 %v2265, %v2285
        %v2307 = vadd.f32 %v2305, %v2306
        %v2308 = vtanh.pop %v2307
        %v2309 = vmul.f32 %v2304, %v2308
        %v2310 = vld [vmem:[#allocation2 + $0x40] sm:$0xff]
        %v2311 = vld [vmem:[#allocation2 + $0x48] sm:$0xff]
        %v2312 = vld [vmem:[#allocation2 + $0x50] sm:$0xff]
        %v2313 = vld [vmem:[#allocation2 + $0x58] sm:$0xff]
        %2314 = vmatpush.bf16.msra.mxu0 %v1293
        %2315 = vmatpush.bf16.msra.mxu0 %v1289
        %2316 = vmatpush.bf16.msra.mxu0 %v1285
        %2317 = vmatpush.bf16.msra.mxu0 %v1281
        %2318 = vmatpush.bf16.msra.mxu0 %v1277
        %2319 = vmatpush.bf16.msra.mxu0 %v1273
        %2320 = vmatpush.bf16.msra.mxu0 %v1269
        %2321 = vmatpush.bf16.msra.mxu0 %v1265
        %2322 = vmatmul.bf16.gmra.mxu0 %v2137
        %v2323 = vpop.f32.mrf.mxu0
        %v2324 = vadd.f32 0.0, %v2323
        %v2325 = vpop.f32.mrf.mxu0
        %2326 = vdwg.mxu0
        %2327 = vmatpush.bf16.msra.mxu0 %v1294
        %2328 = vmatpush.bf16.msra.mxu0 %v1290
        %2329 = vmatpush.bf16.msra.mxu0 %v1286
        %2330 = vmatpush.bf16.msra.mxu0 %v1282
        %2331 = vmatpush.bf16.msra.mxu0 %v1278
        %2332 = vmatpush.bf16.msra.mxu0 %v1274
        %2333 = vmatpush.bf16.msra.mxu0 %v1270
        %2334 = vmatpush.bf16.msra.mxu0 %v1266
        %2335 = vmatmul.bf16.gmra.mxu0 %v2137
        %v2336 = vpop.f32.mrf.mxu0
        %v2337 = vadd.f32 0.0, %v2336
        %v2338 = vpop.f32.mrf.mxu0
        %2339 = vdwg.mxu0
        %2340 = vmatpush.bf16.msra.mxu0 %v1295
        %2341 = vmatpush.bf16.msra.mxu0 %v1291
        %2342 = vmatpush.bf16.msra.mxu0 %v1287
        %2343 = vmatpush.bf16.msra.mxu0 %v1283
        %2344 = vmatpush.bf16.msra.mxu0 %v1279
        %2345 = vmatpush.bf16.msra.mxu0 %v1275
        %2346 = vmatpush.bf16.msra.mxu0 %v1271
        %2347 = vmatpush.bf16.msra.mxu0 %v1267
        %2348 = vmatmul.bf16.gmra.mxu0 %v2137
        %v2349 = vpop.f32.mrf.mxu0
        %v2350 = vadd.f32 0.0, %v2349
        %v2351 = vpop.f32.mrf.mxu0
        %2352 = vdwg.mxu0
        %2353 = vmatpush.bf16.msra.mxu0 %v1296
        %2354 = vmatpush.bf16.msra.mxu0 %v1292
        %2355 = vmatpush.bf16.msra.mxu0 %v1288
        %2356 = vmatpush.bf16.msra.mxu0 %v1284
        %2357 = vmatpush.bf16.msra.mxu0 %v1280
        %2358 = vmatpush.bf16.msra.mxu0 %v1276
        %2359 = vmatpush.bf16.msra.mxu0 %v1272
        %2360 = vmatpush.bf16.msra.mxu0 %v1268
        %2361 = vmatmul.bf16.gmra.mxu0 %v2137
        %v2362 = vpop.f32.mrf.mxu0
        %v2363 = vadd.f32 0.0, %v2362
        %v2364 = vpop.f32.mrf.mxu0
        %2365 = vdwg.mxu0
        %v2366 = vadd.f32 %v2310, %v2324
        %v2367 = vadd.f32 %v2311, %v2337
        %v2368 = vadd.f32 %v2312, %v2350
        %v2369 = vadd.f32 %v2313, %v2363
        %v2370 = vxor.u32 %v2366, 2147483648
        %v2371 = vmul.f32 %v2370, 1.442695
        %v2372 = vpow.pop %v2371
        %v2373 = vadd.f32 %v2372, 1.0
        %v2374 = vrcp.pop %v2373
        %v2375 = vmul.f32 %v2373, %v2374
        %v2376 = vsub.f32 1.0, %v2375
        %v2377 = vmul.f32 %v2374, %v2376
        %v2378 = vadd.f32 %v2374, %v2377
        %vm2379 = vweird.f32 %v2373
        %vm2380 = vweird.f32 %v2374
        %vm2381 = vmor %vm2379, %vm2380
        %v2382 = vsel %vm2381, %v2374, %v2378
        %v2383 = vand.u32 2147483647, %v2373
        %vm2384 = vcmp.eq.f32.partialorder %v2383, 8.507059e+37
        %v2385 = vand.u32 %v2373, 2147483648
        %v2386 = vor.u32 1.1754944e-38, %v2385
        %v2387 = vsel %vm2384, %v2386, %v2382
        %v2388 = vmul.f32 1.0, %v2387
        %v2389 = vxor.u32 %v2367, 2147483648
        %v2390 = vmul.f32 %v2389, 1.442695
        %v2391 = vpow.pop %v2390
        %v2392 = vadd.f32 %v2391, 1.0
        %v2393 = vrcp.pop %v2392
        %v2394 = vmul.f32 %v2392, %v2393
        %v2395 = vsub.f32 1.0, %v2394
        %v2396 = vmul.f32 %v2393, %v2395
        %v2397 = vadd.f32 %v2393, %v2396
        %vm2398 = vweird.f32 %v2392
        %vm2399 = vweird.f32 %v2393
        %vm2400 = vmor %vm2398, %vm2399
        %v2401 = vsel %vm2400, %v2393, %v2397
        %v2402 = vand.u32 2147483647, %v2392
        %vm2403 = vcmp.eq.f32.partialorder %v2402, 8.507059e+37
        %v2404 = vand.u32 %v2392, 2147483648
        %v2405 = vor.u32 1.1754944e-38, %v2404
        %v2406 = vsel %vm2403, %v2405, %v2401
        %v2407 = vmul.f32 1.0, %v2406
        %v2408 = vtanh.pop %v2368
        %v2409 = vxor.u32 %v2369, 2147483648
        %v2410 = vmul.f32 %v2409, 1.442695
        %v2411 = vpow.pop %v2410
        %v2412 = vadd.f32 %v2411, 1.0
        %v2413 = vrcp.pop %v2412
        %v2414 = vmul.f32 %v2412, %v2413
        %v2415 = vsub.f32 1.0, %v2414
        %v2416 = vmul.f32 %v2413, %v2415
        %v2417 = vadd.f32 %v2413, %v2416
        %vm2418 = vweird.f32 %v2412
        %vm2419 = vweird.f32 %v2413
        %vm2420 = vmor %vm2418, %vm2419
        %v2421 = vsel %vm2420, %v2413, %v2417
        %v2422 = vand.u32 2147483647, %v2412
        %vm2423 = vcmp.eq.f32.partialorder %v2422, 8.507059e+37
        %v2424 = vand.u32 %v2412, 2147483648
        %v2425 = vor.u32 1.1754944e-38, %v2424
        %v2426 = vsel %vm2423, %v2425, %v2421
        %v2427 = vmul.f32 1.0, %v2426
        %v2428 = vmul.f32 %v2407, %v2134
        %v2429 = vmul.f32 %v2388, %v2408
        %v2430 = vadd.f32 %v2428, %v2429
        %v2431 = vtanh.pop %v2430
        %v2432 = vmul.f32 %v2427, %v2431
        %v2433 = vpack.c.bf16 %v2432, %v2432
        %2434 = vmatpush.bf16.msra.mxu0 %v1647
        %2435 = vmatpush.bf16.msra.mxu0 %v1643
        %2436 = vmatpush.bf16.msra.mxu0 %v1639
        %2437 = vmatpush.bf16.msra.mxu0 %v1635
        %2438 = vmatpush.bf16.msra.mxu0 %v1631
        %2439 = vmatpush.bf16.msra.mxu0 %v1627
        %2440 = vmatpush.bf16.msra.mxu0 %v1623
        %2441 = vmatpush.bf16.msra.mxu0 %v1619
        %2442 = vmatmul.bf16.gmra.mxu0 %v2433
        %v2443 = vpop.f32.mrf.mxu0
        %v2444 = vadd.f32 %v1515, %v2443
        %v2445 = vpop.f32.mrf.mxu0
        %2446 = vdwg.mxu0
        %2447 = vmatpush.bf16.msra.mxu0 %v1648
        %2448 = vmatpush.bf16.msra.mxu0 %v1644
        %2449 = vmatpush.bf16.msra.mxu0 %v1640
        %2450 = vmatpush.bf16.msra.mxu0 %v1636
        %2451 = vmatpush.bf16.msra.mxu0 %v1632
        %2452 = vmatpush.bf16.msra.mxu0 %v1628
        %2453 = vmatpush.bf16.msra.mxu0 %v1624
        %2454 = vmatpush.bf16.msra.mxu0 %v1620
        %2455 = vmatmul.bf16.gmra.mxu0 %v2433
        %v2456 = vpop.f32.mrf.mxu0
        %v2457 = vadd.f32 %v1516, %v2456
        %v2458 = vpop.f32.mrf.mxu0
        %2459 = vdwg.mxu0
        %2460 = vmatpush.bf16.msra.mxu0 %v1649
        %2461 = vmatpush.bf16.msra.mxu0 %v1645
        %2462 = vmatpush.bf16.msra.mxu0 %v1641
        %2463 = vmatpush.bf16.msra.mxu0 %v1637
        %2464 = vmatpush.bf16.msra.mxu0 %v1633
        %2465 = vmatpush.bf16.msra.mxu0 %v1629
        %2466 = vmatpush.bf16.msra.mxu0 %v1625
        %2467 = vmatpush.bf16.msra.mxu0 %v1621
        %2468 = vmatmul.bf16.gmra.mxu0 %v2433
        %v2469 = vpop.f32.mrf.mxu0
        %v2470 = vadd.f32 %v1517, %v2469
        %v2471 = vpop.f32.mrf.mxu0
        %2472 = vdwg.mxu0
        %2473 = vmatpush.bf16.msra.mxu0 %v1650
        %2474 = vmatpush.bf16.msra.mxu0 %v1646
        %2475 = vmatpush.bf16.msra.mxu0 %v1642
        %2476 = vmatpush.bf16.msra.mxu0 %v1638
        %2477 = vmatpush.bf16.msra.mxu0 %v1634
        %2478 = vmatpush.bf16.msra.mxu0 %v1630
        %2479 = vmatpush.bf16.msra.mxu0 %v1626
        %2480 = vmatpush.bf16.msra.mxu0 %v1622
        %2481 = vmatmul.bf16.gmra.mxu0 %v2433
        %v2482 = vpop.f32.mrf.mxu0
        %v2483 = vadd.f32 %v1518, %v2482
        %v2484 = vpop.f32.mrf.mxu0
        %2485 = vdwg.mxu0
        %v2486 = vpack.c.bf16 %v2309, %v2309
        %2487 = vmatpush.bf16.msra.mxu0 %v1859
        %2488 = vmatpush.bf16.msra.mxu0 %v1855
        %2489 = vmatpush.bf16.msra.mxu0 %v1851
        %2490 = vmatpush.bf16.msra.mxu0 %v1847
        %2491 = vmatpush.bf16.msra.mxu0 %v1843
        %2492 = vmatpush.bf16.msra.mxu0 %v1839
        %2493 = vmatpush.bf16.msra.mxu0 %v1835
        %2494 = vmatpush.bf16.msra.mxu0 %v1831
        %2495 = vmatmul.bf16.gmra.mxu0 %v2486
        %v2496 = vpop.f32.mrf.mxu0
        %v2497 = vadd.f32 0.0, %v2496
        %v2498 = vpop.f32.mrf.mxu0
        %2499 = vdwg.mxu0
        %2500 = vmatpush.bf16.msra.mxu0 %v1860
        %2501 = vmatpush.bf16.msra.mxu0 %v1856
        %2502 = vmatpush.bf16.msra.mxu0 %v1852
        %2503 = vmatpush.bf16.msra.mxu0 %v1848
        %2504 = vmatpush.bf16.msra.mxu0 %v1844
        %2505 = vmatpush.bf16.msra.mxu0 %v1840
        %2506 = vmatpush.bf16.msra.mxu0 %v1836
        %2507 = vmatpush.bf16.msra.mxu0 %v1832
        %2508 = vmatmul.bf16.gmra.mxu0 %v2486
        %v2509 = vpop.f32.mrf.mxu0
        %v2510 = vadd.f32 0.0, %v2509
        %v2511 = vpop.f32.mrf.mxu0
        %2512 = vdwg.mxu0
        %2513 = vmatpush.bf16.msra.mxu0 %v1861
        %2514 = vmatpush.bf16.msra.mxu0 %v1857
        %2515 = vmatpush.bf16.msra.mxu0 %v1853
        %2516 = vmatpush.bf16.msra.mxu0 %v1849
        %2517 = vmatpush.bf16.msra.mxu0 %v1845
        %2518 = vmatpush.bf16.msra.mxu0 %v1841
        %2519 = vmatpush.bf16.msra.mxu0 %v1837
        %2520 = vmatpush.bf16.msra.mxu0 %v1833
        %2521 = vmatmul.bf16.gmra.mxu0 %v2486
        %v2522 = vpop.f32.mrf.mxu0
        %v2523 = vadd.f32 0.0, %v2522
        %v2524 = vpop.f32.mrf.mxu0
        %2525 = vdwg.mxu0
        %2526 = vmatpush.bf16.msra.mxu0 %v1862
        %2527 = vmatpush.bf16.msra.mxu0 %v1858
        %2528 = vmatpush.bf16.msra.mxu0 %v1854
        %2529 = vmatpush.bf16.msra.mxu0 %v1850
        %2530 = vmatpush.bf16.msra.mxu0 %v1846
        %2531 = vmatpush.bf16.msra.mxu0 %v1842
        %2532 = vmatpush.bf16.msra.mxu0 %v1838
        %2533 = vmatpush.bf16.msra.mxu0 %v1834
        %2534 = vmatmul.bf16.gmra.mxu0 %v2486
        %v2535 = vpop.f32.mrf.mxu0
        %v2536 = vadd.f32 0.0, %v2535
        %v2537 = vpop.f32.mrf.mxu0
        %2538 = vdwg.mxu0
        %v2539 = vadd.f32 %v2444, %v2497
        %v2540 = vadd.f32 %v2457, %v2510
        %v2541 = vadd.f32 %v2470, %v2523
        %v2542 = vadd.f32 %v2483, %v2536
        %v2543 = vxor.u32 %v2539, 2147483648
        %v2544 = vmul.f32 %v2543, 1.442695
        %v2545 = vpow.pop %v2544
        %v2546 = vadd.f32 %v2545, 1.0
        %v2547 = vrcp.pop %v2546
        %v2548 = vmul.f32 %v2546, %v2547
        %v2549 = vsub.f32 1.0, %v2548
        %v2550 = vmul.f32 %v2547, %v2549
        %v2551 = vadd.f32 %v2547, %v2550
        %vm2552 = vweird.f32 %v2546
        %vm2553 = vweird.f32 %v2547
        %vm2554 = vmor %vm2552, %vm2553
        %v2555 = vsel %vm2554, %v2547, %v2551
        %v2556 = vand.u32 2147483647, %v2546
        %vm2557 = vcmp.eq.f32.partialorder %v2556, 8.507059e+37
        %v2558 = vand.u32 %v2546, 2147483648
        %v2559 = vor.u32 1.1754944e-38, %v2558
        %v2560 = vsel %vm2557, %v2559, %v2555
        %v2561 = vmul.f32 1.0, %v2560
        %v2562 = vxor.u32 %v2540, 2147483648
        %v2563 = vmul.f32 %v2562, 1.442695
        %v2564 = vpow.pop %v2563
        %v2565 = vadd.f32 %v2564, 1.0
        %v2566 = vrcp.pop %v2565
        %v2567 = vmul.f32 %v2565, %v2566
        %v2568 = vsub.f32 1.0, %v2567
        %v2569 = vmul.f32 %v2566, %v2568
        %v2570 = vadd.f32 %v2566, %v2569
        %vm2571 = vweird.f32 %v2565
        %vm2572 = vweird.f32 %v2566
        %vm2573 = vmor %vm2571, %vm2572
        %v2574 = vsel %vm2573, %v2566, %v2570
        %v2575 = vand.u32 2147483647, %v2565
        %vm2576 = vcmp.eq.f32.partialorder %v2575, 8.507059e+37
        %v2577 = vand.u32 %v2565, 2147483648
        %v2578 = vor.u32 1.1754944e-38, %v2577
        %v2579 = vsel %vm2576, %v2578, %v2574
        %v2580 = vmul.f32 1.0, %v2579
        %v2581 = vtanh.pop %v2541
        %v2582 = vxor.u32 %v2542, 2147483648
        %v2583 = vmul.f32 %v2582, 1.442695
        %v2584 = vpow.pop %v2583
        %v2585 = vadd.f32 %v2584, 1.0
        %v2586 = vrcp.pop %v2585
        %v2587 = vmul.f32 %v2585, %v2586
        %v2588 = vsub.f32 1.0, %v2587
        %v2589 = vmul.f32 %v2586, %v2588
        %v2590 = vadd.f32 %v2586, %v2589
        %vm2591 = vweird.f32 %v2585
        %vm2592 = vweird.f32 %v2586
        %vm2593 = vmor %vm2591, %vm2592
        %v2594 = vsel %vm2593, %v2586, %v2590
        %v2595 = vand.u32 2147483647, %v2585
        %vm2596 = vcmp.eq.f32.partialorder %v2595, 8.507059e+37
        %v2597 = vand.u32 %v2585, 2147483648
        %v2598 = vor.u32 1.1754944e-38, %v2597
        %v2599 = vsel %vm2596, %v2598, %v2594
        %v2600 = vmul.f32 1.0, %v2599
        %v2601 = vmul.f32 %v2580, %v2307
        %v2602 = vmul.f32 %v2561, %v2581
        %v2603 = vadd.f32 %v2601, %v2602
        %v2604 = vtanh.pop %v2603
        %v2605 = vmul.f32 %v2600, %v2604
        %2606 = vst [vmem:[%s457] sm:$0xff] %v2605
        %p2607 = scmp.lt.s32.totalorder %s25, 1
        %s2608 = scalar_select %p2607, %s25, 1
        %s2609 = smul.addr %s2608, 8
        %s2610 = scalar_lea.vmem %s9, %s2609
        // Predicated region
        $region89: #{_lambda_.2} parent=55 // pred_check
          %p2611 = pneg %p237
        $region90: #{_lambda_.2} parent=55 // pred_check_branch
          %2613 = sbr.rel (%p2611) target = $region92
        $region91: #{_lambda_.2} parent=55 // pred_region
          _
        $region92: #{_lambda_.2} parent=55 // pred_fallthru
          _
      $region56: #{_lambda_.2} parent=5 // pred_fallthru
        _
      %p2614 = scmp.le.s32.totalorder 2, %s20
      // Predicated region
      $region93: #{_lambda_.2} parent=5 // pred_check
        %p2615 = pneg %p2614
      $region94: #{_lambda_.2} parent=5 // pred_check_branch
        %2617 = sbr.rel (%p2615) target = $region96
      $region95: #{_lambda_.2} parent=5 // pred_region
        %s2618 = ssub.s32 %s20, 2
        // Predicated region
        $region97: #{_lambda_.2} parent=95 // pred_check
          %p2619 = pneg %p243
        $region98: #{_lambda_.2} parent=95 // pred_check_branch
          %2621 = sbr.rel (%p2619) target = $region100
        $region99: #{_lambda_.2} parent=95 // pred_region
          %p2622 = scmp.lt.s32.totalorder %s26, 1
          %s2623 = scalar_select %p2622, %s26, 1
          %s2624 = smul.addr %s2623, 8
          %s2625 = scalar_lea.vmem %s9, %s2624
        $region100: #{_lambda_.2} parent=95 // pred_fallthru
          _
      $region96: #{_lambda_.2} parent=5 // pred_fallthru
        _
    $region6: #{_lambda_.2} parent=1 // loop_footer
      %s24 = sadd.s32 1, %s20
    $region7: #{_lambda_.2} parent=1 // loop_footer_branch
      %19 = sbr.rel target = $region3
    $region8: #{_lambda_.2} parent=1 // loop_exit
      _
    %2626 = vsyncpa [#allocation4], 1
    %s2627 = scalar_lea.sflag [#allocation4], 1
    %2628 = vsyncpa %s2627, 1
    %2629 = vsyncpa [#allocation6], 1
    %2630 = vsyncpa [#allocation9], 1
    %2631 = vsyncpa [#allocation12], 1
    %2632 = vsyncpa [#allocation15], 1

</llo_original>
